<compile_context>
chip_gen: v7x
topology: tpu7x:2x2x1
jax: 0.10.0
libtpu: 0.0.40
codegen_flags: <defaults>
</compile_context>

<pallas_src>
import functools

import jax
import jax.numpy as jnp
import numpy as np
from jax import lax
from jax.experimental import pallas as pl
from jax.experimental.pallas import tpu as pltpu


def _round_up(x, m):
    return (x + m - 1) // m * m


def _bidir_gru_layer_kernel(*refs, n_parts, batch, hidden, t_tile, t_valid):
    """One grid step = one time chunk, both directions.

    Ref order: x_fwd parts, x_bwd parts, W_ih_fwd parts, W_ih_bwd parts,
               W_hh_fwd, W_hh_bwd, biases(4,3H), out_fwd, out_bwd,
               scratch: proj_fwd, proj_bwd, h_fwd, h_bwd.
    """
    H = hidden
    k = 0
    xf = refs[k:k + n_parts]; k += n_parts          # (B, t_tile, D_p) each
    xb = refs[k:k + n_parts]; k += n_parts
    wif = refs[k:k + n_parts]; k += n_parts          # (D_p, 3H) each
    wib = refs[k:k + n_parts]; k += n_parts
    whh_f_ref, whh_b_ref, bias_ref = refs[k:k + 3]; k += 3
    of_ref, ob_ref = refs[k:k + 2]; k += 2           # (B, t_tile, H)
    pf_sc, pb_sc, hf_sc, hb_sc = refs[k:k + 4]

    c = pl.program_id(0)
    n_chunks = pl.num_programs(0)

    @pl.when(c == 0)
    def _():
        hf_sc[...] = jnp.zeros_like(hf_sc)
        hb_sc[...] = jnp.zeros_like(hb_sc)

    b_ih_f = bias_ref[0:1, :]   # (1, 3H)
    b_hh_f = bias_ref[1:2, :]
    b_ih_b = bias_ref[2:3, :]
    b_hh_b = bias_ref[3:4, :]

    # Chunk-wide input projections: one MXU matmul per (batch row, part, dir).
    # Weights are VMEM-resident (constant index_map) across the whole grid.
    for b in range(batch):
        pf = b_ih_f
        pb = b_ih_b
        for p in range(n_parts):
            pf = pf + jnp.dot(xf[p][b], wif[p][...],
                              preferred_element_type=jnp.float32)
            pb = pb + jnp.dot(xb[p][b], wib[p][...],
                              preferred_element_type=jnp.float32)
        pf_sc[b] = pf            # (t_tile, 3H)
        pb_sc[b] = pb

    whf = whh_f_ref[...]         # (H, 3H), loaded once, reused every step
    whb = whh_b_ref[...]

    def cell(gi, gh, h_prev):
        # PyTorch GRU gate order [r, z, n]; b_hn stays inside the r-gating.
        r = jax.nn.sigmoid(gi[:, :H] + gh[:, :H])
        z = jax.nn.sigmoid(gi[:, H:2 * H] + gh[:, H:2 * H])
        n = jnp.tanh(gi[:, 2 * H:] + r * gh[:, 2 * H:])
        return (1.0 - z) * n + z * h_prev

    def step(i, carry):
        hf, hb = carry
        # ---- forward direction: local time i, global time c*t_tile + i ----
        gi_f = pf_sc[:, i, :]                                    # (B, 3H)
        gh_f = jnp.dot(hf, whf, preferred_element_type=jnp.float32) + b_hh_f
        hf_new = cell(gi_f, gh_f, hf)
        hf_new = jnp.where(c * t_tile + i < t_valid, hf_new, hf)  # pad mask
        of_ref[:, i, :] = hf_new.astype(of_ref.dtype)

        # ---- backward direction: reversed local time, mirrored chunk ----
        j = t_tile - 1 - i
        gi_b = pb_sc[:, j, :]
        gh_b = jnp.dot(hb, whb, preferred_element_type=jnp.float32) + b_hh_b
        hb_new = cell(gi_b, gh_b, hb)
        hb_new = jnp.where((n_chunks - 1 - c) * t_tile + j < t_valid,
                           hb_new, hb)                            # pad mask
        ob_ref[:, j, :] = hb_new.astype(ob_ref.dtype)
        return hf_new, hb_new

    hf_last, hb_last = lax.fori_loop(0, t_tile, step,
                                     (hf_sc[...], hb_sc[...]))
    hf_sc[...] = hf_last
    hb_sc[...] = hb_last


def bidir_gru_layer(x_parts, lp, *, t_tile=128):
    """One bidirectional GRU layer.

    x_parts: list of (B, T, D_p) float32 inputs (the layer input split along
             features; layer 0 has one part, deeper layers get [fwd, bwd]).
    Returns (out_fwd, out_bwd), each (B, T, H).
    """
    B, T, _ = x_parts[0].shape
    H = lp["whh_f"].shape[0]
    n_parts = len(x_parts)

    tt = _round_up(min(t_tile, _round_up(T, 8)), 8)
    T_pad = _round_up(T, tt)
    n_chunks = T_pad // tt

    if T_pad != T:
        x_parts = [jnp.pad(xp, ((0, 0), (0, T_pad - T), (0, 0)))
                   for xp in x_parts]

    kern = functools.partial(_bidir_gru_layer_kernel, n_parts=n_parts,
                             batch=B, hidden=H, t_tile=tt, t_valid=T)

    def fwd_map(c):
        return (0, c, 0)

    def bwd_map(c):
        return (0, n_chunks - 1 - c, 0)

    def const2d(arr):
        return pl.BlockSpec(arr.shape, lambda c: (0, 0))

    in_specs = (
        [pl.BlockSpec((B, tt, xp.shape[2]), fwd_map) for xp in x_parts]
        + [pl.BlockSpec((B, tt, xp.shape[2]), bwd_map) for xp in x_parts]
        + [const2d(w) for w in lp["wih_f"]]
        + [const2d(w) for w in lp["wih_b"]]
        + [const2d(lp["whh_f"]), const2d(lp["whh_b"]), const2d(lp["bias"])]
    )
    out_specs = [
        pl.BlockSpec((B, tt, H), fwd_map),
        pl.BlockSpec((B, tt, H), bwd_map),
    ]
    out_shape = [jax.ShapeDtypeStruct((B, T_pad, H), jnp.float32),
                 jax.ShapeDtypeStruct((B, T_pad, H), jnp.float32)]
    scratch_shapes = [
        pltpu.VMEM((B, tt, 3 * H), jnp.float32),   # fwd input projection
        pltpu.VMEM((B, tt, 3 * H), jnp.float32),   # bwd input projection
        pltpu.VMEM((B, H), jnp.float32),           # h_fwd carry across chunks
        pltpu.VMEM((B, H), jnp.float32),           # h_bwd carry across chunks
    ]

    of, ob = pl.pallas_call(
        kern,
        out_shape=out_shape,
        grid=(n_chunks,),
        in_specs=in_specs,
        out_specs=out_specs,
        scratch_shapes=scratch_shapes,
        compiler_params=pltpu.CompilerParams(
            dimension_semantics=("arbitrary",)),   # sequential recurrence
    )(*x_parts, *x_parts, *lp["wih_f"], *lp["wih_b"],
      lp["whh_f"], lp["whh_b"], lp["bias"])

    if T_pad != T:
        of = of[:, :T, :]
        ob = ob[:, :T, :]
    return of, ob


def bidir_ar_tangled_forward(x, params, *, t_tile=128):
    """BiDIRARTangled.forward: x (B, T, dimEncoded) -> (B, T, dimOutput)."""
    # TODO(synk): ARNet.flatten_parameters() is a cuDNN memory-layout hint
    # with no computational effect; nothing to translate.
    parts = [x]
    for lp in params:
        of, ob = bidir_gru_layer(parts, lp, t_tile=t_tile)
        parts = [of, ob]          # fed to the next layer without concatenating
    return jnp.concatenate(parts, axis=-1)


# ----------------------------- reference & init -----------------------------

_HI = jax.lax.Precision.HIGHEST


def _gru_cell_ref(x_t, h, w_ih, w_hh, b_ih, b_hh):
    H = h.shape[-1]
    gi = jnp.dot(x_t, w_ih.T, precision=_HI) + b_ih
    gh = jnp.dot(h, w_hh.T, precision=_HI) + b_hh
    r = jax.nn.sigmoid(gi[:, :H] + gh[:, :H])
    z = jax.nn.sigmoid(gi[:, H:2 * H] + gh[:, H:2 * H])
    n = jnp.tanh(gi[:, 2 * H:] + r * gh[:, 2 * H:])
    return (1.0 - z) * n + z * h


def _gru_dir_ref(x, w_ih, w_hh, b_ih, b_hh, reverse):
    B, T, _ = x.shape
    H = w_hh.shape[1]
    xs = jnp.swapaxes(x, 0, 1)            # (T, B, D)
    if reverse:
        xs = xs[::-1]

    def step(h, x_t):
        h2 = _gru_cell_ref(x_t, h, w_ih, w_hh, b_ih, b_hh)
        return h2, h2

    _, ys = lax.scan(step, jnp.zeros((B, H), x.dtype), xs)
    if reverse:
        ys = ys[::-1]
    return jnp.swapaxes(ys, 0, 1)         # (B, T, H)


def _ref_forward(x, raw_params):
    """Pure-JAX reference of the PyTorch bidirectional multi-layer GRU."""
    for rp in raw_params:
        yf = _gru_dir_ref(x, rp["w_ih_f"], rp["w_hh_f"],
                          rp["b_ih_f"], rp["b_hh_f"], reverse=False)
        yb = _gru_dir_ref(x, rp["w_ih_b"], rp["w_hh_b"],
                          rp["b_ih_b"], rp["b_hh_b"], reverse=True)
        x = jnp.concatenate([yf, yb], axis=-1)
    return x


def init_raw_params(key, dim_encoded, dim_output, n_levels):
    """PyTorch-layout GRU weights, uniform(-1/sqrt(H), 1/sqrt(H)) init."""
    assert dim_output % 2 == 0
    H = dim_output // 2
    bound = 1.0 / np.sqrt(H)
    raw = []
    in_dim = dim_encoded
    for _ in range(n_levels):
        layer = {}
        for d in ("f", "b"):
            key, k1, k2, k3, k4 = jax.random.split(key, 5)
            layer[f"w_ih_{d}"] = jax.random.uniform(
                k1, (3 * H, in_dim), jnp.float32, -bound, bound)
            layer[f"w_hh_{d}"] = jax.random.uniform(
                k2, (3 * H, H), jnp.float32, -bound, bound)
            layer[f"b_ih_{d}"] = jax.random.uniform(
                k3, (3 * H,), jnp.float32, -bound, bound)
            layer[f"b_hh_{d}"] = jax.random.uniform(
                k4, (3 * H,), jnp.float32, -bound, bound)
        raw.append(layer)
        in_dim = 2 * H
    return raw


def pack_kernel_params(raw_params, hidden):
    """Transpose weights to (D, 3H)/(H, 3H), split W_ih of deeper layers into
    fwd/bwd input parts, pack the four bias vectors into one (4, 3H) array."""
    H = hidden
    packed = []
    for l, rp in enumerate(raw_params):
        wih_f_T = rp["w_ih_f"].T        # (in_dim, 3H)
        wih_b_T = rp["w_ih_b"].T
        if l == 0:
            wih_f_parts = [wih_f_T]
            wih_b_parts = [wih_b_T]
        else:
            wih_f_parts = [wih_f_T[:H, :], wih_f_T[H:, :]]
            wih_b_parts = [wih_b_T[:H, :], wih_b_T[H:, :]]
        packed.append({
            "wih_f": wih_f_parts,
            "wih_b": wih_b_parts,
            "whh_f": rp["w_hh_f"].T,    # (H, 3H)
            "whh_b": rp["w_hh_b"].T,
            "bias": jnp.stack([rp["b_ih_f"], rp["b_hh_f"],
                               rp["b_ih_b"], rp["b_hh_b"]], axis=0),
        })
    return packed


if __name__ == "__main__":
    key = jax.random.PRNGKey(0)

    # Small shapes: batch=2, seq=72, dimEncoded=64, dimOutput=64 (H=32), 2 GRU
    # layers. t_tile=32 exercises multi-chunk pipelining, the reversed
    # backward chunk order, and the padded-tail masking (T_pad=96 > 72).
    B, T = 2, 72
    dim_encoded, dim_output, n_levels = 64, 64, 2
    H = dim_output // 2

    key, kx = jax.random.split(key)
    x = jax.random.normal(kx, (B, T, dim_encoded), jnp.float32)
    raw_params = init_raw_params(key, dim_encoded, dim_output, n_levels)
    params = pack_kernel_params(raw_params, H)

    fwd = jax.jit(lambda xx, pp: bidir_ar_tangled_forward(xx, pp, t_tile=32))
    out = jax.block_until_ready(fwd(x, params))
    assert out.shape == (B, T, dim_output), out.shape

    ref = jax.block_until_ready(_ref_forward(x, raw_params))
    np.testing.assert_allclose(np.asarray(out), np.asarray(ref),
                               rtol=1e-2, atol=1e-2)
    print("KERNEL_OK")
</pallas_src>

<mosaic_0001>
module attributes {stable_mosaic.version = 11 : i64} {
  func.func @_bidir_gru_layer_kernel(%arg0: i32, %arg1: memref<2x32x64xf32, #tpu.memory_space<vmem>>, %arg2: memref<2x32x64xf32, #tpu.memory_space<vmem>>, %arg3: memref<64x96xf32, #tpu.memory_space<vmem>>, %arg4: memref<64x96xf32, #tpu.memory_space<vmem>>, %arg5: memref<32x96xf32, #tpu.memory_space<vmem>>, %arg6: memref<32x96xf32, #tpu.memory_space<vmem>>, %arg7: memref<4x96xf32, #tpu.memory_space<vmem>>, %arg8: memref<2x32x32xf32, #tpu.memory_space<vmem>>, %arg9: memref<2x32x32xf32, #tpu.memory_space<vmem>>, %arg10: memref<2x32x96xf32, #tpu.memory_space<vmem>>, %arg11: memref<2x32x96xf32, #tpu.memory_space<vmem>>, %arg12: memref<2x32xf32, #tpu.memory_space<vmem>>, %arg13: memref<2x32xf32, #tpu.memory_space<vmem>>) attributes {dimension_semantics = [#tpu.dimension_semantics<arbitrary>], iteration_bounds = array<i64: 3>, scalar_prefetch = 0 : i64, scratch_operands = 4 : i64, tpu.core_type = #tpu.core_type<tc>, window_params = [{transform_indices = @transform_0, window_bounds = array<i64: 2, 32, 64>}, {transform_indices = @transform_1, window_bounds = array<i64: 2, 32, 64>}, {pipeline_mode = #tpu.pipeline_mode<synchronous>, transform_indices = @transform_2, window_bounds = array<i64: 64, 96>}, {pipeline_mode = #tpu.pipeline_mode<synchronous>, transform_indices = @transform_3, window_bounds = array<i64: 64, 96>}, {pipeline_mode = #tpu.pipeline_mode<synchronous>, transform_indices = @transform_4, window_bounds = array<i64: 32, 96>}, {pipeline_mode = #tpu.pipeline_mode<synchronous>, transform_indices = @transform_5, window_bounds = array<i64: 32, 96>}, {pipeline_mode = #tpu.pipeline_mode<synchronous>, transform_indices = @transform_6, window_bounds = array<i64: 4, 96>}, {transform_indices = @transform_7, window_bounds = array<i64: 2, 32, 32>}, {transform_indices = @transform_8, window_bounds = array<i64: 2, 32, 32>}]} {
    %c0_i32 = arith.constant 0 : i32
    %0 = arith.cmpi eq, %arg0, %c0_i32 : i32
    %1 = arith.extui %0 : i1 to i32
    %c0_i32_0 = arith.constant 0 : i32
    %2 = arith.cmpi ne, %1, %c0_i32_0 : i32
    scf.if %2 {
      %cst_54 = arith.constant 0.000000e+00 : f32
      %51 = vector.broadcast %cst_54 : f32 to vector<2x32xf32>
      %c0_55 = arith.constant 0 : index
      %c0_56 = arith.constant 0 : index
      %52 = vector.load %arg12[%c0_55, %c0_56] : memref<2x32xf32, #tpu.memory_space<vmem>>, vector<2x32xf32>
      tpu.vector_store %arg12[%c0_55, %c0_56], %51 {strides = array<i32>} : memref<2x32xf32, #tpu.memory_space<vmem>>, vector<2x32xf32>,
      %cst_57 = arith.constant 0.000000e+00 : f32
      %53 = vector.broadcast %cst_57 : f32 to vector<2x32xf32>
      %c0_58 = arith.constant 0 : index
      %c0_59 = arith.constant 0 : index
      %54 = vector.load %arg13[%c0_58, %c0_59] : memref<2x32xf32, #tpu.memory_space<vmem>>, vector<2x32xf32>
      tpu.vector_store %arg13[%c0_58, %c0_59], %53 {strides = array<i32>} : memref<2x32xf32, #tpu.memory_space<vmem>>, vector<2x32xf32>,
    } else {
    }
    %c0 = arith.constant 0 : index
    %c0_1 = arith.constant 0 : index
    %3 = vector.load %arg7[%c0, %c0_1] : memref<4x96xf32, #tpu.memory_space<vmem>>, vector<1x96xf32>
    %c1 = arith.constant 1 : index
    %c0_2 = arith.constant 0 : index
    %4 = vector.load %arg7[%c1, %c0_2] : memref<4x96xf32, #tpu.memory_space<vmem>>, vector<1x96xf32>
    %c2 = arith.constant 2 : index
    %c0_3 = arith.constant 0 : index
    %5 = vector.load %arg7[%c2, %c0_3] : memref<4x96xf32, #tpu.memory_space<vmem>>, vector<1x96xf32>
    %c3 = arith.constant 3 : index
    %c0_4 = arith.constant 0 : index
    %6 = vector.load %arg7[%c3, %c0_4] : memref<4x96xf32, #tpu.memory_space<vmem>>, vector<1x96xf32>
    %c0_5 = arith.constant 0 : index
    %c0_6 = arith.constant 0 : index
    %c0_7 = arith.constant 0 : index
    %7 = vector.load %arg1[%c0_5, %c0_6, %c0_7] : memref<2x32x64xf32, #tpu.memory_space<vmem>>, vector<1x32x64xf32>
    %8 = vector.shape_cast %7 : vector<1x32x64xf32> to vector<32x64xf32>
    %c0_8 = arith.constant 0 : index
    %c0_9 = arith.constant 0 : index
    %9 = vector.load %arg3[%c0_8, %c0_9] : memref<64x96xf32, #tpu.memory_space<vmem>>, vector<64x96xf32>
    %cst = arith.constant dense<0.000000e+00> : vector<32x96xf32>
    %10 = tpu.matmul %8, %9, %cst {dimension_numbers = #tpu.dot_dimension_numbers<[1], [0], [0], [1], [0, 0, 1, 1], [], []>} : vector<32x64xf32>, vector<64x96xf32>, vector<32x96xf32> -> vector<32x96xf32>
    %11 = vector.broadcast %3 : vector<1x96xf32> to vector<32x96xf32>
    %12 = arith.addf %11, %10 : vector<32x96xf32>
    %c0_10 = arith.constant 0 : index
    %c0_11 = arith.constant 0 : index
    %c0_12 = arith.constant 0 : index
    %13 = vector.load %arg2[%c0_10, %c0_11, %c0_12] : memref<2x32x64xf32, #tpu.memory_space<vmem>>, vector<1x32x64xf32>
    %14 = vector.shape_cast %13 : vector<1x32x64xf32> to vector<32x64xf32>
    %c0_13 = arith.constant 0 : index
    %c0_14 = arith.constant 0 : index
    %15 = vector.load %arg4[%c0_13, %c0_14] : memref<64x96xf32, #tpu.memory_space<vmem>>, vector<64x96xf32>
    %cst_15 = arith.constant dense<0.000000e+00> : vector<32x96xf32>
    %16 = tpu.matmul %14, %15, %cst_15 {dimension_numbers = #tpu.dot_dimension_numbers<[1], [0], [0], [1], [0, 0, 1, 1], [], []>} : vector<32x64xf32>, vector<64x96xf32>, vector<32x96xf32> -> vector<32x96xf32>
    %17 = vector.broadcast %5 : vector<1x96xf32> to vector<32x96xf32>
    %18 = arith.addf %17, %16 : vector<32x96xf32>
    %c0_16 = arith.constant 0 : index
    %c0_17 = arith.constant 0 : index
    %c0_18 = arith.constant 0 : index
    %19 = vector.load %arg10[%c0_16, %c0_17, %c0_18] : memref<2x32x96xf32, #tpu.memory_space<vmem>>, vector<1x32x96xf32>
    %20 = vector.shape_cast %19 : vector<1x32x96xf32> to vector<32x96xf32>
    %21 = vector.shape_cast %12 : vector<32x96xf32> to vector<1x32x96xf32>
    tpu.vector_store %arg10[%c0_16, %c0_17, %c0_18], %21 {strides = array<i32>} : memref<2x32x96xf32, #tpu.memory_space<vmem>>, vector<1x32x96xf32>,
    %c0_19 = arith.constant 0 : index
    %c0_20 = arith.constant 0 : index
    %c0_21 = arith.constant 0 : index
    %22 = vector.load %arg11[%c0_19, %c0_20, %c0_21] : memref<2x32x96xf32, #tpu.memory_space<vmem>>, vector<1x32x96xf32>
    %23 = vector.shape_cast %22 : vector<1x32x96xf32> to vector<32x96xf32>
    %24 = vector.shape_cast %18 : vector<32x96xf32> to vector<1x32x96xf32>
    tpu.vector_store %arg11[%c0_19, %c0_20, %c0_21], %24 {strides = array<i32>} : memref<2x32x96xf32, #tpu.memory_space<vmem>>, vector<1x32x96xf32>,
    %c1_22 = arith.constant 1 : index
    %c0_23 = arith.constant 0 : index
    %c0_24 = arith.constant 0 : index
    %25 = vector.load %arg1[%c1_22, %c0_23, %c0_24] : memref<2x32x64xf32, #tpu.memory_space<vmem>>, vector<1x32x64xf32>
    %26 = vector.shape_cast %25 : vector<1x32x64xf32> to vector<32x64xf32>
    %c0_25 = arith.constant 0 : index
    %c0_26 = arith.constant 0 : index
    %27 = vector.load %arg3[%c0_25, %c0_26] : memref<64x96xf32, #tpu.memory_space<vmem>>, vector<64x96xf32>
    %cst_27 = arith.constant dense<0.000000e+00> : vector<32x96xf32>
    %28 = tpu.matmul %26, %27, %cst_27 {dimension_numbers = #tpu.dot_dimension_numbers<[1], [0], [0], [1], [0, 0, 1, 1], [], []>} : vector<32x64xf32>, vector<64x96xf32>, vector<32x96xf32> -> vector<32x96xf32>
    %29 = vector.broadcast %3 : vector<1x96xf32> to vector<32x96xf32>
    %30 = arith.addf %29, %28 : vector<32x96xf32>
    %c1_28 = arith.constant 1 : index
    %c0_29 = arith.constant 0 : index
    %c0_30 = arith.constant 0 : index
    %31 = vector.load %arg2[%c1_28, %c0_29, %c0_30] : memref<2x32x64xf32, #tpu.memory_space<vmem>>, vector<1x32x64xf32>
    %32 = vector.shape_cast %31 : vector<1x32x64xf32> to vector<32x64xf32>
    %c0_31 = arith.constant 0 : index
    %c0_32 = arith.constant 0 : index
    %33 = vector.load %arg4[%c0_31, %c0_32] : memref<64x96xf32, #tpu.memory_space<vmem>>, vector<64x96xf32>
    %cst_33 = arith.constant dense<0.000000e+00> : vector<32x96xf32>
    %34 = tpu.matmul %32, %33, %cst_33 {dimension_numbers = #tpu.dot_dimension_numbers<[1], [0], [0], [1], [0, 0, 1, 1], [], []>} : vector<32x64xf32>, vector<64x96xf32>, vector<32x96xf32> -> vector<32x96xf32>
    %35 = vector.broadcast %5 : vector<1x96xf32> to vector<32x96xf32>
    %36 = arith.addf %35, %34 : vector<32x96xf32>
    %c1_34 = arith.constant 1 : index
    %c0_35 = arith.constant 0 : index
    %c0_36 = arith.constant 0 : index
    %37 = vector.load %arg10[%c1_34, %c0_35, %c0_36] : memref<2x32x96xf32, #tpu.memory_space<vmem>>, vector<1x32x96xf32>
    %38 = vector.shape_cast %37 : vector<1x32x96xf32> to vector<32x96xf32>
    %39 = vector.shape_cast %30 : vector<32x96xf32> to vector<1x32x96xf32>
    tpu.vector_store %arg10[%c1_34, %c0_35, %c0_36], %39 {strides = array<i32>} : memref<2x32x96xf32, #tpu.memory_space<vmem>>, vector<1x32x96xf32>,
    %c1_37 = arith.constant 1 : index
    %c0_38 = arith.constant 0 : index
    %c0_39 = arith.constant 0 : index
    %40 = vector.load %arg11[%c1_37, %c0_38, %c0_39] : memref<2x32x96xf32, #tpu.memory_space<vmem>>, vector<1x32x96xf32>
    %41 = vector.shape_cast %40 : vector<1x32x96xf32> to vector<32x96xf32>
    %42 = vector.shape_cast %36 : vector<32x96xf32> to vector<1x32x96xf32>
    tpu.vector_store %arg11[%c1_37, %c0_38, %c0_39], %42 {strides = array<i32>} : memref<2x32x96xf32, #tpu.memory_space<vmem>>, vector<1x32x96xf32>,
    %c0_40 = arith.constant 0 : index
    %c0_41 = arith.constant 0 : index
    %43 = vector.load %arg5[%c0_40, %c0_41] : memref<32x96xf32, #tpu.memory_space<vmem>>, vector<32x96xf32>
    %c0_42 = arith.constant 0 : index
    %c0_43 = arith.constant 0 : index
    %44 = vector.load %arg6[%c0_42, %c0_43] : memref<32x96xf32, #tpu.memory_space<vmem>>, vector<32x96xf32>
    %c0_44 = arith.constant 0 : index
    %c0_45 = arith.constant 0 : index
    %45 = vector.load %arg12[%c0_44, %c0_45] : memref<2x32xf32, #tpu.memory_space<vmem>>, vector<2x32xf32>
    %c0_46 = arith.constant 0 : index
    %c0_47 = arith.constant 0 : index
    %46 = vector.load %arg13[%c0_46, %c0_47] : memref<2x32xf32, #tpu.memory_space<vmem>>, vector<2x32xf32>
    %c0_i32_48 = arith.constant 0 : i32
    %c32_i32 = arith.constant 32 : i32
    %47 = arith.addi %c0_i32_48, %c32_i32 : i32
    %c1_i32 = arith.constant 1 : i32
    %48:2 = scf.for %arg14 = %c0_i32_48 to %47 step %c1_i32 iter_args(%arg15 = %45, %arg16 = %46) -> (vector<2x32xf32>, vector<2x32xf32>)  : i32 {
      %c0_54 = arith.constant 0 : index
      %51 = arith.index_cast %arg14 : i32 to index
      %c0_55 = arith.constant 0 : index
      %52 = vector.load %arg10[%c0_54, %51, %c0_55] : memref<2x32x96xf32, #tpu.memory_space<vmem>>, vector<2x1x96xf32>
      %53 = vector.shape_cast %52 : vector<2x1x96xf32> to vector<2x96xf32>
      %cst_56 = arith.constant dense<0.000000e+00> : vector<2x96xf32>
      %54 = tpu.matmul %arg15, %43, %cst_56 {dimension_numbers = #tpu.dot_dimension_numbers<[1], [0], [0], [1], [0, 0, 1, 1], [], []>} : vector<2x32xf32>, vector<32x96xf32>, vector<2x96xf32> -> vector<2x96xf32>
      %55 = vector.broadcast %4 : vector<1x96xf32> to vector<2x96xf32>
      %56 = arith.addf %54, %55 : vector<2x96xf32>
      %57 = vector.extract_strided_slice %53 {offsets = [0, 0], sizes = [2, 32], strides = [1, 1]} : vector<2x96xf32> to vector<2x32xf32>
      %58 = vector.extract_strided_slice %56 {offsets = [0, 0], sizes = [2, 32], strides = [1, 1]} : vector<2x96xf32> to vector<2x32xf32>
      %59 = arith.addf %57, %58 : vector<2x32xf32>
      %60 = arith.negf %59 : vector<2x32xf32>
      %61 = math.exp %60 : vector<2x32xf32>
      %cst_57 = arith.constant 1.000000e+00 : f32
      %62 = vector.broadcast %cst_57 : f32 to vector<2x32xf32>
      %63 = arith.addf %62, %61 : vector<2x32xf32>
      %64 = arith.divf %62, %63 : vector<2x32xf32>
      %65 = vector.extract_strided_slice %53 {offsets = [0, 32], sizes = [2, 32], strides = [1, 1]} : vector<2x96xf32> to vector<2x32xf32>
      %66 = vector.extract_strided_slice %56 {offsets = [0, 32], sizes = [2, 32], strides = [1, 1]} : vector<2x96xf32> to vector<2x32xf32>
      %67 = arith.addf %65, %66 : vector<2x32xf32>
      %68 = arith.negf %67 : vector<2x32xf32>
      %69 = math.exp %68 : vector<2x32xf32>
      %cst_58 = arith.constant 1.000000e+00 : f32
      %70 = vector.broadcast %cst_58 : f32 to vector<2x32xf32>
      %71 = arith.addf %70, %69 : vector<2x32xf32>
      %72 = arith.divf %70, %71 : vector<2x32xf32>
      %73 = vector.extract_strided_slice %53 {offsets = [0, 64], sizes = [2, 32], strides = [1, 1]} : vector<2x96xf32> to vector<2x32xf32>
      %74 = vector.extract_strided_slice %56 {offsets = [0, 64], sizes = [2, 32], strides = [1, 1]} : vector<2x96xf32> to vector<2x32xf32>
      %75 = arith.mulf %64, %74 : vector<2x32xf32>
      %76 = arith.addf %73, %75 : vector<2x32xf32>
      %77 = math.tanh %76 : vector<2x32xf32>
      %cst_59 = arith.constant 1.000000e+00 : f32
      %78 = vector.broadcast %cst_59 : f32 to vector<2x32xf32>
      %79 = arith.subf %78, %72 : vector<2x32xf32>
      %80 = arith.mulf %79, %77 : vector<2x32xf32>
      %81 = arith.mulf %72, %arg15 : vector<2x32xf32>
      %82 = arith.addf %80, %81 : vector<2x32xf32>
      %c32_i32_60 = arith.constant 32 : i32
      %83 = arith.muli %arg0, %c32_i32_60 : i32
      %84 = arith.addi %83, %arg14 : i32
      %c72_i32 = arith.constant 72 : i32
      %85 = arith.cmpi slt, %84, %c72_i32 : i32
      %86 = arith.select %85, %82, %arg15 : vector<2x32xf32>
      %c0_61 = arith.constant 0 : index
      %87 = arith.index_cast %arg14 : i32 to index
      %c0_62 = arith.constant 0 : index
      %88 = vector.load %arg8[%c0_61, %87, %c0_62] : memref<2x32x32xf32, #tpu.memory_space<vmem>>, vector<2x1x32xf32>
      %89 = vector.shape_cast %88 : vector<2x1x32xf32> to vector<2x32xf32>
      %90 = vector.shape_cast %86 : vector<2x32xf32> to vector<2x1x32xf32>
      tpu.vector_store %arg8[%c0_61, %87, %c0_62], %90 {strides = array<i32>} : memref<2x32x32xf32, #tpu.memory_space<vmem>>, vector<2x1x32xf32>,
      %c31_i32 = arith.constant 31 : i32
      %91 = arith.subi %c31_i32, %arg14 : i32
      %c0_63 = arith.constant 0 : index
      %92 = arith.index_cast %91 : i32 to index
      %c0_64 = arith.constant 0 : index
      %93 = vector.load %arg11[%c0_63, %92, %c0_64] : memref<2x32x96xf32, #tpu.memory_space<vmem>>, vector<2x1x96xf32>
      %94 = vector.shape_cast %93 : vector<2x1x96xf32> to vector<2x96xf32>
      %cst_65 = arith.constant dense<0.000000e+00> : vector<2x96xf32>
      %95 = tpu.matmul %arg16, %44, %cst_65 {dimension_numbers = #tpu.dot_dimension_numbers<[1], [0], [0], [1], [0, 0, 1, 1], [], []>} : vector<2x32xf32>, vector<32x96xf32>, vector<2x96xf32> -> vector<2x96xf32>
      %96 = vector.broadcast %6 : vector<1x96xf32> to vector<2x96xf32>
      %97 = arith.addf %95, %96 : vector<2x96xf32>
      %98 = vector.extract_strided_slice %94 {offsets = [0, 0], sizes = [2, 32], strides = [1, 1]} : vector<2x96xf32> to vector<2x32xf32>
      %99 = vector.extract_strided_slice %97 {offsets = [0, 0], sizes = [2, 32], strides = [1, 1]} : vector<2x96xf32> to vector<2x32xf32>
      %100 = arith.addf %98, %99 : vector<2x32xf32>
      %101 = arith.negf %100 : vector<2x32xf32>
      %102 = math.exp %101 : vector<2x32xf32>
      %cst_66 = arith.constant 1.000000e+00 : f32
      %103 = vector.broadcast %cst_66 : f32 to vector<2x32xf32>
      %104 = arith.addf %103, %102 : vector<2x32xf32>
      %105 = arith.divf %103, %104 : vector<2x32xf32>
      %106 = vector.extract_strided_slice %94 {offsets = [0, 32], sizes = [2, 32], strides = [1, 1]} : vector<2x96xf32> to vector<2x32xf32>
      %107 = vector.extract_strided_slice %97 {offsets = [0, 32], sizes = [2, 32], strides = [1, 1]} : vector<2x96xf32> to vector<2x32xf32>
      %108 = arith.addf %106, %107 : vector<2x32xf32>
      %109 = arith.negf %108 : vector<2x32xf32>
      %110 = math.exp %109 : vector<2x32xf32>
      %cst_67 = arith.constant 1.000000e+00 : f32
      %111 = vector.broadcast %cst_67 : f32 to vector<2x32xf32>
      %112 = arith.addf %111, %110 : vector<2x32xf32>
      %113 = arith.divf %111, %112 : vector<2x32xf32>
      %114 = vector.extract_strided_slice %94 {offsets = [0, 64], sizes = [2, 32], strides = [1, 1]} : vector<2x96xf32> to vector<2x32xf32>
      %115 = vector.extract_strided_slice %97 {offsets = [0, 64], sizes = [2, 32], strides = [1, 1]} : vector<2x96xf32> to vector<2x32xf32>
      %116 = arith.mulf %105, %115 : vector<2x32xf32>
      %117 = arith.addf %114, %116 : vector<2x32xf32>
      %118 = math.tanh %117 : vector<2x32xf32>
      %cst_68 = arith.constant 1.000000e+00 : f32
      %119 = vector.broadcast %cst_68 : f32 to vector<2x32xf32>
      %120 = arith.subf %119, %113 : vector<2x32xf32>
      %121 = arith.mulf %120, %118 : vector<2x32xf32>
      %122 = arith.mulf %113, %arg16 : vector<2x32xf32>
      %123 = arith.addf %121, %122 : vector<2x32xf32>
      %c2_i32 = arith.constant 2 : i32
      %124 = arith.subi %c2_i32, %arg0 : i32
      %c32_i32_69 = arith.constant 32 : i32
      %125 = arith.muli %124, %c32_i32_69 : i32
      %126 = arith.addi %125, %91 : i32
      %c72_i32_70 = arith.constant 72 : i32
      %127 = arith.cmpi slt, %126, %c72_i32_70 : i32
      %128 = arith.select %127, %123, %arg16 : vector<2x32xf32>
      %c0_71 = arith.constant 0 : index
      %129 = arith.index_cast %91 : i32 to index
      %c0_72 = arith.constant 0 : index
      %130 = vector.load %arg9[%c0_71, %129, %c0_72] : memref<2x32x32xf32, #tpu.memory_space<vmem>>, vector<2x1x32xf32>
      %131 = vector.shape_cast %130 : vector<2x1x32xf32> to vector<2x32xf32>
      %132 = vector.shape_cast %128 : vector<2x32xf32> to vector<2x1x32xf32>
      tpu.vector_store %arg9[%c0_71, %129, %c0_72], %132 {strides = array<i32>} : memref<2x32x32xf32, #tpu.memory_space<vmem>>, vector<2x1x32xf32>,
      scf.yield %86, %128 : vector<2x32xf32>, vector<2x32xf32>
    }
    %c32_i32_49 = arith.constant 32 : i32
    %c0_50 = arith.constant 0 : index
    %c0_51 = arith.constant 0 : index
    %49 = vector.load %arg12[%c0_50, %c0_51] : memref<2x32xf32, #tpu.memory_space<vmem>>, vector<2x32xf32>
    tpu.vector_store %arg12[%c0_50, %c0_51], %48#0 {strides = array<i32>} : memref<2x32xf32, #tpu.memory_space<vmem>>, vector<2x32xf32>,
    %c0_52 = arith.constant 0 : index
    %c0_53 = arith.constant 0 : index
    %50 = vector.load %arg13[%c0_52, %c0_53] : memref<2x32xf32, #tpu.memory_space<vmem>>, vector<2x32xf32>
    tpu.vector_store %arg13[%c0_52, %c0_53], %48#1 {strides = array<i32>} : memref<2x32xf32, #tpu.memory_space<vmem>>, vector<2x32xf32>,
    return
  }
  func.func @transform_0(%arg0: i32) -> (i32, i32, i32) {
    %c0_i32 = arith.constant 0 : i32
    %c0_i32_0 = arith.constant 0 : i32
    %c0_i32_1 = arith.constant 0 : i32
    return %c0_i32, %arg0, %c0_i32_0 : i32, i32, i32
  }
  func.func @transform_1(%arg0: i32) -> (i32, i32, i32) {
    %c2_i32 = arith.constant 2 : i32
    %0 = arith.subi %c2_i32, %arg0 : i32
    %c0_i32 = arith.constant 0 : i32
    %c0_i32_0 = arith.constant 0 : i32
    %c0_i32_1 = arith.constant 0 : i32
    return %c0_i32, %0, %c0_i32_0 : i32, i32, i32
  }
  func.func @transform_2(%arg0: i32) -> (i32, i32) {
    %c0_i32 = arith.constant 0 : i32
    %c0_i32_0 = arith.constant 0 : i32
    %c0_i32_1 = arith.constant 0 : i32
    return %c0_i32, %c0_i32_0 : i32, i32
  }
  func.func @transform_3(%arg0: i32) -> (i32, i32) {
    %c0_i32 = arith.constant 0 : i32
    %c0_i32_0 = arith.constant 0 : i32
    %c0_i32_1 = arith.constant 0 : i32
    return %c0_i32, %c0_i32_0 : i32, i32
  }
  func.func @transform_4(%arg0: i32) -> (i32, i32) {
    %c0_i32 = arith.constant 0 : i32
    %c0_i32_0 = arith.constant 0 : i32
    %c0_i32_1 = arith.constant 0 : i32
    return %c0_i32, %c0_i32_0 : i32, i32
  }
  func.func @transform_5(%arg0: i32) -> (i32, i32) {
    %c0_i32 = arith.constant 0 : i32
    %c0_i32_0 = arith.constant 0 : i32
    %c0_i32_1 = arith.constant 0 : i32
    return %c0_i32, %c0_i32_0 : i32, i32
  }
  func.func @transform_6(%arg0: i32) -> (i32, i32) {
    %c0_i32 = arith.constant 0 : i32
    %c0_i32_0 = arith.constant 0 : i32
    %c0_i32_1 = arith.constant 0 : i32
    return %c0_i32, %c0_i32_0 : i32, i32
  }
  func.func @transform_7(%arg0: i32) -> (i32, i32, i32) {
    %c0_i32 = arith.constant 0 : i32
    %c0_i32_0 = arith.constant 0 : i32
    %c0_i32_1 = arith.constant 0 : i32
    return %c0_i32, %arg0, %c0_i32_0 : i32, i32, i32
  }
  func.func @transform_8(%arg0: i32) -> (i32, i32, i32) {
    %c2_i32 = arith.constant 2 : i32
    %0 = arith.subi %c2_i32, %arg0 : i32
    %c0_i32 = arith.constant 0 : i32
    %c0_i32_0 = arith.constant 0 : i32
    %c0_i32_1 = arith.constant 0 : i32
    return %c0_i32, %0, %c0_i32_0 : i32, i32, i32
  }
}

module attributes {stable_mosaic.version = 11 : i64} {
  func.func @_bidir_gru_layer_kernel(%arg0: i32, %arg1: memref<2x32x32xf32, #tpu.memory_space<vmem>>, %arg2: memref<2x32x32xf32, #tpu.memory_space<vmem>>, %arg3: memref<2x32x32xf32, #tpu.memory_space<vmem>>, %arg4: memref<2x32x32xf32, #tpu.memory_space<vmem>>, %arg5: memref<32x96xf32, #tpu.memory_space<vmem>>, %arg6: memref<32x96xf32, #tpu.memory_space<vmem>>, %arg7: memref<32x96xf32, #tpu.memory_space<vmem>>, %arg8: memref<32x96xf32, #tpu.memory_space<vmem>>, %arg9: memref<32x96xf32, #tpu.memory_space<vmem>>, %arg10: memref<32x96xf32, #tpu.memory_space<vmem>>, %arg11: memref<4x96xf32, #tpu.memory_space<vmem>>, %arg12: memref<2x32x32xf32, #tpu.memory_space<vmem>>, %arg13: memref<2x32x32xf32, #tpu.memory_space<vmem>>, %arg14: memref<2x32x96xf32, #tpu.memory_space<vmem>>, %arg15: memref<2x32x96xf32, #tpu.memory_space<vmem>>, %arg16: memref<2x32xf32, #tpu.memory_space<vmem>>, %arg17: memref<2x32xf32, #tpu.memory_space<vmem>>) attributes {dimension_semantics = [#tpu.dimension_semantics<arbitrary>], iteration_bounds = array<i64: 3>, scalar_prefetch = 0 : i64, scratch_operands = 4 : i64, tpu.core_type = #tpu.core_type<tc>, window_params = [{transform_indices = @transform_0, window_bounds = array<i64: 2, 32, 32>}, {transform_indices = @transform_1, window_bounds = array<i64: 2, 32, 32>}, {transform_indices = @transform_2, window_bounds = array<i64: 2, 32, 32>}, {transform_indices = @transform_3, window_bounds = array<i64: 2, 32, 32>}, {pipeline_mode = #tpu.pipeline_mode<synchronous>, transform_indices = @transform_4, window_bounds = array<i64: 32, 96>}, {pipeline_mode = #tpu.pipeline_mode<synchronous>, transform_indices = @transform_5, window_bounds = array<i64: 32, 96>}, {pipeline_mode = #tpu.pipeline_mode<synchronous>, transform_indices = @transform_6, window_bounds = array<i64: 32, 96>}, {pipeline_mode = #tpu.pipeline_mode<synchronous>, transform_indices = @transform_7, window_bounds = array<i64: 32, 96>}, {pipeline_mode = #tpu.pipeline_mode<synchronous>, transform_indices = @transform_8, window_bounds = array<i64: 32, 96>}, {pipeline_mode = #tpu.pipeline_mode<synchronous>, transform_indices = @transform_9, window_bounds = array<i64: 32, 96>}, {pipeline_mode = #tpu.pipeline_mode<synchronous>, transform_indices = @transform_10, window_bounds = array<i64: 4, 96>}, {transform_indices = @transform_11, window_bounds = array<i64: 2, 32, 32>}, {transform_indices = @transform_12, window_bounds = array<i64: 2, 32, 32>}]} {
    %c0_i32 = arith.constant 0 : i32
    %0 = arith.cmpi eq, %arg0, %c0_i32 : i32
    %1 = arith.extui %0 : i1 to i32
    %c0_i32_0 = arith.constant 0 : i32
    %2 = arith.cmpi ne, %1, %c0_i32_0 : i32
    scf.if %2 {
      %cst_78 = arith.constant 0.000000e+00 : f32
      %71 = vector.broadcast %cst_78 : f32 to vector<2x32xf32>
      %c0_79 = arith.constant 0 : index
      %c0_80 = arith.constant 0 : index
      %72 = vector.load %arg16[%c0_79, %c0_80] : memref<2x32xf32, #tpu.memory_space<vmem>>, vector<2x32xf32>
      tpu.vector_store %arg16[%c0_79, %c0_80], %71 {strides = array<i32>} : memref<2x32xf32, #tpu.memory_space<vmem>>, vector<2x32xf32>,
      %cst_81 = arith.constant 0.000000e+00 : f32
      %73 = vector.broadcast %cst_81 : f32 to vector<2x32xf32>
      %c0_82 = arith.constant 0 : index
      %c0_83 = arith.constant 0 : index
      %74 = vector.load %arg17[%c0_82, %c0_83] : memref<2x32xf32, #tpu.memory_space<vmem>>, vector<2x32xf32>
      tpu.vector_store %arg17[%c0_82, %c0_83], %73 {strides = array<i32>} : memref<2x32xf32, #tpu.memory_space<vmem>>, vector<2x32xf32>,
    } else {
    }
    %c0 = arith.constant 0 : index
    %c0_1 = arith.constant 0 : index
    %3 = vector.load %arg11[%c0, %c0_1] : memref<4x96xf32, #tpu.memory_space<vmem>>, vector<1x96xf32>
    %c1 = arith.constant 1 : index
    %c0_2 = arith.constant 0 : index
    %4 = vector.load %arg11[%c1, %c0_2] : memref<4x96xf32, #tpu.memory_space<vmem>>, vector<1x96xf32>
    %c2 = arith.constant 2 : index
    %c0_3 = arith.constant 0 : index
    %5 = vector.load %arg11[%c2, %c0_3] : memref<4x96xf32, #tpu.memory_space<vmem>>, vector<1x96xf32>
    %c3 = arith.constant 3 : index
    %c0_4 = arith.constant 0 : index
    %6 = vector.load %arg11[%c3, %c0_4] : memref<4x96xf32, #tpu.memory_space<vmem>>, vector<1x96xf32>
    %c0_5 = arith.constant 0 : index
    %c0_6 = arith.constant 0 : index
    %c0_7 = arith.constant 0 : index
    %7 = vector.load %arg1[%c0_5, %c0_6, %c0_7] : memref<2x32x32xf32, #tpu.memory_space<vmem>>, vector<1x32x32xf32>
    %8 = vector.shape_cast %7 : vector<1x32x32xf32> to vector<32x32xf32>
    %c0_8 = arith.constant 0 : index
    %c0_9 = arith.constant 0 : index
    %9 = vector.load %arg5[%c0_8, %c0_9] : memref<32x96xf32, #tpu.memory_space<vmem>>, vector<32x96xf32>
    %cst = arith.constant dense<0.000000e+00> : vector<32x96xf32>
    %10 = tpu.matmul %8, %9, %cst {dimension_numbers = #tpu.dot_dimension_numbers<[1], [0], [0], [1], [0, 0, 1, 1], [], []>} : vector<32x32xf32>, vector<32x96xf32>, vector<32x96xf32> -> vector<32x96xf32>
    %11 = vector.broadcast %3 : vector<1x96xf32> to vector<32x96xf32>
    %12 = arith.addf %11, %10 : vector<32x96xf32>
    %c0_10 = arith.constant 0 : index
    %c0_11 = arith.constant 0 : index
    %c0_12 = arith.constant 0 : index
    %13 = vector.load %arg3[%c0_10, %c0_11, %c0_12] : memref<2x32x32xf32, #tpu.memory_space<vmem>>, vector<1x32x32xf32>
    %14 = vector.shape_cast %13 : vector<1x32x32xf32> to vector<32x32xf32>
    %c0_13 = arith.constant 0 : index
    %c0_14 = arith.constant 0 : index
    %15 = vector.load %arg7[%c0_13, %c0_14] : memref<32x96xf32, #tpu.memory_space<vmem>>, vector<32x96xf32>
    %cst_15 = arith.constant dense<0.000000e+00> : vector<32x96xf32>
    %16 = tpu.matmul %14, %15, %cst_15 {dimension_numbers = #tpu.dot_dimension_numbers<[1], [0], [0], [1], [0, 0, 1, 1], [], []>} : vector<32x32xf32>, vector<32x96xf32>, vector<32x96xf32> -> vector<32x96xf32>
    %17 = vector.broadcast %5 : vector<1x96xf32> to vector<32x96xf32>
    %18 = arith.addf %17, %16 : vector<32x96xf32>
    %c0_16 = arith.constant 0 : index
    %c0_17 = arith.constant 0 : index
    %c0_18 = arith.constant 0 : index
    %19 = vector.load %arg2[%c0_16, %c0_17, %c0_18] : memref<2x32x32xf32, #tpu.memory_space<vmem>>, vector<1x32x32xf32>
    %20 = vector.shape_cast %19 : vector<1x32x32xf32> to vector<32x32xf32>
    %c0_19 = arith.constant 0 : index
    %c0_20 = arith.constant 0 : index
    %21 = vector.load %arg6[%c0_19, %c0_20] : memref<32x96xf32, #tpu.memory_space<vmem>>, vector<32x96xf32>
    %cst_21 = arith.constant dense<0.000000e+00> : vector<32x96xf32>
    %22 = tpu.matmul %20, %21, %cst_21 {dimension_numbers = #tpu.dot_dimension_numbers<[1], [0], [0], [1], [0, 0, 1, 1], [], []>} : vector<32x32xf32>, vector<32x96xf32>, vector<32x96xf32> -> vector<32x96xf32>
    %23 = arith.addf %12, %22 : vector<32x96xf32>
    %c0_22 = arith.constant 0 : index
    %c0_23 = arith.constant 0 : index
    %c0_24 = arith.constant 0 : index
    %24 = vector.load %arg4[%c0_22, %c0_23, %c0_24] : memref<2x32x32xf32, #tpu.memory_space<vmem>>, vector<1x32x32xf32>
    %25 = vector.shape_cast %24 : vector<1x32x32xf32> to vector<32x32xf32>
    %c0_25 = arith.constant 0 : index
    %c0_26 = arith.constant 0 : index
    %26 = vector.load %arg8[%c0_25, %c0_26] : memref<32x96xf32, #tpu.memory_space<vmem>>, vector<32x96xf32>
    %cst_27 = arith.constant dense<0.000000e+00> : vector<32x96xf32>
    %27 = tpu.matmul %25, %26, %cst_27 {dimension_numbers = #tpu.dot_dimension_numbers<[1], [0], [0], [1], [0, 0, 1, 1], [], []>} : vector<32x32xf32>, vector<32x96xf32>, vector<32x96xf32> -> vector<32x96xf32>
    %28 = arith.addf %18, %27 : vector<32x96xf32>
    %c0_28 = arith.constant 0 : index
    %c0_29 = arith.constant 0 : index
    %c0_30 = arith.constant 0 : index
    %29 = vector.load %arg14[%c0_28, %c0_29, %c0_30] : memref<2x32x96xf32, #tpu.memory_space<vmem>>, vector<1x32x96xf32>
    %30 = vector.shape_cast %29 : vector<1x32x96xf32> to vector<32x96xf32>
    %31 = vector.shape_cast %23 : vector<32x96xf32> to vector<1x32x96xf32>
    tpu.vector_store %arg14[%c0_28, %c0_29, %c0_30], %31 {strides = array<i32>} : memref<2x32x96xf32, #tpu.memory_space<vmem>>, vector<1x32x96xf32>,
    %c0_31 = arith.constant 0 : index
    %c0_32 = arith.constant 0 : index
    %c0_33 = arith.constant 0 : index
    %32 = vector.load %arg15[%c0_31, %c0_32, %c0_33] : memref<2x32x96xf32, #tpu.memory_space<vmem>>, vector<1x32x96xf32>
    %33 = vector.shape_cast %32 : vector<1x32x96xf32> to vector<32x96xf32>
    %34 = vector.shape_cast %28 : vector<32x96xf32> to vector<1x32x96xf32>
    tpu.vector_store %arg15[%c0_31, %c0_32, %c0_33], %34 {strides = array<i32>} : memref<2x32x96xf32, #tpu.memory_space<vmem>>, vector<1x32x96xf32>,
    %c1_34 = arith.constant 1 : index
    %c0_35 = arith.constant 0 : index
    %c0_36 = arith.constant 0 : index
    %35 = vector.load %arg1[%c1_34, %c0_35, %c0_36] : memref<2x32x32xf32, #tpu.memory_space<vmem>>, vector<1x32x32xf32>
    %36 = vector.shape_cast %35 : vector<1x32x32xf32> to vector<32x32xf32>
    %c0_37 = arith.constant 0 : index
    %c0_38 = arith.constant 0 : index
    %37 = vector.load %arg5[%c0_37, %c0_38] : memref<32x96xf32, #tpu.memory_space<vmem>>, vector<32x96xf32>
    %cst_39 = arith.constant dense<0.000000e+00> : vector<32x96xf32>
    %38 = tpu.matmul %36, %37, %cst_39 {dimension_numbers = #tpu.dot_dimension_numbers<[1], [0], [0], [1], [0, 0, 1, 1], [], []>} : vector<32x32xf32>, vector<32x96xf32>, vector<32x96xf32> -> vector<32x96xf32>
    %39 = vector.broadcast %3 : vector<1x96xf32> to vector<32x96xf32>
    %40 = arith.addf %39, %38 : vector<32x96xf32>
    %c1_40 = arith.constant 1 : index
    %c0_41 = arith.constant 0 : index
    %c0_42 = arith.constant 0 : index
    %41 = vector.load %arg3[%c1_40, %c0_41, %c0_42] : memref<2x32x32xf32, #tpu.memory_space<vmem>>, vector<1x32x32xf32>
    %42 = vector.shape_cast %41 : vector<1x32x32xf32> to vector<32x32xf32>
    %c0_43 = arith.constant 0 : index
    %c0_44 = arith.constant 0 : index
    %43 = vector.load %arg7[%c0_43, %c0_44] : memref<32x96xf32, #tpu.memory_space<vmem>>, vector<32x96xf32>
    %cst_45 = arith.constant dense<0.000000e+00> : vector<32x96xf32>
    %44 = tpu.matmul %42, %43, %cst_45 {dimension_numbers = #tpu.dot_dimension_numbers<[1], [0], [0], [1], [0, 0, 1, 1], [], []>} : vector<32x32xf32>, vector<32x96xf32>, vector<32x96xf32> -> vector<32x96xf32>
    %45 = vector.broadcast %5 : vector<1x96xf32> to vector<32x96xf32>
    %46 = arith.addf %45, %44 : vector<32x96xf32>
    %c1_46 = arith.constant 1 : index
    %c0_47 = arith.constant 0 : index
    %c0_48 = arith.constant 0 : index
    %47 = vector.load %arg2[%c1_46, %c0_47, %c0_48] : memref<2x32x32xf32, #tpu.memory_space<vmem>>, vector<1x32x32xf32>
    %48 = vector.shape_cast %47 : vector<1x32x32xf32> to vector<32x32xf32>
    %c0_49 = arith.constant 0 : index
    %c0_50 = arith.constant 0 : index
    %49 = vector.load %arg6[%c0_49, %c0_50] : memref<32x96xf32, #tpu.memory_space<vmem>>, vector<32x96xf32>
    %cst_51 = arith.constant dense<0.000000e+00> : vector<32x96xf32>
    %50 = tpu.matmul %48, %49, %cst_51 {dimension_numbers = #tpu.dot_dimension_numbers<[1], [0], [0], [1], [0, 0, 1, 1], [], []>} : vector<32x32xf32>, vector<32x96xf32>, vector<32x96xf32> -> vector<32x96xf32>
    %51 = arith.addf %40, %50 : vector<32x96xf32>
    %c1_52 = arith.constant 1 : index
    %c0_53 = arith.constant 0 : index
    %c0_54 = arith.constant 0 : index
    %52 = vector.load %arg4[%c1_52, %c0_53, %c0_54] : memref<2x32x32xf32, #tpu.memory_space<vmem>>, vector<1x32x32xf32>
    %53 = vector.shape_cast %52 : vector<1x32x32xf32> to vector<32x32xf32>
    %c0_55 = arith.constant 0 : index
    %c0_56 = arith.constant 0 : index
    %54 = vector.load %arg8[%c0_55, %c0_56] : memref<32x96xf32, #tpu.memory_space<vmem>>, vector<32x96xf32>
    %cst_57 = arith.constant dense<0.000000e+00> : vector<32x96xf32>
    %55 = tpu.matmul %53, %54, %cst_57 {dimension_numbers = #tpu.dot_dimension_numbers<[1], [0], [0], [1], [0, 0, 1, 1], [], []>} : vector<32x32xf32>, vector<32x96xf32>, vector<32x96xf32> -> vector<32x96xf32>
    %56 = arith.addf %46, %55 : vector<32x96xf32>
    %c1_58 = arith.constant 1 : index
    %c0_59 = arith.constant 0 : index
    %c0_60 = arith.constant 0 : index
    %57 = vector.load %arg14[%c1_58, %c0_59, %c0_60] : memref<2x32x96xf32, #tpu.memory_space<vmem>>, vector<1x32x96xf32>
    %58 = vector.shape_cast %57 : vector<1x32x96xf32> to vector<32x96xf32>
    %59 = vector.shape_cast %51 : vector<32x96xf32> to vector<1x32x96xf32>
    tpu.vector_store %arg14[%c1_58, %c0_59, %c0_60], %59 {strides = array<i32>} : memref<2x32x96xf32, #tpu.memory_space<vmem>>, vector<1x32x96xf32>,
    %c1_61 = arith.constant 1 : index
    %c0_62 = arith.constant 0 : index
    %c0_63 = arith.constant 0 : index
    %60 = vector.load %arg15[%c1_61, %c0_62, %c0_63] : memref<2x32x96xf32, #tpu.memory_space<vmem>>, vector<1x32x96xf32>
    %61 = vector.shape_cast %60 : vector<1x32x96xf32> to vector<32x96xf32>
    %62 = vector.shape_cast %56 : vector<32x96xf32> to vector<1x32x96xf32>
    tpu.vector_store %arg15[%c1_61, %c0_62, %c0_63], %62 {strides = array<i32>} : memref<2x32x96xf32, #tpu.memory_space<vmem>>, vector<1x32x96xf32>,
    %c0_64 = arith.constant 0 : index
    %c0_65 = arith.constant 0 : index
    %63 = vector.load %arg9[%c0_64, %c0_65] : memref<32x96xf32, #tpu.memory_space<vmem>>, vector<32x96xf32>
    %c0_66 = arith.constant 0 : index
    %c0_67 = arith.constant 0 : index
    %64 = vector.load %arg10[%c0_66, %c0_67] : memref<32x96xf32, #tpu.memory_space<vmem>>, vector<32x96xf32>
    %c0_68 = arith.constant 0 : index
    %c0_69 = arith.constant 0 : index
    %65 = vector.load %arg16[%c0_68, %c0_69] : memref<2x32xf32, #tpu.memory_space<vmem>>, vector<2x32xf32>
    %c0_70 = arith.constant 0 : index
    %c0_71 = arith.constant 0 : index
    %66 = vector.load %arg17[%c0_70, %c0_71] : memref<2x32xf32, #tpu.memory_space<vmem>>, vector<2x32xf32>
    %c0_i32_72 = arith.constant 0 : i32
    %c32_i32 = arith.constant 32 : i32
    %67 = arith.addi %c0_i32_72, %c32_i32 : i32
    %c1_i32 = arith.constant 1 : i32
    %68:2 = scf.for %arg18 = %c0_i32_72 to %67 step %c1_i32 iter_args(%arg19 = %65, %arg20 = %66) -> (vector<2x32xf32>, vector<2x32xf32>)  : i32 {
      %c0_78 = arith.constant 0 : index
      %71 = arith.index_cast %arg18 : i32 to index
      %c0_79 = arith.constant 0 : index
      %72 = vector.load %arg14[%c0_78, %71, %c0_79] : memref<2x32x96xf32, #tpu.memory_space<vmem>>, vector<2x1x96xf32>
      %73 = vector.shape_cast %72 : vector<2x1x96xf32> to vector<2x96xf32>
      %cst_80 = arith.constant dense<0.000000e+00> : vector<2x96xf32>
      %74 = tpu.matmul %arg19, %63, %cst_80 {dimension_numbers = #tpu.dot_dimension_numbers<[1], [0], [0], [1], [0, 0, 1, 1], [], []>} : vector<2x32xf32>, vector<32x96xf32>, vector<2x96xf32> -> vector<2x96xf32>
      %75 = vector.broadcast %4 : vector<1x96xf32> to vector<2x96xf32>
      %76 = arith.addf %74, %75 : vector<2x96xf32>
      %77 = vector.extract_strided_slice %73 {offsets = [0, 0], sizes = [2, 32], strides = [1, 1]} : vector<2x96xf32> to vector<2x32xf32>
      %78 = vector.extract_strided_slice %76 {offsets = [0, 0], sizes = [2, 32], strides = [1, 1]} : vector<2x96xf32> to vector<2x32xf32>
      %79 = arith.addf %77, %78 : vector<2x32xf32>
      %80 = arith.negf %79 : vector<2x32xf32>
      %81 = math.exp %80 : vector<2x32xf32>
      %cst_81 = arith.constant 1.000000e+00 : f32
      %82 = vector.broadcast %cst_81 : f32 to vector<2x32xf32>
      %83 = arith.addf %82, %81 : vector<2x32xf32>
      %84 = arith.divf %82, %83 : vector<2x32xf32>
      %85 = vector.extract_strided_slice %73 {offsets = [0, 32], sizes = [2, 32], strides = [1, 1]} : vector<2x96xf32> to vector<2x32xf32>
      %86 = vector.extract_strided_slice %76 {offsets = [0, 32], sizes = [2, 32], strides = [1, 1]} : vector<2x96xf32> to vector<2x32xf32>
      %87 = arith.addf %85, %86 : vector<2x32xf32>
      %88 = arith.negf %87 : vector<2x32xf32>
      %89 = math.exp %88 : vector<2x32xf32>
      %cst_82 = arith.constant 1.000000e+00 : f32
      %90 = vector.broadcast %cst_82 : f32 to vector<2x32xf32>
      %91 = arith.addf %90, %89 : vector<2x32xf32>
      %92 = arith.divf %90, %91 : vector<2x32xf32>
      %93 = vector.extract_strided_slice %73 {offsets = [0, 64], sizes = [2, 32], strides = [1, 1]} : vector<2x96xf32> to vector<2x32xf32>
      %94 = vector.extract_strided_slice %76 {offsets = [0, 64], sizes = [2, 32], strides = [1, 1]} : vector<2x96xf32> to vector<2x32xf32>
      %95 = arith.mulf %84, %94 : vector<2x32xf32>
      %96 = arith.addf %93, %95 : vector<2x32xf32>
      %97 = math.tanh %96 : vector<2x32xf32>
      %cst_83 = arith.constant 1.000000e+00 : f32
      %98 = vector.broadcast %cst_83 : f32 to vector<2x32xf32>
      %99 = arith.subf %98, %92 : vector<2x32xf32>
      %100 = arith.mulf %99, %97 : vector<2x32xf32>
      %101 = arith.mulf %92, %arg19 : vector<2x32xf32>
      %102 = arith.addf %100, %101 : vector<2x32xf32>
      %c32_i32_84 = arith.constant 32 : i32
      %103 = arith.muli %arg0, %c32_i32_84 : i32
      %104 = arith.addi %103, %arg18 : i32
      %c72_i32 = arith.constant 72 : i32
      %105 = arith.cmpi slt, %104, %c72_i32 : i32
      %106 = arith.select %105, %102, %arg19 : vector<2x32xf32>
      %c0_85 = arith.constant 0 : index
      %107 = arith.index_cast %arg18 : i32 to index
      %c0_86 = arith.constant 0 : index
      %108 = vector.load %arg12[%c0_85, %107, %c0_86] : memref<2x32x32xf32, #tpu.memory_space<vmem>>, vector<2x1x32xf32>
      %109 = vector.shape_cast %108 : vector<2x1x32xf32> to vector<2x32xf32>
      %110 = vector.shape_cast %106 : vector<2x32xf32> to vector<2x1x32xf32>
      tpu.vector_store %arg12[%c0_85, %107, %c0_86], %110 {strides = array<i32>} : memref<2x32x32xf32, #tpu.memory_space<vmem>>, vector<2x1x32xf32>,
      %c31_i32 = arith.constant 31 : i32
      %111 = arith.subi %c31_i32, %arg18 : i32
      %c0_87 = arith.constant 0 : index
      %112 = arith.index_cast %111 : i32 to index
      %c0_88 = arith.constant 0 : index
      %113 = vector.load %arg15[%c0_87, %112, %c0_88] : memref<2x32x96xf32, #tpu.memory_space<vmem>>, vector<2x1x96xf32>
      %114 = vector.shape_cast %113 : vector<2x1x96xf32> to vector<2x96xf32>
      %cst_89 = arith.constant dense<0.000000e+00> : vector<2x96xf32>
      %115 = tpu.matmul %arg20, %64, %cst_89 {dimension_numbers = #tpu.dot_dimension_numbers<[1], [0], [0], [1], [0, 0, 1, 1], [], []>} : vector<2x32xf32>, vector<32x96xf32>, vector<2x96xf32> -> vector<2x96xf32>
      %116 = vector.broadcast %6 : vector<1x96xf32> to vector<2x96xf32>
      %117 = arith.addf %115, %116 : vector<2x96xf32>
      %118 = vector.extract_strided_slice %114 {offsets = [0, 0], sizes = [2, 32], strides = [1, 1]} : vector<2x96xf32> to vector<2x32xf32>
      %119 = vector.extract_strided_slice %117 {offsets = [0, 0], sizes = [2, 32], strides = [1, 1]} : vector<2x96xf32> to vector<2x32xf32>
      %120 = arith.addf %118, %119 : vector<2x32xf32>
      %121 = arith.negf %120 : vector<2x32xf32>
      %122 = math.exp %121 : vector<2x32xf32>
      %cst_90 = arith.constant 1.000000e+00 : f32
      %123 = vector.broadcast %cst_90 : f32 to vector<2x32xf32>
      %124 = arith.addf %123, %122 : vector<2x32xf32>
      %125 = arith.divf %123, %124 : vector<2x32xf32>
      %126 = vector.extract_strided_slice %114 {offsets = [0, 32], sizes = [2, 32], strides = [1, 1]} : vector<2x96xf32> to vector<2x32xf32>
      %127 = vector.extract_strided_slice %117 {offsets = [0, 32], sizes = [2, 32], strides = [1, 1]} : vector<2x96xf32> to vector<2x32xf32>
      %128 = arith.addf %126, %127 : vector<2x32xf32>
      %129 = arith.negf %128 : vector<2x32xf32>
      %130 = math.exp %129 : vector<2x32xf32>
      %cst_91 = arith.constant 1.000000e+00 : f32
      %131 = vector.broadcast %cst_91 : f32 to vector<2x32xf32>
      %132 = arith.addf %131, %130 : vector<2x32xf32>
      %133 = arith.divf %131, %132 : vector<2x32xf32>
      %134 = vector.extract_strided_slice %114 {offsets = [0, 64], sizes = [2, 32], strides = [1, 1]} : vector<2x96xf32> to vector<2x32xf32>
      %135 = vector.extract_strided_slice %117 {offsets = [0, 64], sizes = [2, 32], strides = [1, 1]} : vector<2x96xf32> to vector<2x32xf32>
      %136 = arith.mulf %125, %135 : vector<2x32xf32>
      %137 = arith.addf %134, %136 : vector<2x32xf32>
      %138 = math.tanh %137 : vector<2x32xf32>
      %cst_92 = arith.constant 1.000000e+00 : f32
      %139 = vector.broadcast %cst_92 : f32 to vector<2x32xf32>
      %140 = arith.subf %139, %133 : vector<2x32xf32>
      %141 = arith.mulf %140, %138 : vector<2x32xf32>
      %142 = arith.mulf %133, %arg20 : vector<2x32xf32>
      %143 = arith.addf %141, %142 : vector<2x32xf32>
      %c2_i32 = arith.constant 2 : i32
      %144 = arith.subi %c2_i32, %arg0 : i32
      %c32_i32_93 = arith.constant 32 : i32
      %145 = arith.muli %144, %c32_i32_93 : i32
      %146 = arith.addi %145, %111 : i32
      %c72_i32_94 = arith.constant 72 : i32
      %147 = arith.cmpi slt, %146, %c72_i32_94 : i32
      %148 = arith.select %147, %143, %arg20 : vector<2x32xf32>
      %c0_95 = arith.constant 0 : index
      %149 = arith.index_cast %111 : i32 to index
      %c0_96 = arith.constant 0 : index
      %150 = vector.load %arg13[%c0_95, %149, %c0_96] : memref<2x32x32xf32, #tpu.memory_space<vmem>>, vector<2x1x32xf32>
      %151 = vector.shape_cast %150 : vector<2x1x32xf32> to vector<2x32xf32>
      %152 = vector.shape_cast %148 : vector<2x32xf32> to vector<2x1x32xf32>
      tpu.vector_store %arg13[%c0_95, %149, %c0_96], %152 {strides = array<i32>} : memref<2x32x32xf32, #tpu.memory_space<vmem>>, vector<2x1x32xf32>,
      scf.yield %106, %148 : vector<2x32xf32>, vector<2x32xf32>
    }
    %c32_i32_73 = arith.constant 32 : i32
    %c0_74 = arith.constant 0 : index
    %c0_75 = arith.constant 0 : index
    %69 = vector.load %arg16[%c0_74, %c0_75] : memref<2x32xf32, #tpu.memory_space<vmem>>, vector<2x32xf32>
    tpu.vector_store %arg16[%c0_74, %c0_75], %68#0 {strides = array<i32>} : memref<2x32xf32, #tpu.memory_space<vmem>>, vector<2x32xf32>,
    %c0_76 = arith.constant 0 : index
    %c0_77 = arith.constant 0 : index
    %70 = vector.load %arg17[%c0_76, %c0_77] : memref<2x32xf32, #tpu.memory_space<vmem>>, vector<2x32xf32>
    tpu.vector_store %arg17[%c0_76, %c0_77], %68#1 {strides = array<i32>} : memref<2x32xf32, #tpu.memory_space<vmem>>, vector<2x32xf32>,
    return
  }
  func.func @transform_0(%arg0: i32) -> (i32, i32, i32) {
    %c0_i32 = arith.constant 0 : i32
    %c0_i32_0 = arith.constant 0 : i32
    %c0_i32_1 = arith.constant 0 : i32
    return %c0_i32, %arg0, %c0_i32_0 : i32, i32, i32
  }
  func.func @transform_1(%arg0: i32) -> (i32, i32, i32) {
    %c0_i32 = arith.constant 0 : i32
    %c0_i32_0 = arith.constant 0 : i32
    %c0_i32_1 = arith.constant 0 : i32
    return %c0_i32, %arg0, %c0_i32_0 : i32, i32, i32
  }
  func.func @transform_2(%arg0: i32) -> (i32, i32, i32) {
    %c2_i32 = arith.constant 2 : i32
    %0 = arith.subi %c2_i32, %arg0 : i32
    %c0_i32 = arith.constant 0 : i32
    %c0_i32_0 = arith.constant 0 : i32
    %c0_i32_1 = arith.constant 0 : i32
    return %c0_i32, %0, %c0_i32_0 : i32, i32, i32
  }
  func.func @transform_3(%arg0: i32) -> (i32, i32, i32) {
    %c2_i32 = arith.constant 2 : i32
    %0 = arith.subi %c2_i32, %arg0 : i32
    %c0_i32 = arith.constant 0 : i32
    %c0_i32_0 = arith.constant 0 : i32
    %c0_i32_1 = arith.constant 0 : i32
    return %c0_i32, %0, %c0_i32_0 : i32, i32, i32
  }
  func.func @transform_4(%arg0: i32) -> (i32, i32) {
    %c0_i32 = arith.constant 0 : i32
    %c0_i32_0 = arith.constant 0 : i32
    %c0_i32_1 = arith.constant 0 : i32
    return %c0_i32, %c0_i32_0 : i32, i32
  }
  func.func @transform_5(%arg0: i32) -> (i32, i32) {
    %c0_i32 = arith.constant 0 : i32
    %c0_i32_0 = arith.constant 0 : i32
    %c0_i32_1 = arith.constant 0 : i32
    return %c0_i32, %c0_i32_0 : i32, i32
  }
  func.func @transform_6(%arg0: i32) -> (i32, i32) {
    %c0_i32 = arith.constant 0 : i32
    %c0_i32_0 = arith.constant 0 : i32
    %c0_i32_1 = arith.constant 0 : i32
    return %c0_i32, %c0_i32_0 : i32, i32
  }
  func.func @transform_7(%arg0: i32) -> (i32, i32) {
    %c0_i32 = arith.constant 0 : i32
    %c0_i32_0 = arith.constant 0 : i32
    %c0_i32_1 = arith.constant 0 : i32
    return %c0_i32, %c0_i32_0 : i32, i32
  }
  func.func @transform_8(%arg0: i32) -> (i32, i32) {
    %c0_i32 = arith.constant 0 : i32
    %c0_i32_0 = arith.constant 0 : i32
    %c0_i32_1 = arith.constant 0 : i32
    return %c0_i32, %c0_i32_0 : i32, i32
  }
  func.func @transform_9(%arg0: i32) -> (i32, i32) {
    %c0_i32 = arith.constant 0 : i32
    %c0_i32_0 = arith.constant 0 : i32
    %c0_i32_1 = arith.constant 0 : i32
    return %c0_i32, %c0_i32_0 : i32, i32
  }
  func.func @transform_10(%arg0: i32) -> (i32, i32) {
    %c0_i32 = arith.constant 0 : i32
    %c0_i32_0 = arith.constant 0 : i32
    %c0_i32_1 = arith.constant 0 : i32
    return %c0_i32, %c0_i32_0 : i32, i32
  }
  func.func @transform_11(%arg0: i32) -> (i32, i32, i32) {
    %c0_i32 = arith.constant 0 : i32
    %c0_i32_0 = arith.constant 0 : i32
    %c0_i32_1 = arith.constant 0 : i32
    return %c0_i32, %arg0, %c0_i32_0 : i32, i32, i32
  }
  func.func @transform_12(%arg0: i32) -> (i32, i32, i32) {
    %c2_i32 = arith.constant 2 : i32
    %0 = arith.subi %c2_i32, %arg0 : i32
    %c0_i32 = arith.constant 0 : i32
    %c0_i32_0 = arith.constant 0 : i32
    %c0_i32_1 = arith.constant 0 : i32
    return %c0_i32, %0, %c0_i32_0 : i32, i32, i32
  }
}

</mosaic_0001>

<llo_original>
// kernel: _lambda_.2
$region0: #{_lambda_.2}
  #allocation0 [shape = 'u32[]', space=smem, size = 0x4, offset = 0x4, fixed_abs, tag = 'smem constant byte address 0x4 - core index']
  #allocation1 [shape = 'u32[144,128]{1,0:T(1,128)}', space=vmem, size = 0x12000, scoped, tag = 'internal scratch']
  #allocation2 [shape = 'f32[2,32,96]{2,1,0:T(8,128)}', space=vmem, size = 0x8000, scoped, tag = 'scratch operand']
  #allocation3 [shape = 'f32[2,32,96]{2,1,0:T(8,128)}', space=vmem, size = 0x8000, scoped, tag = 'scratch operand']
  #allocation4 [shape = 'f32[2,32]{1,0:T(2,128)}', space=vmem, size = 0x400, scoped, tag = 'scratch operand']
  #allocation5 [shape = 'f32[2,32]{1,0:T(2,128)}', space=vmem, size = 0x400, scoped, tag = 'scratch operand']
  %s0 = inlined_call_operand.vmem [shape: f32[2,96,64], index: 0, kind: input, shape index: {}, may-alias: {0,1}]
  %s1 = inlined_call_operand.vmem [shape: f32[2,96,64], index: 1, kind: input, shape index: {}, may-alias: {0,1}]
  %s2 = inlined_call_operand.vmem [shape: f32[64,96], index: 2, kind: input, shape index: {}]
  %s3 = inlined_call_operand.vmem [shape: f32[64,96], index: 3, kind: input, shape index: {}]
  %s4 = inlined_call_operand.vmem [shape: f32[32,96], index: 4, kind: input, shape index: {}]
  %s5 = inlined_call_operand.vmem [shape: f32[32,96], index: 5, kind: input, shape index: {}]
  %s6 = inlined_call_operand.vmem [shape: f32[4,96], index: 6, kind: input, shape index: {}]
  %s7 = inlined_call_operand.vmem [shape: f32[2,96,32], index: 7, kind: output, shape index: {0}]
  %s8 = inlined_call_operand.vmem [shape: f32[2,96,32], index: 8, kind: output, shape index: {1}]
  %9 = xla_tuple %s7, %s8
  %s10 = sld [smem:[#allocation0]]
  $region224: #{_lambda_.2} parent=0
    _
  %s12 = ssub.s32 1, %s10
  %s13 = scalar_select 0, %s12, %s10
  $region1: #{_lambda_.2} parent=0
    #allocation6 [shape = 'u8[65536]{0}', space=vmem, size = 0x10000, scoped, tag = 'input window, operand 0']
    #allocation7 [shape = 'u8[65536]{0}', space=vmem, size = 0x10000, scoped, tag = 'input window, operand 1']
    #allocation8 [shape = 'u8[65536]{0}', space=vmem, size = 0x10000, scoped, tag = 'output window, operand 0']
    #allocation9 [shape = 'u8[65536]{0}', space=vmem, size = 0x10000, scoped, tag = 'output window, operand 1']
    loop: start=0, step=1, limit=5
    $region2: #{_lambda_.2} parent=1 // loop_pre_header
      _
    $region3: #{_lambda_.2} parent=1 // loop_header
      %s15 = sphi 0, %s19
      %p16 = scmp.ge.s32.totalorder %s15, 5
      %s25 = sphi 0, %s27
      %s28 = sphi 0, %s25
      %s29 = sphi 0, %s28
      %s45 = sphi 0, %s29
      %s53 = sphi 0, %s55
      %s56 = sphi 0, %s53
      %s57 = sphi 0, %s56
      %s73 = sphi 0, %s57
      %s77 = sphi 0, %s77
      %s79 = sphi 0, %s77
      %s80 = sphi 0, %s79
      %s94 = sphi 0, %s80
      %s98 = sphi 0, %s98
      %s100 = sphi 0, %s98
      %s101 = sphi 0, %s100
      %s115 = sphi 0, %s101
      %s119 = sphi 0, %s119
      %s121 = sphi 0, %s119
      %s122 = sphi 0, %s121
      %s136 = sphi 0, %s122
      %s140 = sphi 0, %s140
      %s142 = sphi 0, %s140
      %s143 = sphi 0, %s142
      %s157 = sphi 0, %s143
      %s161 = sphi 0, %s161
      %s163 = sphi 0, %s161
      %s164 = sphi 0, %s163
      %s178 = sphi 0, %s164
      %s184 = sphi 0, %s186
      %s187 = sphi 0, %s184
      %s188 = sphi 0, %s187
      %s204 = sphi 0, %s188
      %s212 = sphi 0, %s214
      %s215 = sphi 0, %s212
      %s216 = sphi 0, %s215
      %s232 = sphi 0, %s216
    $region4: #{_lambda_.2} parent=1 // loop_header_branch
      %18 = sbr.rel (%p16) target = $region8
    $region5: #{_lambda_.2} parent=1 // loop_body
      %s20 = ssub.s32 %s15, 1
      %s21 = ssub.s32 %s15, 2
      %s22 = sadd.s32 %s15, 1
      %s23 = ssub.s32 %s15, %s22
      %p24 = scmp.eq.s32.totalorder %s23, 0
      %s26 = sadd.s32 %s25, 1
      %s27 = scalar_select %p24, %s25, %s26
      %p30 = pneg %p24
      %p31 = scmp.eq.s32.totalorder %s15, 2
      %p32 = por %p30, %p31
      %p33 = scmp.ne.s32.totalorder %s25, %s28
      %p34 = scmp.eq.s32.totalorder %s15, 0
      %p35 = por %p33, %p34
      %p36 = scmp.ne.s32.totalorder %s25, %s28
      %p37 = scmp.eq.s32.totalorder %s20, 2
      %p38 = por %p36, %p37
      %p39 = scmp.ne.s32.totalorder %s28, %s29
      %p40 = scmp.eq.s32.totalorder %s20, 0
      %p41 = por %p39, %p40
      %p42 = scmp.ne.s32.totalorder %s28, %s29
      %p43 = scmp.eq.s32.totalorder %s21, 2
      %p44 = por %p42, %p43
      %p46 = scmp.ne.s32.totalorder %s29, %s45
      %p47 = scmp.eq.s32.totalorder %s21, 0
      %p48 = por %p46, %p47
      %s49 = ssub.s32 2, %s15
      %s50 = ssub.s32 2, %s22
      %s51 = ssub.s32 %s49, %s50
      %p52 = scmp.eq.s32.totalorder %s51, 0
      %s54 = sadd.s32 %s53, 1
      %s55 = scalar_select %p52, %s53, %s54
      %p58 = pneg %p52
      %p59 = scmp.eq.s32.totalorder %s15, 2
      %p60 = por %p58, %p59
      %p61 = scmp.ne.s32.totalorder %s53, %s56
      %p62 = scmp.eq.s32.totalorder %s15, 0
      %p63 = por %p61, %p62
      %p64 = scmp.ne.s32.totalorder %s53, %s56
      %p65 = scmp.eq.s32.totalorder %s20, 2
      %p66 = por %p64, %p65
      %p67 = scmp.ne.s32.totalorder %s56, %s57
      %p68 = scmp.eq.s32.totalorder %s20, 0
      %p69 = por %p67, %p68
      %p70 = scmp.ne.s32.totalorder %s56, %s57
      %p71 = scmp.eq.s32.totalorder %s21, 2
      %p72 = por %p70, %p71
      %p74 = scmp.ne.s32.totalorder %s57, %s73
      %p75 = scmp.eq.s32.totalorder %s21, 0
      %p76 = por %p74, %p75
      %s78 = sadd.s32 %s77, 1
      %p81 = scmp.eq.s32.totalorder %s15, 2
      %p82 = scmp.ne.s32.totalorder %s77, %s79
      %p83 = scmp.eq.s32.totalorder %s15, 0
      %p84 = por %p82, %p83
      %p85 = scmp.ne.s32.totalorder %s77, %s79
      %p86 = scmp.eq.s32.totalorder %s20, 2
      %p87 = por %p85, %p86
      %p88 = scmp.ne.s32.totalorder %s79, %s80
      %p89 = scmp.eq.s32.totalorder %s20, 0
      %p90 = por %p88, %p89
      %p91 = scmp.ne.s32.totalorder %s79, %s80
      %p92 = scmp.eq.s32.totalorder %s21, 2
      %p93 = por %p91, %p92
      %p95 = scmp.ne.s32.totalorder %s80, %s94
      %p96 = scmp.eq.s32.totalorder %s21, 0
      %p97 = por %p95, %p96
      %s99 = sadd.s32 %s98, 1
      %p102 = scmp.eq.s32.totalorder %s15, 2
      %p103 = scmp.ne.s32.totalorder %s98, %s100
      %p104 = scmp.eq.s32.totalorder %s15, 0
      %p105 = por %p103, %p104
      %p106 = scmp.ne.s32.totalorder %s98, %s100
      %p107 = scmp.eq.s32.totalorder %s20, 2
      %p108 = por %p106, %p107
      %p109 = scmp.ne.s32.totalorder %s100, %s101
      %p110 = scmp.eq.s32.totalorder %s20, 0
      %p111 = por %p109, %p110
      %p112 = scmp.ne.s32.totalorder %s100, %s101
      %p113 = scmp.eq.s32.totalorder %s21, 2
      %p114 = por %p112, %p113
      %p116 = scmp.ne.s32.totalorder %s101, %s115
      %p117 = scmp.eq.s32.totalorder %s21, 0
      %p118 = por %p116, %p117
      %s120 = sadd.s32 %s119, 1
      %p123 = scmp.eq.s32.totalorder %s15, 2
      %p124 = scmp.ne.s32.totalorder %s119, %s121
      %p125 = scmp.eq.s32.totalorder %s15, 0
      %p126 = por %p124, %p125
      %p127 = scmp.ne.s32.totalorder %s119, %s121
      %p128 = scmp.eq.s32.totalorder %s20, 2
      %p129 = por %p127, %p128
      %p130 = scmp.ne.s32.totalorder %s121, %s122
      %p131 = scmp.eq.s32.totalorder %s20, 0
      %p132 = por %p130, %p131
      %p133 = scmp.ne.s32.totalorder %s121, %s122
      %p134 = scmp.eq.s32.totalorder %s21, 2
      %p135 = por %p133, %p134
      %p137 = scmp.ne.s32.totalorder %s122, %s136
      %p138 = scmp.eq.s32.totalorder %s21, 0
      %p139 = por %p137, %p138
      %s141 = sadd.s32 %s140, 1
      %p144 = scmp.eq.s32.totalorder %s15, 2
      %p145 = scmp.ne.s32.totalorder %s140, %s142
      %p146 = scmp.eq.s32.totalorder %s15, 0
      %p147 = por %p145, %p146
      %p148 = scmp.ne.s32.totalorder %s140, %s142
      %p149 = scmp.eq.s32.totalorder %s20, 2
      %p150 = por %p148, %p149
      %p151 = scmp.ne.s32.totalorder %s142, %s143
      %p152 = scmp.eq.s32.totalorder %s20, 0
      %p153 = por %p151, %p152
      %p154 = scmp.ne.s32.totalorder %s142, %s143
      %p155 = scmp.eq.s32.totalorder %s21, 2
      %p156 = por %p154, %p155
      %p158 = scmp.ne.s32.totalorder %s143, %s157
      %p159 = scmp.eq.s32.totalorder %s21, 0
      %p160 = por %p158, %p159
      %s162 = sadd.s32 %s161, 1
      %p165 = scmp.eq.s32.totalorder %s15, 2
      %p166 = scmp.ne.s32.totalorder %s161, %s163
      %p167 = scmp.eq.s32.totalorder %s15, 0
      %p168 = por %p166, %p167
      %p169 = scmp.ne.s32.totalorder %s161, %s163
      %p170 = scmp.eq.s32.totalorder %s20, 2
      %p171 = por %p169, %p170
      %p172 = scmp.ne.s32.totalorder %s163, %s164
      %p173 = scmp.eq.s32.totalorder %s20, 0
      %p174 = por %p172, %p173
      %p175 = scmp.ne.s32.totalorder %s163, %s164
      %p176 = scmp.eq.s32.totalorder %s21, 2
      %p177 = por %p175, %p176
      %p179 = scmp.ne.s32.totalorder %s164, %s178
      %p180 = scmp.eq.s32.totalorder %s21, 0
      %p181 = por %p179, %p180
      %s182 = ssub.s32 %s15, %s22
      %p183 = scmp.eq.s32.totalorder %s182, 0
      %s185 = sadd.s32 %s184, 1
      %s186 = scalar_select %p183, %s184, %s185
      %p189 = pneg %p183
      %p190 = scmp.eq.s32.totalorder %s15, 2
      %p191 = por %p189, %p190
      %p192 = scmp.ne.s32.totalorder %s184, %s187
      %p193 = scmp.eq.s32.totalorder %s15, 0
      %p194 = por %p192, %p193
      %p195 = scmp.ne.s32.totalorder %s184, %s187
      %p196 = scmp.eq.s32.totalorder %s20, 2
      %p197 = por %p195, %p196
      %p198 = scmp.ne.s32.totalorder %s187, %s188
      %p199 = scmp.eq.s32.totalorder %s20, 0
      %p200 = por %p198, %p199
      %p201 = scmp.ne.s32.totalorder %s187, %s188
      %p202 = scmp.eq.s32.totalorder %s21, 2
      %p203 = por %p201, %p202
      %p205 = scmp.ne.s32.totalorder %s188, %s204
      %p206 = scmp.eq.s32.totalorder %s21, 0
      %p207 = por %p205, %p206
      %s208 = ssub.s32 2, %s15
      %s209 = ssub.s32 2, %s22
      %s210 = ssub.s32 %s208, %s209
      %p211 = scmp.eq.s32.totalorder %s210, 0
      %s213 = sadd.s32 %s212, 1
      %s214 = scalar_select %p211, %s212, %s213
      %p217 = pneg %p211
      %p218 = scmp.eq.s32.totalorder %s15, 2
      %p219 = por %p217, %p218
      %p220 = scmp.ne.s32.totalorder %s212, %s215
      %p221 = scmp.eq.s32.totalorder %s15, 0
      %p222 = por %p220, %p221
      %p223 = scmp.ne.s32.totalorder %s212, %s215
      %p224 = scmp.eq.s32.totalorder %s20, 2
      %p225 = por %p223, %p224
      %p226 = scmp.ne.s32.totalorder %s215, %s216
      %p227 = scmp.eq.s32.totalorder %s20, 0
      %p228 = por %p226, %p227
      %p229 = scmp.ne.s32.totalorder %s215, %s216
      %p230 = scmp.eq.s32.totalorder %s21, 2
      %p231 = por %p229, %p230
      %p233 = scmp.ne.s32.totalorder %s216, %s232
      %p234 = scmp.eq.s32.totalorder %s21, 0
      %p235 = por %p233, %p234
      %p236 = scmp.le.s32.totalorder 1, %s15
      %p237 = scmp.lt.s32.totalorder %s15, 4
      %p238 = pnand %p236, %p237
      %p239 = pneg %p238
      // Predicated region
      $region9: #{_lambda_.2} parent=5 // pred_check
        _
      $region10: #{_lambda_.2} parent=5 // pred_check_branch
        %241 = sbr.rel (%p238) target = $region12
      $region11: #{_lambda_.2} parent=5 // pred_region
        %s242 = ssub.s32 %s15, 1
        // Predicated region
        $region13: #{_lambda_.2} parent=11 // pred_check
          %p243 = pneg %p90
        $region14: #{_lambda_.2} parent=11 // pred_check_branch
          %245 = sbr.rel (%p243) target = $region16
        $region15: #{_lambda_.2} parent=11 // pred_region
          _
        $region16: #{_lambda_.2} parent=11 // pred_fallthru
          _
        // Predicated region
        $region17: #{_lambda_.2} parent=11 // pred_check
          %p246 = pneg %p111
        $region18: #{_lambda_.2} parent=11 // pred_check_branch
          %248 = sbr.rel (%p246) target = $region20
        $region19: #{_lambda_.2} parent=11 // pred_region
          _
        $region20: #{_lambda_.2} parent=11 // pred_fallthru
          _
        // Predicated region
        $region21: #{_lambda_.2} parent=11 // pred_check
          %p249 = pneg %p132
        $region22: #{_lambda_.2} parent=11 // pred_check_branch
          %251 = sbr.rel (%p249) target = $region24
        $region23: #{_lambda_.2} parent=11 // pred_region
          _
        $region24: #{_lambda_.2} parent=11 // pred_fallthru
          _
        // Predicated region
        $region25: #{_lambda_.2} parent=11 // pred_check
          %p252 = pneg %p153
        $region26: #{_lambda_.2} parent=11 // pred_check_branch
          %254 = sbr.rel (%p252) target = $region28
        $region27: #{_lambda_.2} parent=11 // pred_region
          _
        $region28: #{_lambda_.2} parent=11 // pred_fallthru
          _
        // Predicated region
        $region29: #{_lambda_.2} parent=11 // pred_check
          %p255 = pneg %p174
        $region30: #{_lambda_.2} parent=11 // pred_check_branch
          %257 = sbr.rel (%p255) target = $region32
        $region31: #{_lambda_.2} parent=11 // pred_region
          _
        $region32: #{_lambda_.2} parent=11 // pred_fallthru
          _
      $region12: #{_lambda_.2} parent=5 // pred_fallthru
        _
      %p258 = scmp.lt.s32.totalorder %s15, 3
      // Predicated region
      $region33: #{_lambda_.2} parent=5 // pred_check
        %p259 = pneg %p258
      $region34: #{_lambda_.2} parent=5 // pred_check_branch
        %261 = sbr.rel (%p259) target = $region36
      $region35: #{_lambda_.2} parent=5 // pred_region
        // Predicated region
        $region37: #{_lambda_.2} parent=35 // pred_check
          %p262 = pneg %p35
        $region38: #{_lambda_.2} parent=35 // pred_check_branch
          %264 = sbr.rel (%p262) target = $region40
        $region39: #{_lambda_.2} parent=35 // pred_region
          %s265 = sand.u32 %s25, 1
          %s266 = sand.u32 %s25, 1
          %s267 = smul.addr %s266, 64
          %s268 = scalar_lea.vmem [#allocation6], %s267
          %s269 = smul.u32 4, %s15
          %s270 = smul.addr %s269, 8
          %s271 = scalar_lea.vmem %s0, %s270
          // Predicated region
          $region41: #{_lambda_.2} parent=39 // pred_check
            _
          $region42: #{_lambda_.2} parent=39 // pred_check_branch
            %273 = sbr.rel (0) target = $region44
          $region43: #{_lambda_.2} parent=39 // pred_region
            // Predicated region
            $region45: #{_lambda_.2} parent=43 // pred_check
              _
            $region46: #{_lambda_.2} parent=43 // pred_check_branch
              %275 = sbr.rel (0) target = $region48
            $region47: #{_lambda_.2} parent=43 // pred_region
              // Predicated region
              $region60: #{_lambda_.2} parent=47 // pred_check
                _
              $region61: #{_lambda_.2} parent=47 // pred_check_branch
                %304 = sbr.rel (0) target = $region63
              $region62: #{_lambda_.2} parent=47 // pred_region
                loop: start=0, step=1, limit=1
                $region64: #{_lambda_.2} parent=62 // loop_pre_header
                  _
                $region65: #{_lambda_.2} parent=62 // loop_header
                  %s306 = sphi 0, %s310
                  %p307 = scmp.ge.s32.totalorder %s306, 1
                  %s311 = sphi %s271, %s271
                  %s312 = sphi %s268, %s268
                $region66: #{_lambda_.2} parent=62 // loop_header_branch
                  %309 = sbr.rel (%p307) target = $region70
                $region67: #{_lambda_.2} parent=62 // loop_body
                  %v313 = vld [vmem:[%s311] sm:$0xff]
                  %314 = vst [vmem:[%s312] sm:$0xff] %v313
                  %v315 = vld [vmem:[%s311 + $0x8] sm:$0xff]
                  %316 = vst [vmem:[%s312 + $0x8] sm:$0xff] %v315
                  %v317 = vld [vmem:[%s311 + $0x10] sm:$0xff]
                  %318 = vst [vmem:[%s312 + $0x10] sm:$0xff] %v317
                  %v319 = vld [vmem:[%s311 + $0x18] sm:$0xff]
                  %320 = vst [vmem:[%s312 + $0x18] sm:$0xff] %v319
                  %v321 = vld [vmem:[%s311 + $0x60] sm:$0xff]
                  %322 = vst [vmem:[%s312 + $0x20] sm:$0xff] %v321
                  %v323 = vld [vmem:[%s311 + $0x68] sm:$0xff]
                  %324 = vst [vmem:[%s312 + $0x28] sm:$0xff] %v323
                  %v325 = vld [vmem:[%s311 + $0x70] sm:$0xff]
                  %326 = vst [vmem:[%s312 + $0x30] sm:$0xff] %v325
                  %v327 = vld [vmem:[%s311 + $0x78] sm:$0xff]
                  %328 = vst [vmem:[%s312 + $0x38] sm:$0xff] %v327
                $region68: #{_lambda_.2} parent=62 // loop_footer
                  %s310 = sadd.s32 1, %s306
                $region69: #{_lambda_.2} parent=62 // loop_footer_branch
                  %305 = sbr.rel target = $region65
                $region70: #{_lambda_.2} parent=62 // loop_exit
                  _
              $region63: #{_lambda_.2} parent=47 // pred_fallthru
                _
              // Predicated region
              $region71: #{_lambda_.2} parent=47 // pred_check
                _
              $region72: #{_lambda_.2} parent=47 // pred_check_branch
                %330 = sbr.rel target = $region74
              $region73: #{_lambda_.2} parent=47 // pred_region
                _
              $region74: #{_lambda_.2} parent=47 // pred_fallthru
                _
            $region48: #{_lambda_.2} parent=43 // pred_fallthru
              _
            // Predicated region
            $region49: #{_lambda_.2} parent=43 // pred_check
              _
            $region50: #{_lambda_.2} parent=43 // pred_check_branch
              %277 = sbr.rel target = $region52
            $region51: #{_lambda_.2} parent=43 // pred_region
              loop: start=0, step=1, limit=1
              $region53: #{_lambda_.2} parent=51 // loop_pre_header
                _
              $region54: #{_lambda_.2} parent=51 // loop_header
                %s280 = sphi 0, %s284
                %p281 = scmp.ge.s32.totalorder %s280, 1
                %s285 = sphi %s271, %s271
                %s286 = sphi %s268, %s268
              $region55: #{_lambda_.2} parent=51 // loop_header_branch
                %283 = sbr.rel (%p281) target = $region59
              $region56: #{_lambda_.2} parent=51 // loop_body
                %v287 = vld [vmem:[%s285] sm:$0xff]
                %288 = vst [vmem:[%s286] sm:$0xff] %v287
                %v289 = vld [vmem:[%s285 + $0x8] sm:$0xff]
                %290 = vst [vmem:[%s286 + $0x8] sm:$0xff] %v289
                %v291 = vld [vmem:[%s285 + $0x10] sm:$0xff]
                %292 = vst [vmem:[%s286 + $0x10] sm:$0xff] %v291
                %v293 = vld [vmem:[%s285 + $0x18] sm:$0xff]
                %294 = vst [vmem:[%s286 + $0x18] sm:$0xff] %v293
                %v295 = vld [vmem:[%s285 + $0x60] sm:$0xff]
                %296 = vst [vmem:[%s286 + $0x20] sm:$0xff] %v295
                %v297 = vld [vmem:[%s285 + $0x68] sm:$0xff]
                %298 = vst [vmem:[%s286 + $0x28] sm:$0xff] %v297
                %v299 = vld [vmem:[%s285 + $0x70] sm:$0xff]
                %300 = vst [vmem:[%s286 + $0x30] sm:$0xff] %v299
                %v301 = vld [vmem:[%s285 + $0x78] sm:$0xff]
                %302 = vst [vmem:[%s286 + $0x38] sm:$0xff] %v301
              $region57: #{_lambda_.2} parent=51 // loop_footer
                %s284 = sadd.s32 1, %s280
              $region58: #{_lambda_.2} parent=51 // loop_footer_branch
                %279 = sbr.rel target = $region54
              $region59: #{_lambda_.2} parent=51 // loop_exit
                _
            $region52: #{_lambda_.2} parent=43 // pred_fallthru
              _
          $region44: #{_lambda_.2} parent=39 // pred_fallthru
            _
          %331 = vnop
        $region40: #{_lambda_.2} parent=35 // pred_fallthru
          _
        // Predicated region
        $region75: #{_lambda_.2} parent=35 // pred_check
          %p332 = pneg %p63
        $region76: #{_lambda_.2} parent=35 // pred_check_branch
          %334 = sbr.rel (%p332) target = $region78
        $region77: #{_lambda_.2} parent=35 // pred_region
          %s335 = sand.u32 %s53, 1
          %s336 = sand.u32 %s53, 1
          %s337 = smul.addr %s336, 64
          %s338 = scalar_lea.vmem [#allocation7], %s337
          %s339 = ssub.s32 2, %s15
          %s340 = smul.u32 4, %s339
          %s341 = smul.addr %s340, 8
          %s342 = scalar_lea.vmem %s1, %s341
          // Predicated region
          $region79: #{_lambda_.2} parent=77 // pred_check
            _
          $region80: #{_lambda_.2} parent=77 // pred_check_branch
            %344 = sbr.rel (0) target = $region82
          $region81: #{_lambda_.2} parent=77 // pred_region
            // Predicated region
            $region83: #{_lambda_.2} parent=81 // pred_check
              _
            $region84: #{_lambda_.2} parent=81 // pred_check_branch
              %346 = sbr.rel (0) target = $region86
            $region85: #{_lambda_.2} parent=81 // pred_region
              // Predicated region
              $region98: #{_lambda_.2} parent=85 // pred_check
                _
              $region99: #{_lambda_.2} parent=85 // pred_check_branch
                %375 = sbr.rel (0) target = $region101
              $region100: #{_lambda_.2} parent=85 // pred_region
                loop: start=0, step=1, limit=1
                $region102: #{_lambda_.2} parent=100 // loop_pre_header
                  _
                $region103: #{_lambda_.2} parent=100 // loop_header
                  %s377 = sphi 0, %s381
                  %p378 = scmp.ge.s32.totalorder %s377, 1
                  %s382 = sphi %s342, %s342
                  %s383 = sphi %s338, %s338
                $region104: #{_lambda_.2} parent=100 // loop_header_branch
                  %380 = sbr.rel (%p378) target = $region108
                $region105: #{_lambda_.2} parent=100 // loop_body
                  %v384 = vld [vmem:[%s382] sm:$0xff]
                  %385 = vst [vmem:[%s383] sm:$0xff] %v384
                  %v386 = vld [vmem:[%s382 + $0x8] sm:$0xff]
                  %387 = vst [vmem:[%s383 + $0x8] sm:$0xff] %v386
                  %v388 = vld [vmem:[%s382 + $0x10] sm:$0xff]
                  %389 = vst [vmem:[%s383 + $0x10] sm:$0xff] %v388
                  %v390 = vld [vmem:[%s382 + $0x18] sm:$0xff]
                  %391 = vst [vmem:[%s383 + $0x18] sm:$0xff] %v390
                  %v392 = vld [vmem:[%s382 + $0x60] sm:$0xff]
                  %393 = vst [vmem:[%s383 + $0x20] sm:$0xff] %v392
                  %v394 = vld [vmem:[%s382 + $0x68] sm:$0xff]
                  %395 = vst [vmem:[%s383 + $0x28] sm:$0xff] %v394
                  %v396 = vld [vmem:[%s382 + $0x70] sm:$0xff]
                  %397 = vst [vmem:[%s383 + $0x30] sm:$0xff] %v396
                  %v398 = vld [vmem:[%s382 + $0x78] sm:$0xff]
                  %399 = vst [vmem:[%s383 + $0x38] sm:$0xff] %v398
                $region106: #{_lambda_.2} parent=100 // loop_footer
                  %s381 = sadd.s32 1, %s377
                $region107: #{_lambda_.2} parent=100 // loop_footer_branch
                  %376 = sbr.rel target = $region103
                $region108: #{_lambda_.2} parent=100 // loop_exit
                  _
              $region101: #{_lambda_.2} parent=85 // pred_fallthru
                _
              // Predicated region
              $region109: #{_lambda_.2} parent=85 // pred_check
                _
              $region110: #{_lambda_.2} parent=85 // pred_check_branch
                %401 = sbr.rel target = $region112
              $region111: #{_lambda_.2} parent=85 // pred_region
                _
              $region112: #{_lambda_.2} parent=85 // pred_fallthru
                _
            $region86: #{_lambda_.2} parent=81 // pred_fallthru
              _
            // Predicated region
            $region87: #{_lambda_.2} parent=81 // pred_check
              _
            $region88: #{_lambda_.2} parent=81 // pred_check_branch
              %348 = sbr.rel target = $region90
            $region89: #{_lambda_.2} parent=81 // pred_region
              loop: start=0, step=1, limit=1
              $region91: #{_lambda_.2} parent=89 // loop_pre_header
                _
              $region92: #{_lambda_.2} parent=89 // loop_header
                %s351 = sphi 0, %s355
                %p352 = scmp.ge.s32.totalorder %s351, 1
                %s356 = sphi %s342, %s342
                %s357 = sphi %s338, %s338
              $region93: #{_lambda_.2} parent=89 // loop_header_branch
                %354 = sbr.rel (%p352) target = $region97
              $region94: #{_lambda_.2} parent=89 // loop_body
                %v358 = vld [vmem:[%s356] sm:$0xff]
                %359 = vst [vmem:[%s357] sm:$0xff] %v358
                %v360 = vld [vmem:[%s356 + $0x8] sm:$0xff]
                %361 = vst [vmem:[%s357 + $0x8] sm:$0xff] %v360
                %v362 = vld [vmem:[%s356 + $0x10] sm:$0xff]
                %363 = vst [vmem:[%s357 + $0x10] sm:$0xff] %v362
                %v364 = vld [vmem:[%s356 + $0x18] sm:$0xff]
                %365 = vst [vmem:[%s357 + $0x18] sm:$0xff] %v364
                %v366 = vld [vmem:[%s356 + $0x60] sm:$0xff]
                %367 = vst [vmem:[%s357 + $0x20] sm:$0xff] %v366
                %v368 = vld [vmem:[%s356 + $0x68] sm:$0xff]
                %369 = vst [vmem:[%s357 + $0x28] sm:$0xff] %v368
                %v370 = vld [vmem:[%s356 + $0x70] sm:$0xff]
                %371 = vst [vmem:[%s357 + $0x30] sm:$0xff] %v370
                %v372 = vld [vmem:[%s356 + $0x78] sm:$0xff]
                %373 = vst [vmem:[%s357 + $0x38] sm:$0xff] %v372
              $region95: #{_lambda_.2} parent=89 // loop_footer
                %s355 = sadd.s32 1, %s351
              $region96: #{_lambda_.2} parent=89 // loop_footer_branch
                %350 = sbr.rel target = $region92
              $region97: #{_lambda_.2} parent=89 // loop_exit
                _
            $region90: #{_lambda_.2} parent=81 // pred_fallthru
              _
          $region82: #{_lambda_.2} parent=77 // pred_fallthru
            _
          %402 = vnop
        $region78: #{_lambda_.2} parent=35 // pred_fallthru
          _
      $region36: #{_lambda_.2} parent=5 // pred_fallthru
        _
      %p403 = scmp.le.s32.totalorder 1, %s15
      %p404 = scmp.lt.s32.totalorder %s15, 4
      %p405 = pnand %p403, %p404
      %p406 = pneg %p405
      // Predicated region
      $region113: #{_lambda_.2} parent=5 // pred_check
        _
      $region114: #{_lambda_.2} parent=5 // pred_check_branch
        %408 = sbr.rel (%p405) target = $region116
      $region115: #{_lambda_.2} parent=5 // pred_region
        %s409 = ssub.s32 %s15, 1
        %s410 = sand.u32 %s28, 1
        %s411 = sand.u32 %s28, 1
        %s412 = smul.addr %s411, 64
        %s413 = scalar_lea.vmem [#allocation6], %s412
        // Predicated region
        $region117: #{_lambda_.2} parent=115 // pred_check
          %p414 = pneg %p41
        $region118: #{_lambda_.2} parent=115 // pred_check_branch
          %416 = sbr.rel (%p414) target = $region120
        $region119: #{_lambda_.2} parent=115 // pred_region
          _
        $region120: #{_lambda_.2} parent=115 // pred_fallthru
          _
        %s417 = sand.u32 %s56, 1
        %s418 = sand.u32 %s56, 1
        %s419 = smul.addr %s418, 64
        %s420 = scalar_lea.vmem [#allocation7], %s419
        // Predicated region
        $region121: #{_lambda_.2} parent=115 // pred_check
          %p421 = pneg %p69
        $region122: #{_lambda_.2} parent=115 // pred_check_branch
          %423 = sbr.rel (%p421) target = $region124
        $region123: #{_lambda_.2} parent=115 // pred_region
          _
        $region124: #{_lambda_.2} parent=115 // pred_fallthru
          _
        %s424 = sand.u32 %s28, 1
        %s425 = sand.u32 %s28, 1
        %s426 = smul.addr %s425, 64
        %s427 = scalar_lea.vmem [#allocation6], %s426
        %p428 = pneg %p41
        %p429 = pneg %p38
        %s430 = sand.u32 %s56, 1
        %s431 = sand.u32 %s56, 1
        %s432 = smul.addr %s431, 64
        %s433 = scalar_lea.vmem [#allocation7], %s432
        %p434 = pneg %p69
        %p435 = pneg %p66
        %p436 = pneg %p90
        %p437 = pneg %p87
        %p438 = pneg %p111
        %p439 = pneg %p108
        %p440 = pneg %p132
        %p441 = pneg %p129
        %p442 = pneg %p153
        %p443 = pneg %p150
        %p444 = pneg %p174
        %p445 = pneg %p171
        %p446 = pneg %p200
        %p447 = pneg %p197
        %s448 = sand.u32 %s187, 1
        %s449 = sand.u32 %s187, 1
        %s450 = smul.addr %s449, 64
        %s451 = scalar_lea.vmem [#allocation8], %s450
        %p452 = pneg %p228
        %p453 = pneg %p225
        %s454 = sand.u32 %s215, 1
        %s455 = sand.u32 %s215, 1
        %s456 = smul.addr %s455, 64
        %s457 = scalar_lea.vmem [#allocation9], %s456
        %s458 = smul.u32 4, %s20
        %s459 = ssub.s32 2, %s20
        %s460 = smul.u32 4, %s459
        %s461 = smul.u32 4, %s20
        %s462 = ssub.s32 2, %s20
        %s463 = smul.u32 4, %s462
        %p464 = scmp.eq.s32.totalorder %s20, 0
        // Predicated region
        $region125: #{_lambda_.2} parent=115 // pred_check
          %p465 = pneg %p464
        $region126: #{_lambda_.2} parent=115 // pred_check_branch
          %467 = sbr.rel (%p465) target = $region128
        $region127: #{_lambda_.2} parent=115 // pred_region
          %vm468 = vcmask 254976
          %469 = vst.msk [vmem:[#allocation4] sm:$0x3] %vm468, 0.0
          %470 = vst.msk [vmem:[#allocation5] sm:$0x3] %vm468, 0.0
        $region128: #{_lambda_.2} parent=115 // pred_fallthru
          _
        %v471 = vld [vmem:[%s6] sm:$0x1]
        %v472 = vld [vmem:[%s6 + $0x1] sm:$0x1]
        %v473 = vld [vmem:[%s6 + $0x2] sm:$0x1]
        %v474 = vld [vmem:[%s6 + $0x3] sm:$0x1]
        %v475 = vld [vmem:[%s413] sm:$0xff]
        %v476 = vld [vmem:[%s413 + $0x8] sm:$0xff]
        %v477 = vld [vmem:[%s413 + $0x10] sm:$0xff]
        %v478 = vld [vmem:[%s413 + $0x18] sm:$0xff]
        %v479 = vld [vmem:[%s2] sm:$0xff]
        %v480 = vld [vmem:[%s2 + $0x8] sm:$0xff]
        %v481 = vld [vmem:[%s2 + $0x10] sm:$0xff]
        %v482 = vld [vmem:[%s2 + $0x18] sm:$0xff]
        %v483 = vld [vmem:[%s2 + $0x20] sm:$0xff]
        %v484 = vld [vmem:[%s2 + $0x28] sm:$0xff]
        %v485 = vld [vmem:[%s2 + $0x30] sm:$0xff]
        %v486 = vld [vmem:[%s2 + $0x38] sm:$0xff]
        %vm487 = vcmask 523264
        %v489 = vsel %vm487, %v475, 0
        %v492 = vsel %vm487, %v476, 0
        %v495 = vsel %vm487, %v477, 0
        %v498 = vsel %vm487, %v478, 0
        %500 = vmatprep.subr.mxu0 0.0
        %501 = vmatpush1.msra.mxu0 %v479
        %502 = vmatprep.subr.mxu0 0.0
        %503 = vmatpush1.msra.mxu0 %v480
        %504 = vmatprep.subr.mxu0 0.0
        %505 = vmatpush1.msra.mxu0 %v481
        %506 = vmatprep.subr.mxu0 0.0
        %507 = vmatpush1.msra.mxu0 %v482
        %508 = vmatprep.subr.mxu0 0.0
        %509 = vmatpush1.msra.mxu0 %v483
        %510 = vmatprep.subr.mxu0 0.0
        %511 = vmatpush1.msra.mxu0 %v484
        %512 = vmatprep.subr.mxu0 0.0
        %513 = vmatpush1.msra.mxu0 %v485
        %514 = vmatprep.subr.mxu0 0.0
        %515 = vmatpush1.msra.mxu0 %v486
        %516 = vmatprep.subr.mxu0 0.0
        %517 = vmatpush1.msra.mxu0 0.0
        %518 = vmatprep.subr.mxu0 0.0
        %519 = vmatpush1.msra.mxu0 0.0
        %520 = vmatprep.subr.mxu0 0.0
        %521 = vmatpush1.msra.mxu0 0.0
        %522 = vmatprep.subr.mxu0 0.0
        %523 = vmatpush1.msra.mxu0 0.0
        %524 = vmatprep.subr.mxu0 0.0
        %525 = vmatpush1.msra.mxu0 0.0
        %526 = vmatprep.subr.mxu0 0.0
        %527 = vmatpush1.msra.mxu0 0.0
        %528 = vmatprep.subr.mxu0 0.0
        %529 = vmatpush1.msra.mxu0 0.0
        %530 = vmatprep.subr.mxu0 0.0
        %531 = vmatpush1.msra.mxu0 0.0
        %532 = vmatprep.subr.mxu0 0.0
        %533 = vmatpush1.msra.mxu0 0.0
        %534 = vmatprep.subr.mxu0 0.0
        %535 = vmatpush1.msra.mxu0 0.0
        %536 = vmatprep.subr.mxu0 0.0
        %537 = vmatpush1.msra.mxu0 0.0
        %538 = vmatprep.subr.mxu0 0.0
        %539 = vmatpush1.msra.mxu0 0.0
        %540 = vmatprep.subr.mxu0 0.0
        %541 = vmatpush1.msra.mxu0 0.0
        %542 = vmatprep.subr.mxu0 0.0
        %543 = vmatpush1.msra.mxu0 0.0
        %544 = vmatprep.subr.mxu0 0.0
        %545 = vmatpush1.msra.mxu0 0.0
        %546 = vmatprep.subr.mxu0 0.0
        %547 = vmatpush1.msra.mxu0 0.0
        %548 = vmatprep.subr.mxu0 0.0
        %549 = vmatpush1.msra.mxu0 0.0
        %550 = vmatprep.subr.mxu0 0.0
        %551 = vmatpush1.msra.mxu0 0.0
        %552 = vmatprep.subr.mxu0 0.0
        %553 = vmatpush1.msra.mxu0 0.0
        %554 = vmatprep.subr.mxu0 0.0
        %555 = vmatpush1.msra.mxu0 0.0
        %556 = vmatprep.subr.mxu0 0.0
        %557 = vmatpush1.msra.mxu0 0.0
        %558 = vmatprep.subr.mxu0 0.0
        %559 = vmatpush1.msra.mxu0 0.0
        %560 = vmatprep.subr.mxu0 0.0
        %561 = vmatpush1.msra.mxu0 0.0
        %562 = vmatprep.subr.mxu0 0.0
        %563 = vmatpush1.msra.mxu0 0.0
        %564 = vmatprep.mubr.f32.mxu0 0.0
        %565 = vmatmul.mubr.f32.gmra.mrb[0].mxu0 %v489
        %v566 = vpop.f32.mrb[0].mxu0
        %v567 = vadd.f32 0.0, %v566
        %v568 = vpop.f32.mrb[0].mxu0
        %569 = vmatprep.mubr.f32.mxu0 0.0
        %570 = vmatmul.mubr.f32.gmra.mrb[0].mxu0 %v492
        %v571 = vpop.f32.mrb[0].mxu0
        %v572 = vadd.f32 0.0, %v571
        %v573 = vpop.f32.mrb[0].mxu0
        %574 = vmatprep.mubr.f32.mxu0 0.0
        %575 = vmatmul.mubr.f32.gmra.mrb[0].mxu0 %v495
        %v576 = vpop.f32.mrb[0].mxu0
        %v577 = vadd.f32 0.0, %v576
        %v578 = vpop.f32.mrb[0].mxu0
        %579 = vmatprep.mubr.f32.mxu0 0.0
        %580 = vmatmul.mubr.f32.gmra.mrb[0].mxu0 %v498
        %v581 = vpop.f32.mrb[0].mxu0
        %v582 = vadd.f32 0.0, %v581
        %v583 = vpop.f32.mrb[0].mxu0
        %584 = vdwg.mxu0
        %v585 = vlaneseq
        %v586 = vshrl.u32 %v585, 7
        %v587 = vsub.s32 0, %v586
        %v588 = vrot.slane %v471, %v587
        %v589 = vadd.f32 %v588, %v567
        %v590 = vadd.f32 %v588, %v572
        %v591 = vadd.f32 %v588, %v577
        %v592 = vadd.f32 %v588, %v582
        %v593 = vld [vmem:[%s420] sm:$0xff]
        %v594 = vld [vmem:[%s420 + $0x8] sm:$0xff]
        %v595 = vld [vmem:[%s420 + $0x10] sm:$0xff]
        %v596 = vld [vmem:[%s420 + $0x18] sm:$0xff]
        %v597 = vld [vmem:[%s3] sm:$0xff]
        %v598 = vld [vmem:[%s3 + $0x8] sm:$0xff]
        %v599 = vld [vmem:[%s3 + $0x10] sm:$0xff]
        %v600 = vld [vmem:[%s3 + $0x18] sm:$0xff]
        %v601 = vld [vmem:[%s3 + $0x20] sm:$0xff]
        %v602 = vld [vmem:[%s3 + $0x28] sm:$0xff]
        %v603 = vld [vmem:[%s3 + $0x30] sm:$0xff]
        %v604 = vld [vmem:[%s3 + $0x38] sm:$0xff]
        %v606 = vsel %vm487, %v593, 0
        %v609 = vsel %vm487, %v594, 0
        %v612 = vsel %vm487, %v595, 0
        %v615 = vsel %vm487, %v596, 0
        %617 = vmatprep.subr.mxu0 0.0
        %618 = vmatpush1.msra.mxu0 %v597
        %619 = vmatprep.subr.mxu0 0.0
        %620 = vmatpush1.msra.mxu0 %v598
        %621 = vmatprep.subr.mxu0 0.0
        %622 = vmatpush1.msra.mxu0 %v599
        %623 = vmatprep.subr.mxu0 0.0
        %624 = vmatpush1.msra.mxu0 %v600
        %625 = vmatprep.subr.mxu0 0.0
        %626 = vmatpush1.msra.mxu0 %v601
        %627 = vmatprep.subr.mxu0 0.0
        %628 = vmatpush1.msra.mxu0 %v602
        %629 = vmatprep.subr.mxu0 0.0
        %630 = vmatpush1.msra.mxu0 %v603
        %631 = vmatprep.subr.mxu0 0.0
        %632 = vmatpush1.msra.mxu0 %v604
        %633 = vmatprep.subr.mxu0 0.0
        %634 = vmatpush1.msra.mxu0 0.0
        %635 = vmatprep.subr.mxu0 0.0
        %636 = vmatpush1.msra.mxu0 0.0
        %637 = vmatprep.subr.mxu0 0.0
        %638 = vmatpush1.msra.mxu0 0.0
        %639 = vmatprep.subr.mxu0 0.0
        %640 = vmatpush1.msra.mxu0 0.0
        %641 = vmatprep.subr.mxu0 0.0
        %642 = vmatpush1.msra.mxu0 0.0
        %643 = vmatprep.subr.mxu0 0.0
        %644 = vmatpush1.msra.mxu0 0.0
        %645 = vmatprep.subr.mxu0 0.0
        %646 = vmatpush1.msra.mxu0 0.0
        %647 = vmatprep.subr.mxu0 0.0
        %648 = vmatpush1.msra.mxu0 0.0
        %649 = vmatprep.subr.mxu0 0.0
        %650 = vmatpush1.msra.mxu0 0.0
        %651 = vmatprep.subr.mxu0 0.0
        %652 = vmatpush1.msra.mxu0 0.0
        %653 = vmatprep.subr.mxu0 0.0
        %654 = vmatpush1.msra.mxu0 0.0
        %655 = vmatprep.subr.mxu0 0.0
        %656 = vmatpush1.msra.mxu0 0.0
        %657 = vmatprep.subr.mxu0 0.0
        %658 = vmatpush1.msra.mxu0 0.0
        %659 = vmatprep.subr.mxu0 0.0
        %660 = vmatpush1.msra.mxu0 0.0
        %661 = vmatprep.subr.mxu0 0.0
        %662 = vmatpush1.msra.mxu0 0.0
        %663 = vmatprep.subr.mxu0 0.0
        %664 = vmatpush1.msra.mxu0 0.0
        %665 = vmatprep.subr.mxu0 0.0
        %666 = vmatpush1.msra.mxu0 0.0
        %667 = vmatprep.subr.mxu0 0.0
        %668 = vmatpush1.msra.mxu0 0.0
        %669 = vmatprep.subr.mxu0 0.0
        %670 = vmatpush1.msra.mxu0 0.0
        %671 = vmatprep.subr.mxu0 0.0
        %672 = vmatpush1.msra.mxu0 0.0
        %673 = vmatprep.subr.mxu0 0.0
        %674 = vmatpush1.msra.mxu0 0.0
        %675 = vmatprep.subr.mxu0 0.0
        %676 = vmatpush1.msra.mxu0 0.0
        %677 = vmatprep.subr.mxu0 0.0
        %678 = vmatpush1.msra.mxu0 0.0
        %679 = vmatprep.subr.mxu0 0.0
        %680 = vmatpush1.msra.mxu0 0.0
        %681 = vmatprep.mubr.f32.mxu0 0.0
        %682 = vmatmul.mubr.f32.gmra.mrb[0].mxu0 %v606
        %v683 = vpop.f32.mrb[0].mxu0
        %v684 = vadd.f32 0.0, %v683
        %v685 = vpop.f32.mrb[0].mxu0
        %686 = vmatprep.mubr.f32.mxu0 0.0
        %687 = vmatmul.mubr.f32.gmra.mrb[0].mxu0 %v609
        %v688 = vpop.f32.mrb[0].mxu0
        %v689 = vadd.f32 0.0, %v688
        %v690 = vpop.f32.mrb[0].mxu0
        %691 = vmatprep.mubr.f32.mxu0 0.0
        %692 = vmatmul.mubr.f32.gmra.mrb[0].mxu0 %v612
        %v693 = vpop.f32.mrb[0].mxu0
        %v694 = vadd.f32 0.0, %v693
        %v695 = vpop.f32.mrb[0].mxu0
        %696 = vmatprep.mubr.f32.mxu0 0.0
        %697 = vmatmul.mubr.f32.gmra.mrb[0].mxu0 %v615
        %v698 = vpop.f32.mrb[0].mxu0
        %v699 = vadd.f32 0.0, %v698
        %v700 = vpop.f32.mrb[0].mxu0
        %701 = vdwg.mxu0
        %v702 = vlaneseq
        %v703 = vshrl.u32 %v702, 7
        %v704 = vsub.s32 0, %v703
        %v705 = vrot.slane %v473, %v704
        %v706 = vadd.f32 %v705, %v684
        %v707 = vadd.f32 %v705, %v689
        %v708 = vadd.f32 %v705, %v694
        %v709 = vadd.f32 %v705, %v699
        %vm710 = vcmask 785408
        %711 = vst.msk [vmem:[#allocation2] sm:$0xff] %vm710, %v589
        %712 = vst.msk [vmem:[#allocation2 + $0x8] sm:$0xff] %vm710, %v590
        %713 = vst.msk [vmem:[#allocation2 + $0x10] sm:$0xff] %vm710, %v591
        %714 = vst.msk [vmem:[#allocation2 + $0x18] sm:$0xff] %vm710, %v592
        %715 = vst.msk [vmem:[#allocation3] sm:$0xff] %vm710, %v706
        %716 = vst.msk [vmem:[#allocation3 + $0x8] sm:$0xff] %vm710, %v707
        %717 = vst.msk [vmem:[#allocation3 + $0x10] sm:$0xff] %vm710, %v708
        %718 = vst.msk [vmem:[#allocation3 + $0x18] sm:$0xff] %vm710, %v709
        %s719 = scalar_lea.vmem %s413, 32 [#allocation6]
        %v720 = vld [vmem:[%s719] sm:$0xff]
        %v721 = vld [vmem:[%s719 + $0x8] sm:$0xff]
        %v722 = vld [vmem:[%s719 + $0x10] sm:$0xff]
        %v723 = vld [vmem:[%s719 + $0x18] sm:$0xff]
        %v724 = vld [vmem:[%s2] sm:$0xff]
        %v725 = vld [vmem:[%s2 + $0x8] sm:$0xff]
        %v726 = vld [vmem:[%s2 + $0x10] sm:$0xff]
        %v727 = vld [vmem:[%s2 + $0x18] sm:$0xff]
        %v728 = vld [vmem:[%s2 + $0x20] sm:$0xff]
        %v729 = vld [vmem:[%s2 + $0x28] sm:$0xff]
        %v730 = vld [vmem:[%s2 + $0x30] sm:$0xff]
        %v731 = vld [vmem:[%s2 + $0x38] sm:$0xff]
        %v733 = vsel %vm487, %v720, 0
        %v736 = vsel %vm487, %v721, 0
        %v739 = vsel %vm487, %v722, 0
        %v742 = vsel %vm487, %v723, 0
        %744 = vmatprep.subr.mxu0 0.0
        %745 = vmatpush1.msra.mxu0 %v724
        %746 = vmatprep.subr.mxu0 0.0
        %747 = vmatpush1.msra.mxu0 %v725
        %748 = vmatprep.subr.mxu0 0.0
        %749 = vmatpush1.msra.mxu0 %v726
        %750 = vmatprep.subr.mxu0 0.0
        %751 = vmatpush1.msra.mxu0 %v727
        %752 = vmatprep.subr.mxu0 0.0
        %753 = vmatpush1.msra.mxu0 %v728
        %754 = vmatprep.subr.mxu0 0.0
        %755 = vmatpush1.msra.mxu0 %v729
        %756 = vmatprep.subr.mxu0 0.0
        %757 = vmatpush1.msra.mxu0 %v730
        %758 = vmatprep.subr.mxu0 0.0
        %759 = vmatpush1.msra.mxu0 %v731
        %760 = vmatprep.subr.mxu0 0.0
        %761 = vmatpush1.msra.mxu0 0.0
        %762 = vmatprep.subr.mxu0 0.0
        %763 = vmatpush1.msra.mxu0 0.0
        %764 = vmatprep.subr.mxu0 0.0
        %765 = vmatpush1.msra.mxu0 0.0
        %766 = vmatprep.subr.mxu0 0.0
        %767 = vmatpush1.msra.mxu0 0.0
        %768 = vmatprep.subr.mxu0 0.0
        %769 = vmatpush1.msra.mxu0 0.0
        %770 = vmatprep.subr.mxu0 0.0
        %771 = vmatpush1.msra.mxu0 0.0
        %772 = vmatprep.subr.mxu0 0.0
        %773 = vmatpush1.msra.mxu0 0.0
        %774 = vmatprep.subr.mxu0 0.0
        %775 = vmatpush1.msra.mxu0 0.0
        %776 = vmatprep.subr.mxu0 0.0
        %777 = vmatpush1.msra.mxu0 0.0
        %778 = vmatprep.subr.mxu0 0.0
        %779 = vmatpush1.msra.mxu0 0.0
        %780 = vmatprep.subr.mxu0 0.0
        %781 = vmatpush1.msra.mxu0 0.0
        %782 = vmatprep.subr.mxu0 0.0
        %783 = vmatpush1.msra.mxu0 0.0
        %784 = vmatprep.subr.mxu0 0.0
        %785 = vmatpush1.msra.mxu0 0.0
        %786 = vmatprep.subr.mxu0 0.0
        %787 = vmatpush1.msra.mxu0 0.0
        %788 = vmatprep.subr.mxu0 0.0
        %789 = vmatpush1.msra.mxu0 0.0
        %790 = vmatprep.subr.mxu0 0.0
        %791 = vmatpush1.msra.mxu0 0.0
        %792 = vmatprep.subr.mxu0 0.0
        %793 = vmatpush1.msra.mxu0 0.0
        %794 = vmatprep.subr.mxu0 0.0
        %795 = vmatpush1.msra.mxu0 0.0
        %796 = vmatprep.subr.mxu0 0.0
        %797 = vmatpush1.msra.mxu0 0.0
        %798 = vmatprep.subr.mxu0 0.0
        %799 = vmatpush1.msra.mxu0 0.0
        %800 = vmatprep.subr.mxu0 0.0
        %801 = vmatpush1.msra.mxu0 0.0
        %802 = vmatprep.subr.mxu0 0.0
        %803 = vmatpush1.msra.mxu0 0.0
        %804 = vmatprep.subr.mxu0 0.0
        %805 = vmatpush1.msra.mxu0 0.0
        %806 = vmatprep.subr.mxu0 0.0
        %807 = vmatpush1.msra.mxu0 0.0
        %808 = vmatprep.mubr.f32.mxu0 0.0
        %809 = vmatmul.mubr.f32.gmra.mrb[0].mxu0 %v733
        %v810 = vpop.f32.mrb[0].mxu0
        %v811 = vadd.f32 0.0, %v810
        %v812 = vpop.f32.mrb[0].mxu0
        %813 = vmatprep.mubr.f32.mxu0 0.0
        %814 = vmatmul.mubr.f32.gmra.mrb[0].mxu0 %v736
        %v815 = vpop.f32.mrb[0].mxu0
        %v816 = vadd.f32 0.0, %v815
        %v817 = vpop.f32.mrb[0].mxu0
        %818 = vmatprep.mubr.f32.mxu0 0.0
        %819 = vmatmul.mubr.f32.gmra.mrb[0].mxu0 %v739
        %v820 = vpop.f32.mrb[0].mxu0
        %v821 = vadd.f32 0.0, %v820
        %v822 = vpop.f32.mrb[0].mxu0
        %823 = vmatprep.mubr.f32.mxu0 0.0
        %824 = vmatmul.mubr.f32.gmra.mrb[0].mxu0 %v742
        %v825 = vpop.f32.mrb[0].mxu0
        %v826 = vadd.f32 0.0, %v825
        %v827 = vpop.f32.mrb[0].mxu0
        %828 = vdwg.mxu0
        %v829 = vadd.f32 %v588, %v811
        %v830 = vadd.f32 %v588, %v816
        %v831 = vadd.f32 %v588, %v821
        %v832 = vadd.f32 %v588, %v826
        %s833 = scalar_lea.vmem %s420, 32 [#allocation7]
        %v834 = vld [vmem:[%s833] sm:$0xff]
        %v835 = vld [vmem:[%s833 + $0x8] sm:$0xff]
        %v836 = vld [vmem:[%s833 + $0x10] sm:$0xff]
        %v837 = vld [vmem:[%s833 + $0x18] sm:$0xff]
        %v838 = vld [vmem:[%s3] sm:$0xff]
        %v839 = vld [vmem:[%s3 + $0x8] sm:$0xff]
        %v840 = vld [vmem:[%s3 + $0x10] sm:$0xff]
        %v841 = vld [vmem:[%s3 + $0x18] sm:$0xff]
        %v842 = vld [vmem:[%s3 + $0x20] sm:$0xff]
        %v843 = vld [vmem:[%s3 + $0x28] sm:$0xff]
        %v844 = vld [vmem:[%s3 + $0x30] sm:$0xff]
        %v845 = vld [vmem:[%s3 + $0x38] sm:$0xff]
        %v847 = vsel %vm487, %v834, 0
        %v850 = vsel %vm487, %v835, 0
        %v853 = vsel %vm487, %v836, 0
        %v856 = vsel %vm487, %v837, 0
        %858 = vmatprep.subr.mxu0 0.0
        %859 = vmatpush1.msra.mxu0 %v838
        %860 = vmatprep.subr.mxu0 0.0
        %861 = vmatpush1.msra.mxu0 %v839
        %862 = vmatprep.subr.mxu0 0.0
        %863 = vmatpush1.msra.mxu0 %v840
        %864 = vmatprep.subr.mxu0 0.0
        %865 = vmatpush1.msra.mxu0 %v841
        %866 = vmatprep.subr.mxu0 0.0
        %867 = vmatpush1.msra.mxu0 %v842
        %868 = vmatprep.subr.mxu0 0.0
        %869 = vmatpush1.msra.mxu0 %v843
        %870 = vmatprep.subr.mxu0 0.0
        %871 = vmatpush1.msra.mxu0 %v844
        %872 = vmatprep.subr.mxu0 0.0
        %873 = vmatpush1.msra.mxu0 %v845
        %874 = vmatprep.subr.mxu0 0.0
        %875 = vmatpush1.msra.mxu0 0.0
        %876 = vmatprep.subr.mxu0 0.0
        %877 = vmatpush1.msra.mxu0 0.0
        %878 = vmatprep.subr.mxu0 0.0
        %879 = vmatpush1.msra.mxu0 0.0
        %880 = vmatprep.subr.mxu0 0.0
        %881 = vmatpush1.msra.mxu0 0.0
        %882 = vmatprep.subr.mxu0 0.0
        %883 = vmatpush1.msra.mxu0 0.0
        %884 = vmatprep.subr.mxu0 0.0
        %885 = vmatpush1.msra.mxu0 0.0
        %886 = vmatprep.subr.mxu0 0.0
        %887 = vmatpush1.msra.mxu0 0.0
        %888 = vmatprep.subr.mxu0 0.0
        %889 = vmatpush1.msra.mxu0 0.0
        %890 = vmatprep.subr.mxu0 0.0
        %891 = vmatpush1.msra.mxu0 0.0
        %892 = vmatprep.subr.mxu0 0.0
        %893 = vmatpush1.msra.mxu0 0.0
        %894 = vmatprep.subr.mxu0 0.0
        %895 = vmatpush1.msra.mxu0 0.0
        %896 = vmatprep.subr.mxu0 0.0
        %897 = vmatpush1.msra.mxu0 0.0
        %898 = vmatprep.subr.mxu0 0.0
        %899 = vmatpush1.msra.mxu0 0.0
        %900 = vmatprep.subr.mxu0 0.0
        %901 = vmatpush1.msra.mxu0 0.0
        %902 = vmatprep.subr.mxu0 0.0
        %903 = vmatpush1.msra.mxu0 0.0
        %904 = vmatprep.subr.mxu0 0.0
        %905 = vmatpush1.msra.mxu0 0.0
        %906 = vmatprep.subr.mxu0 0.0
        %907 = vmatpush1.msra.mxu0 0.0
        %908 = vmatprep.subr.mxu0 0.0
        %909 = vmatpush1.msra.mxu0 0.0
        %910 = vmatprep.subr.mxu0 0.0
        %911 = vmatpush1.msra.mxu0 0.0
        %912 = vmatprep.subr.mxu0 0.0
        %913 = vmatpush1.msra.mxu0 0.0
        %914 = vmatprep.subr.mxu0 0.0
        %915 = vmatpush1.msra.mxu0 0.0
        %916 = vmatprep.subr.mxu0 0.0
        %917 = vmatpush1.msra.mxu0 0.0
        %918 = vmatprep.subr.mxu0 0.0
        %919 = vmatpush1.msra.mxu0 0.0
        %920 = vmatprep.subr.mxu0 0.0
        %921 = vmatpush1.msra.mxu0 0.0
        %922 = vmatprep.mubr.f32.mxu0 0.0
        %923 = vmatmul.mubr.f32.gmra.mrb[0].mxu0 %v847
        %v924 = vpop.f32.mrb[0].mxu0
        %v925 = vadd.f32 0.0, %v924
        %v926 = vpop.f32.mrb[0].mxu0
        %927 = vmatprep.mubr.f32.mxu0 0.0
        %928 = vmatmul.mubr.f32.gmra.mrb[0].mxu0 %v850
        %v929 = vpop.f32.mrb[0].mxu0
        %v930 = vadd.f32 0.0, %v929
        %v931 = vpop.f32.mrb[0].mxu0
        %932 = vmatprep.mubr.f32.mxu0 0.0
        %933 = vmatmul.mubr.f32.gmra.mrb[0].mxu0 %v853
        %v934 = vpop.f32.mrb[0].mxu0
        %v935 = vadd.f32 0.0, %v934
        %v936 = vpop.f32.mrb[0].mxu0
        %937 = vmatprep.mubr.f32.mxu0 0.0
        %938 = vmatmul.mubr.f32.gmra.mrb[0].mxu0 %v856
        %v939 = vpop.f32.mrb[0].mxu0
        %v940 = vadd.f32 0.0, %v939
        %v941 = vpop.f32.mrb[0].mxu0
        %942 = vdwg.mxu0
        %v943 = vadd.f32 %v705, %v925
        %v944 = vadd.f32 %v705, %v930
        %v945 = vadd.f32 %v705, %v935
        %v946 = vadd.f32 %v705, %v940
        %s947 = scalar_lea.vmem [#allocation2], 32
        %948 = vst.msk [vmem:[%s947] sm:$0xff] %vm710, %v829
        %949 = vst.msk [vmem:[%s947 + $0x8] sm:$0xff] %vm710, %v830
        %950 = vst.msk [vmem:[%s947 + $0x10] sm:$0xff] %vm710, %v831
        %951 = vst.msk [vmem:[%s947 + $0x18] sm:$0xff] %vm710, %v832
        %s952 = scalar_lea.vmem [#allocation3], 32
        %953 = vst.msk [vmem:[%s952] sm:$0xff] %vm710, %v943
        %954 = vst.msk [vmem:[%s952 + $0x8] sm:$0xff] %vm710, %v944
        %955 = vst.msk [vmem:[%s952 + $0x10] sm:$0xff] %vm710, %v945
        %956 = vst.msk [vmem:[%s952 + $0x18] sm:$0xff] %vm710, %v946
        %v957 = vld [vmem:[%s4] sm:$0xff]
        %v958 = vld [vmem:[%s4 + $0x8] sm:$0xff]
        %v959 = vld [vmem:[%s4 + $0x10] sm:$0xff]
        %v960 = vld [vmem:[%s4 + $0x18] sm:$0xff]
        %v961 = vld [vmem:[%s5] sm:$0xff]
        %v962 = vld [vmem:[%s5 + $0x8] sm:$0xff]
        %v963 = vld [vmem:[%s5 + $0x10] sm:$0xff]
        %v964 = vld [vmem:[%s5 + $0x18] sm:$0xff]
        %v965 = vld [vmem:[#allocation4] sm:$0x3]
        %v966 = vld [vmem:[#allocation5] sm:$0x3]
        loop: start=0, step=1, limit=32
        $region129: #{_lambda_.2} parent=115 // loop_pre_header
          _
        $region130: #{_lambda_.2} parent=115 // loop_header
          %s968 = sphi 0, %s972
          %p969 = scmp.ge.s32.totalorder %s968, 32
          %v973 = vphi %v965, %v1303
          %v974 = vphi %v966, %v1308
        $region131: #{_lambda_.2} parent=115 // loop_header_branch
          %971 = sbr.rel (%p969) target = $region135
        $region132: #{_lambda_.2} parent=115 // loop_body
          %s975 = scalar_lea.vmem [#allocation2], %s968
          %v976 = vld [vmem:[%s975] sm:$0x1]
          %v977 = vld [vmem:[%s975 + $0x20] sm:$0x1]
          %v978 = vlaneseq
          %v979 = vshrl.u32 %v978, 7
          %v980 = vsub.s32 0, %v979
          %v981 = vrot.slane %v472, %v980
          %vm982 = vcmask 261120
          %v984 = vsel %vm982, %v973, 0
          %986 = vmatprep.subr.mxu0 0.0
          %987 = vmatpush1.msra.mxu0 %v957
          %988 = vmatprep.subr.mxu0 0.0
          %989 = vmatpush1.msra.mxu0 %v958
          %990 = vmatprep.subr.mxu0 0.0
          %991 = vmatpush1.msra.mxu0 %v959
          %992 = vmatprep.subr.mxu0 0.0
          %993 = vmatpush1.msra.mxu0 %v960
          %994 = vmatprep.subr.mxu0 0.0
          %995 = vmatpush1.msra.mxu0 0.0
          %996 = vmatprep.subr.mxu0 0.0
          %997 = vmatpush1.msra.mxu0 0.0
          %998 = vmatprep.subr.mxu0 0.0
          %999 = vmatpush1.msra.mxu0 0.0
          %1000 = vmatprep.subr.mxu0 0.0
          %1001 = vmatpush1.msra.mxu0 0.0
          %1002 = vmatprep.subr.mxu0 0.0
          %1003 = vmatpush1.msra.mxu0 0.0
          %1004 = vmatprep.subr.mxu0 0.0
          %1005 = vmatpush1.msra.mxu0 0.0
          %1006 = vmatprep.subr.mxu0 0.0
          %1007 = vmatpush1.msra.mxu0 0.0
          %1008 = vmatprep.subr.mxu0 0.0
          %1009 = vmatpush1.msra.mxu0 0.0
          %1010 = vmatprep.subr.mxu0 0.0
          %1011 = vmatpush1.msra.mxu0 0.0
          %1012 = vmatprep.subr.mxu0 0.0
          %1013 = vmatpush1.msra.mxu0 0.0
          %1014 = vmatprep.subr.mxu0 0.0
          %1015 = vmatpush1.msra.mxu0 0.0
          %1016 = vmatprep.subr.mxu0 0.0
          %1017 = vmatpush1.msra.mxu0 0.0
          %1018 = vmatprep.subr.mxu0 0.0
          %1019 = vmatpush1.msra.mxu0 0.0
          %1020 = vmatprep.subr.mxu0 0.0
          %1021 = vmatpush1.msra.mxu0 0.0
          %1022 = vmatprep.subr.mxu0 0.0
          %1023 = vmatpush1.msra.mxu0 0.0
          %1024 = vmatprep.subr.mxu0 0.0
          %1025 = vmatpush1.msra.mxu0 0.0
          %1026 = vmatprep.subr.mxu0 0.0
          %1027 = vmatpush1.msra.mxu0 0.0
          %1028 = vmatprep.subr.mxu0 0.0
          %1029 = vmatpush1.msra.mxu0 0.0
          %1030 = vmatprep.subr.mxu0 0.0
          %1031 = vmatpush1.msra.mxu0 0.0
          %1032 = vmatprep.subr.mxu0 0.0
          %1033 = vmatpush1.msra.mxu0 0.0
          %1034 = vmatprep.subr.mxu0 0.0
          %1035 = vmatpush1.msra.mxu0 0.0
          %1036 = vmatprep.subr.mxu0 0.0
          %1037 = vmatpush1.msra.mxu0 0.0
          %1038 = vmatprep.subr.mxu0 0.0
          %1039 = vmatpush1.msra.mxu0 0.0
          %1040 = vmatprep.subr.mxu0 0.0
          %1041 = vmatpush1.msra.mxu0 0.0
          %1042 = vmatprep.subr.mxu0 0.0
          %1043 = vmatpush1.msra.mxu0 0.0
          %1044 = vmatprep.subr.mxu0 0.0
          %1045 = vmatpush1.msra.mxu0 0.0
          %1046 = vmatprep.subr.mxu0 0.0
          %1047 = vmatpush1.msra.mxu0 0.0
          %1048 = vmatprep.subr.mxu0 0.0
          %1049 = vmatpush1.msra.mxu0 0.0
          %1050 = vmatprep.mubr.f32.mxu0 0.0
          %1051 = vmatmul.mubr.f32.gmra.mrb[0].mxu0 %v984
          %v1052 = vpop.f32.mrb[0].mxu0
          %v1053 = vadd.f32 %v981, %v1052
          %v1054 = vpop.f32.mrb[0].mxu0
          %1055 = vdwg.mxu0
          %v1057 = vrot.slane %v1053, 1
          %v1060 = vadd.f32 %v976, %v1053
          %v1061 = vadd.f32 %v977, %v1057
          %v1062 = vxor.u32 %v1060, 2147483648
          %v1063 = vxor.u32 %v1061, 2147483648
          %v1064 = vmul.f32 %v1062, 1.442695
          %v1065 = vpow.pop %v1064
          %v1066 = vmul.f32 %v1063, 1.442695
          %v1067 = vpow.pop %v1066
          %v1068 = vadd.f32 %v1065, 1.0
          %v1069 = vadd.f32 %v1067, 1.0
          %v1070 = vrcp.pop %v1068
          %v1071 = vmul.f32 1.0, %v1070
          %v1072 = vrcp.pop %v1069
          %v1073 = vmul.f32 1.0, %v1072
          %1074 = vrot.lane.b32.xlu0 %v1053, 64
          %v1075 = vpop.permute.xlu0 %1074
          %1076 = vrot.lane.b32.xlu0 %v1057, 64
          %v1077 = vpop.permute.xlu0 %1076
          %v1080 = vmul.f32 %v1071, %v1075
          %v1081 = vmul.f32 %v1073, %v1077
          %1084 = vrot.lane.b32.xlu0 %v1080, 64
          %v1085 = vpop.permute.xlu0 %1084
          %1086 = vrot.lane.b32.xlu0 %v1081, 64
          %v1087 = vpop.permute.xlu0 %1086
          %v1090 = vadd.f32 %v976, %v1085
          %v1091 = vadd.f32 %v977, %v1087
          %v1092 = vtanh.pop %v1090
          %v1093 = vtanh.pop %v1091
          %v1094 = vsub.f32 1.0, %v1071
          %v1095 = vsub.f32 1.0, %v1073
          %1098 = vrot.lane.b32.xlu0 %v1092, 96
          %v1099 = vpop.permute.xlu0 %1098
          %1100 = vrot.lane.b32.xlu0 %v1093, 96
          %v1101 = vpop.permute.xlu0 %1100
          %v1104 = vmul.f32 %v1094, %v1099
          %v1105 = vmul.f32 %v1095, %v1101
          %v1106 = vrot.slane %v973, 1
          %1107 = vrot.lane.b32.xlu0 %v973, 32
          %v1108 = vpop.permute.xlu0 %1107
          %1109 = vrot.lane.b32.xlu0 %v1106, 32
          %v1110 = vpop.permute.xlu0 %1109
          %v1113 = vmul.f32 %v1071, %v1108
          %v1114 = vmul.f32 %v1073, %v1110
          %v1115 = vadd.f32 %v1104, %v1113
          %v1116 = vadd.f32 %v1105, %v1114
          %s1117 = smul.u32 %s20, 32
          %s1118 = sadd.s32 %s1117, %s968
          %p1119 = scmp.lt.s32.totalorder %s1118, 72
          %s1120 = scalar_select %p1119, 1, 0
          %v1121 = vstv %s1120
          %vm1122 = vcmp.eq.s32.totalorder %v1121, 1
          %v1123 = vsel %vm1122, %v1115, %v1108
          %v1124 = vsel %vm1122, %v1116, %v1110
          %1127 = vrot.lane.b32.xlu0 %v1123, 96
          %v1128 = vpop.permute.xlu0 %1127
          %1129 = vrot.lane.b32.xlu0 %v1124, 96
          %v1130 = vpop.permute.xlu0 %1129
          %s1133 = scalar_lea.vmem %s451, %s968 [#allocation8]
          %vm1134 = vcmask 253952
          %1135 = vst.msk [vmem:[%s1133] sm:$0x1] %vm1134, %v1128
          %1136 = vst.msk [vmem:[%s1133 + $0x20] sm:$0x1] %vm1134, %v1130
          %s1137 = ssub.s32 31, %s968
          %s1138 = scalar_lea.vmem [#allocation3], %s1137
          %v1139 = vld [vmem:[%s1138] sm:$0x1]
          %v1140 = vld [vmem:[%s1138 + $0x20] sm:$0x1]
          %v1141 = vlaneseq
          %v1142 = vshrl.u32 %v1141, 7
          %v1143 = vsub.s32 0, %v1142
          %v1144 = vrot.slane %v474, %v1143
          %v1146 = vsel %vm982, %v974, 0
          %1148 = vmatprep.subr.mxu0 0.0
          %1149 = vmatpush1.msra.mxu0 %v961
          %1150 = vmatprep.subr.mxu0 0.0
          %1151 = vmatpush1.msra.mxu0 %v962
          %1152 = vmatprep.subr.mxu0 0.0
          %1153 = vmatpush1.msra.mxu0 %v963
          %1154 = vmatprep.subr.mxu0 0.0
          %1155 = vmatpush1.msra.mxu0 %v964
          %1156 = vmatprep.subr.mxu0 0.0
          %1157 = vmatpush1.msra.mxu0 0.0
          %1158 = vmatprep.subr.mxu0 0.0
          %1159 = vmatpush1.msra.mxu0 0.0
          %1160 = vmatprep.subr.mxu0 0.0
          %1161 = vmatpush1.msra.mxu0 0.0
          %1162 = vmatprep.subr.mxu0 0.0
          %1163 = vmatpush1.msra.mxu0 0.0
          %1164 = vmatprep.subr.mxu0 0.0
          %1165 = vmatpush1.msra.mxu0 0.0
          %1166 = vmatprep.subr.mxu0 0.0
          %1167 = vmatpush1.msra.mxu0 0.0
          %1168 = vmatprep.subr.mxu0 0.0
          %1169 = vmatpush1.msra.mxu0 0.0
          %1170 = vmatprep.subr.mxu0 0.0
          %1171 = vmatpush1.msra.mxu0 0.0
          %1172 = vmatprep.subr.mxu0 0.0
          %1173 = vmatpush1.msra.mxu0 0.0
          %1174 = vmatprep.subr.mxu0 0.0
          %1175 = vmatpush1.msra.mxu0 0.0
          %1176 = vmatprep.subr.mxu0 0.0
          %1177 = vmatpush1.msra.mxu0 0.0
          %1178 = vmatprep.subr.mxu0 0.0
          %1179 = vmatpush1.msra.mxu0 0.0
          %1180 = vmatprep.subr.mxu0 0.0
          %1181 = vmatpush1.msra.mxu0 0.0
          %1182 = vmatprep.subr.mxu0 0.0
          %1183 = vmatpush1.msra.mxu0 0.0
          %1184 = vmatprep.subr.mxu0 0.0
          %1185 = vmatpush1.msra.mxu0 0.0
          %1186 = vmatprep.subr.mxu0 0.0
          %1187 = vmatpush1.msra.mxu0 0.0
          %1188 = vmatprep.subr.mxu0 0.0
          %1189 = vmatpush1.msra.mxu0 0.0
          %1190 = vmatprep.subr.mxu0 0.0
          %1191 = vmatpush1.msra.mxu0 0.0
          %1192 = vmatprep.subr.mxu0 0.0
          %1193 = vmatpush1.msra.mxu0 0.0
          %1194 = vmatprep.subr.mxu0 0.0
          %1195 = vmatpush1.msra.mxu0 0.0
          %1196 = vmatprep.subr.mxu0 0.0
          %1197 = vmatpush1.msra.mxu0 0.0
          %1198 = vmatprep.subr.mxu0 0.0
          %1199 = vmatpush1.msra.mxu0 0.0
          %1200 = vmatprep.subr.mxu0 0.0
          %1201 = vmatpush1.msra.mxu0 0.0
          %1202 = vmatprep.subr.mxu0 0.0
          %1203 = vmatpush1.msra.mxu0 0.0
          %1204 = vmatprep.subr.mxu0 0.0
          %1205 = vmatpush1.msra.mxu0 0.0
          %1206 = vmatprep.subr.mxu0 0.0
          %1207 = vmatpush1.msra.mxu0 0.0
          %1208 = vmatprep.subr.mxu0 0.0
          %1209 = vmatpush1.msra.mxu0 0.0
          %1210 = vmatprep.subr.mxu0 0.0
          %1211 = vmatpush1.msra.mxu0 0.0
          %1212 = vmatprep.mubr.f32.mxu0 0.0
          %1213 = vmatmul.mubr.f32.gmra.mrb[0].mxu0 %v1146
          %v1214 = vpop.f32.mrb[0].mxu0
          %v1215 = vadd.f32 %v1144, %v1214
          %v1216 = vpop.f32.mrb[0].mxu0
          %1217 = vdwg.mxu0
          %v1219 = vrot.slane %v1215, 1
          %v1222 = vadd.f32 %v1139, %v1215
          %v1223 = vadd.f32 %v1140, %v1219
          %v1224 = vxor.u32 %v1222, 2147483648
          %v1225 = vxor.u32 %v1223, 2147483648
          %v1226 = vmul.f32 %v1224, 1.442695
          %v1227 = vpow.pop %v1226
          %v1228 = vmul.f32 %v1225, 1.442695
          %v1229 = vpow.pop %v1228
          %v1230 = vadd.f32 %v1227, 1.0
          %v1231 = vadd.f32 %v1229, 1.0
          %v1232 = vrcp.pop %v1230
          %v1233 = vmul.f32 1.0, %v1232
          %v1234 = vrcp.pop %v1231
          %v1235 = vmul.f32 1.0, %v1234
          %1236 = vrot.lane.b32.xlu0 %v1215, 64
          %v1237 = vpop.permute.xlu0 %1236
          %1238 = vrot.lane.b32.xlu0 %v1219, 64
          %v1239 = vpop.permute.xlu0 %1238
          %v1242 = vmul.f32 %v1233, %v1237
          %v1243 = vmul.f32 %v1235, %v1239
          %1246 = vrot.lane.b32.xlu0 %v1242, 64
          %v1247 = vpop.permute.xlu0 %1246
          %1248 = vrot.lane.b32.xlu0 %v1243, 64
          %v1249 = vpop.permute.xlu0 %1248
          %v1252 = vadd.f32 %v1139, %v1247
          %v1253 = vadd.f32 %v1140, %v1249
          %v1254 = vtanh.pop %v1252
          %v1255 = vtanh.pop %v1253
          %v1256 = vsub.f32 1.0, %v1233
          %v1257 = vsub.f32 1.0, %v1235
          %1260 = vrot.lane.b32.xlu0 %v1254, 96
          %v1261 = vpop.permute.xlu0 %1260
          %1262 = vrot.lane.b32.xlu0 %v1255, 96
          %v1263 = vpop.permute.xlu0 %1262
          %v1266 = vmul.f32 %v1256, %v1261
          %v1267 = vmul.f32 %v1257, %v1263
          %v1268 = vrot.slane %v974, 1
          %1269 = vrot.lane.b32.xlu0 %v974, 32
          %v1270 = vpop.permute.xlu0 %1269
          %1271 = vrot.lane.b32.xlu0 %v1268, 32
          %v1272 = vpop.permute.xlu0 %1271
          %v1275 = vmul.f32 %v1233, %v1270
          %v1276 = vmul.f32 %v1235, %v1272
          %v1277 = vadd.f32 %v1266, %v1275
          %v1278 = vadd.f32 %v1267, %v1276
          %s1279 = ssub.s32 2, %s20
          %s1280 = smul.u32 %s1279, 32
          %s1281 = sadd.s32 %s1280, %s1137
          %p1282 = scmp.lt.s32.totalorder %s1281, 72
          %s1283 = scalar_select %p1282, 1, 0
          %v1284 = vstv %s1283
          %vm1285 = vcmp.eq.s32.totalorder %v1284, 1
          %v1286 = vsel %vm1285, %v1277, %v1270
          %v1287 = vsel %vm1285, %v1278, %v1272
          %1290 = vrot.lane.b32.xlu0 %v1286, 96
          %v1291 = vpop.permute.xlu0 %1290
          %1292 = vrot.lane.b32.xlu0 %v1287, 96
          %v1293 = vpop.permute.xlu0 %1292
          %s1296 = scalar_lea.vmem %s457, %s1137 [#allocation9]
          %1297 = vst.msk [vmem:[%s1296] sm:$0x1] %vm1134, %v1291
          %1298 = vst.msk [vmem:[%s1296 + $0x20] sm:$0x1] %vm1134, %v1293
          %v1299 = vrot.slane %v1124, 7
          %vm1300 = vcmask 1041409
          %v1301 = vsel %vm1300, %v1299, %v1123
          %1302 = vrot.lane.b32.xlu0 %v1301, 96
          %v1303 = vpop.permute.xlu0 %1302
          %v1305 = vrot.slane %v1287, 7
          %v1306 = vsel %vm1300, %v1305, %v1286
          %1307 = vrot.lane.b32.xlu0 %v1306, 96
          %v1308 = vpop.permute.xlu0 %1307
        $region133: #{_lambda_.2} parent=115 // loop_footer
          %s972 = sadd.s32 1, %s968
        $region134: #{_lambda_.2} parent=115 // loop_footer_branch
          %967 = sbr.rel target = $region130
        $region135: #{_lambda_.2} parent=115 // loop_exit
          _
        %vm1310 = vcmask 254976
        %1311 = vst.msk [vmem:[#allocation4] sm:$0x3] %vm1310, %v973
        %1312 = vst.msk [vmem:[#allocation5] sm:$0x3] %vm1310, %v974
        %s1313 = sand.u32 %s187, 1
        %s1314 = sand.u32 %s187, 1
        %s1315 = smul.addr %s1314, 64
        %s1316 = scalar_lea.vmem [#allocation8], %s1315
        %s1317 = sand.u32 %s215, 1
        %s1318 = sand.u32 %s215, 1
        %s1319 = smul.addr %s1318, 64
        %s1320 = scalar_lea.vmem [#allocation9], %s1319
        // Predicated region
        $region136: #{_lambda_.2} parent=115 // pred_check
          %p1321 = pneg %p197
        $region137: #{_lambda_.2} parent=115 // pred_check_branch
          %1323 = sbr.rel (%p1321) target = $region139
        $region138: #{_lambda_.2} parent=115 // pred_region
          %s1324 = smul.u32 4, %s20
          %s1325 = smul.addr %s1324, 8
          %s1326 = scalar_lea.vmem %s7, %s1325
          // Predicated region
          $region140: #{_lambda_.2} parent=138 // pred_check
            _
          $region141: #{_lambda_.2} parent=138 // pred_check_branch
            %1328 = sbr.rel (0) target = $region143
          $region142: #{_lambda_.2} parent=138 // pred_region
            // Predicated region
            $region144: #{_lambda_.2} parent=142 // pred_check
              _
            $region145: #{_lambda_.2} parent=142 // pred_check_branch
              %1330 = sbr.rel (0) target = $region147
            $region146: #{_lambda_.2} parent=142 // pred_region
              // Predicated region
              $region159: #{_lambda_.2} parent=146 // pred_check
                _
              $region160: #{_lambda_.2} parent=146 // pred_check_branch
                %1359 = sbr.rel (0) target = $region162
              $region161: #{_lambda_.2} parent=146 // pred_region
                loop: start=0, step=1, limit=1
                $region163: #{_lambda_.2} parent=161 // loop_pre_header
                  _
                $region164: #{_lambda_.2} parent=161 // loop_header
                  %s1361 = sphi 0, %s1365
                  %p1362 = scmp.ge.s32.totalorder %s1361, 1
                  %s1366 = sphi %s1316, %s1316
                  %s1367 = sphi %s1326, %s1326
                $region165: #{_lambda_.2} parent=161 // loop_header_branch
                  %1364 = sbr.rel (%p1362) target = $region169
                $region166: #{_lambda_.2} parent=161 // loop_body
                  %v1368 = vld [vmem:[%s1366] sm:$0xff]
                  %1369 = vst [vmem:[%s1367] sm:$0xff] %v1368
                  %v1370 = vld [vmem:[%s1366 + $0x8] sm:$0xff]
                  %1371 = vst [vmem:[%s1367 + $0x8] sm:$0xff] %v1370
                  %v1372 = vld [vmem:[%s1366 + $0x10] sm:$0xff]
                  %1373 = vst [vmem:[%s1367 + $0x10] sm:$0xff] %v1372
                  %v1374 = vld [vmem:[%s1366 + $0x18] sm:$0xff]
                  %1375 = vst [vmem:[%s1367 + $0x18] sm:$0xff] %v1374
                  %v1376 = vld [vmem:[%s1366 + $0x20] sm:$0xff]
                  %1377 = vst [vmem:[%s1367 + $0x60] sm:$0xff] %v1376
                  %v1378 = vld [vmem:[%s1366 + $0x28] sm:$0xff]
                  %1379 = vst [vmem:[%s1367 + $0x68] sm:$0xff] %v1378
                  %v1380 = vld [vmem:[%s1366 + $0x30] sm:$0xff]
                  %1381 = vst [vmem:[%s1367 + $0x70] sm:$0xff] %v1380
                  %v1382 = vld [vmem:[%s1366 + $0x38] sm:$0xff]
                  %1383 = vst [vmem:[%s1367 + $0x78] sm:$0xff] %v1382
                $region167: #{_lambda_.2} parent=161 // loop_footer
                  %s1365 = sadd.s32 1, %s1361
                $region168: #{_lambda_.2} parent=161 // loop_footer_branch
                  %1360 = sbr.rel target = $region164
                $region169: #{_lambda_.2} parent=161 // loop_exit
                  _
              $region162: #{_lambda_.2} parent=146 // pred_fallthru
                _
              // Predicated region
              $region170: #{_lambda_.2} parent=146 // pred_check
                _
              $region171: #{_lambda_.2} parent=146 // pred_check_branch
                %1385 = sbr.rel target = $region173
              $region172: #{_lambda_.2} parent=146 // pred_region
                _
              $region173: #{_lambda_.2} parent=146 // pred_fallthru
                _
            $region147: #{_lambda_.2} parent=142 // pred_fallthru
              _
            // Predicated region
            $region148: #{_lambda_.2} parent=142 // pred_check
              _
            $region149: #{_lambda_.2} parent=142 // pred_check_branch
              %1332 = sbr.rel target = $region151
            $region150: #{_lambda_.2} parent=142 // pred_region
              loop: start=0, step=1, limit=1
              $region152: #{_lambda_.2} parent=150 // loop_pre_header
                _
              $region153: #{_lambda_.2} parent=150 // loop_header
                %s1335 = sphi 0, %s1339
                %p1336 = scmp.ge.s32.totalorder %s1335, 1
                %s1340 = sphi %s1316, %s1316
                %s1341 = sphi %s1326, %s1326
              $region154: #{_lambda_.2} parent=150 // loop_header_branch
                %1338 = sbr.rel (%p1336) target = $region158
              $region155: #{_lambda_.2} parent=150 // loop_body
                %v1342 = vld [vmem:[%s1340] sm:$0xff]
                %1343 = vst [vmem:[%s1341] sm:$0xff] %v1342
                %v1344 = vld [vmem:[%s1340 + $0x8] sm:$0xff]
                %1345 = vst [vmem:[%s1341 + $0x8] sm:$0xff] %v1344
                %v1346 = vld [vmem:[%s1340 + $0x10] sm:$0xff]
                %1347 = vst [vmem:[%s1341 + $0x10] sm:$0xff] %v1346
                %v1348 = vld [vmem:[%s1340 + $0x18] sm:$0xff]
                %1349 = vst [vmem:[%s1341 + $0x18] sm:$0xff] %v1348
                %v1350 = vld [vmem:[%s1340 + $0x20] sm:$0xff]
                %1351 = vst [vmem:[%s1341 + $0x60] sm:$0xff] %v1350
                %v1352 = vld [vmem:[%s1340 + $0x28] sm:$0xff]
                %1353 = vst [vmem:[%s1341 + $0x68] sm:$0xff] %v1352
                %v1354 = vld [vmem:[%s1340 + $0x30] sm:$0xff]
                %1355 = vst [vmem:[%s1341 + $0x70] sm:$0xff] %v1354
                %v1356 = vld [vmem:[%s1340 + $0x38] sm:$0xff]
                %1357 = vst [vmem:[%s1341 + $0x78] sm:$0xff] %v1356
              $region156: #{_lambda_.2} parent=150 // loop_footer
                %s1339 = sadd.s32 1, %s1335
              $region157: #{_lambda_.2} parent=150 // loop_footer_branch
                %1334 = sbr.rel target = $region153
              $region158: #{_lambda_.2} parent=150 // loop_exit
                _
            $region151: #{_lambda_.2} parent=142 // pred_fallthru
              _
          $region143: #{_lambda_.2} parent=138 // pred_fallthru
            _
          %1386 = vnop
        $region139: #{_lambda_.2} parent=115 // pred_fallthru
          _
        // Predicated region
        $region174: #{_lambda_.2} parent=115 // pred_check
          %p1387 = pneg %p225
        $region175: #{_lambda_.2} parent=115 // pred_check_branch
          %1389 = sbr.rel (%p1387) target = $region177
        $region176: #{_lambda_.2} parent=115 // pred_region
          %s1390 = ssub.s32 2, %s20
          %s1391 = smul.u32 4, %s1390
          %s1392 = smul.addr %s1391, 8
          %s1393 = scalar_lea.vmem %s8, %s1392
          // Predicated region
          $region178: #{_lambda_.2} parent=176 // pred_check
            _
          $region179: #{_lambda_.2} parent=176 // pred_check_branch
            %1395 = sbr.rel (0) target = $region181
          $region180: #{_lambda_.2} parent=176 // pred_region
            // Predicated region
            $region182: #{_lambda_.2} parent=180 // pred_check
              _
            $region183: #{_lambda_.2} parent=180 // pred_check_branch
              %1397 = sbr.rel (0) target = $region185
            $region184: #{_lambda_.2} parent=180 // pred_region
              // Predicated region
              $region197: #{_lambda_.2} parent=184 // pred_check
                _
              $region198: #{_lambda_.2} parent=184 // pred_check_branch
                %1426 = sbr.rel (0) target = $region200
              $region199: #{_lambda_.2} parent=184 // pred_region
                loop: start=0, step=1, limit=1
                $region201: #{_lambda_.2} parent=199 // loop_pre_header
                  _
                $region202: #{_lambda_.2} parent=199 // loop_header
                  %s1428 = sphi 0, %s1432
                  %p1429 = scmp.ge.s32.totalorder %s1428, 1
                  %s1433 = sphi %s1320, %s1320
                  %s1434 = sphi %s1393, %s1393
                $region203: #{_lambda_.2} parent=199 // loop_header_branch
                  %1431 = sbr.rel (%p1429) target = $region207
                $region204: #{_lambda_.2} parent=199 // loop_body
                  %v1435 = vld [vmem:[%s1433] sm:$0xff]
                  %1436 = vst [vmem:[%s1434] sm:$0xff] %v1435
                  %v1437 = vld [vmem:[%s1433 + $0x8] sm:$0xff]
                  %1438 = vst [vmem:[%s1434 + $0x8] sm:$0xff] %v1437
                  %v1439 = vld [vmem:[%s1433 + $0x10] sm:$0xff]
                  %1440 = vst [vmem:[%s1434 + $0x10] sm:$0xff] %v1439
                  %v1441 = vld [vmem:[%s1433 + $0x18] sm:$0xff]
                  %1442 = vst [vmem:[%s1434 + $0x18] sm:$0xff] %v1441
                  %v1443 = vld [vmem:[%s1433 + $0x20] sm:$0xff]
                  %1444 = vst [vmem:[%s1434 + $0x60] sm:$0xff] %v1443
                  %v1445 = vld [vmem:[%s1433 + $0x28] sm:$0xff]
                  %1446 = vst [vmem:[%s1434 + $0x68] sm:$0xff] %v1445
                  %v1447 = vld [vmem:[%s1433 + $0x30] sm:$0xff]
                  %1448 = vst [vmem:[%s1434 + $0x70] sm:$0xff] %v1447
                  %v1449 = vld [vmem:[%s1433 + $0x38] sm:$0xff]
                  %1450 = vst [vmem:[%s1434 + $0x78] sm:$0xff] %v1449
                $region205: #{_lambda_.2} parent=199 // loop_footer
                  %s1432 = sadd.s32 1, %s1428
                $region206: #{_lambda_.2} parent=199 // loop_footer_branch
                  %1427 = sbr.rel target = $region202
                $region207: #{_lambda_.2} parent=199 // loop_exit
                  _
              $region200: #{_lambda_.2} parent=184 // pred_fallthru
                _
              // Predicated region
              $region208: #{_lambda_.2} parent=184 // pred_check
                _
              $region209: #{_lambda_.2} parent=184 // pred_check_branch
                %1452 = sbr.rel target = $region211
              $region210: #{_lambda_.2} parent=184 // pred_region
                _
              $region211: #{_lambda_.2} parent=184 // pred_fallthru
                _
            $region185: #{_lambda_.2} parent=180 // pred_fallthru
              _
            // Predicated region
            $region186: #{_lambda_.2} parent=180 // pred_check
              _
            $region187: #{_lambda_.2} parent=180 // pred_check_branch
              %1399 = sbr.rel target = $region189
            $region188: #{_lambda_.2} parent=180 // pred_region
              loop: start=0, step=1, limit=1
              $region190: #{_lambda_.2} parent=188 // loop_pre_header
                _
              $region191: #{_lambda_.2} parent=188 // loop_header
                %s1402 = sphi 0, %s1406
                %p1403 = scmp.ge.s32.totalorder %s1402, 1
                %s1407 = sphi %s1320, %s1320
                %s1408 = sphi %s1393, %s1393
              $region192: #{_lambda_.2} parent=188 // loop_header_branch
                %1405 = sbr.rel (%p1403) target = $region196
              $region193: #{_lambda_.2} parent=188 // loop_body
                %v1409 = vld [vmem:[%s1407] sm:$0xff]
                %1410 = vst [vmem:[%s1408] sm:$0xff] %v1409
                %v1411 = vld [vmem:[%s1407 + $0x8] sm:$0xff]
                %1412 = vst [vmem:[%s1408 + $0x8] sm:$0xff] %v1411
                %v1413 = vld [vmem:[%s1407 + $0x10] sm:$0xff]
                %1414 = vst [vmem:[%s1408 + $0x10] sm:$0xff] %v1413
                %v1415 = vld [vmem:[%s1407 + $0x18] sm:$0xff]
                %1416 = vst [vmem:[%s1408 + $0x18] sm:$0xff] %v1415
                %v1417 = vld [vmem:[%s1407 + $0x20] sm:$0xff]
                %1418 = vst [vmem:[%s1408 + $0x60] sm:$0xff] %v1417
                %v1419 = vld [vmem:[%s1407 + $0x28] sm:$0xff]
                %1420 = vst [vmem:[%s1408 + $0x68] sm:$0xff] %v1419
                %v1421 = vld [vmem:[%s1407 + $0x30] sm:$0xff]
                %1422 = vst [vmem:[%s1408 + $0x70] sm:$0xff] %v1421
                %v1423 = vld [vmem:[%s1407 + $0x38] sm:$0xff]
                %1424 = vst [vmem:[%s1408 + $0x78] sm:$0xff] %v1423
              $region194: #{_lambda_.2} parent=188 // loop_footer
                %s1406 = sadd.s32 1, %s1402
              $region195: #{_lambda_.2} parent=188 // loop_footer_branch
                %1401 = sbr.rel target = $region191
              $region196: #{_lambda_.2} parent=188 // loop_exit
                _
            $region189: #{_lambda_.2} parent=180 // pred_fallthru
              _
          $region181: #{_lambda_.2} parent=176 // pred_fallthru
            _
          %1453 = vnop
        $region177: #{_lambda_.2} parent=115 // pred_fallthru
          _
      $region116: #{_lambda_.2} parent=5 // pred_fallthru
        _
      %p1454 = scmp.le.s32.totalorder 2, %s15
      // Predicated region
      $region212: #{_lambda_.2} parent=5 // pred_check
        %p1455 = pneg %p1454
      $region213: #{_lambda_.2} parent=5 // pred_check_branch
        %1457 = sbr.rel (%p1455) target = $region215
      $region214: #{_lambda_.2} parent=5 // pred_region
        %s1458 = ssub.s32 %s15, 2
        // Predicated region
        $region216: #{_lambda_.2} parent=214 // pred_check
          %p1459 = pneg %p203
        $region217: #{_lambda_.2} parent=214 // pred_check_branch
          %1461 = sbr.rel (%p1459) target = $region219
        $region218: #{_lambda_.2} parent=214 // pred_region
          %s1462 = sand.u32 %s188, 1
          %s1463 = sand.u32 %s188, 1
          %s1464 = smul.addr %s1463, 64
          %s1465 = scalar_lea.vmem [#allocation8], %s1464
        $region219: #{_lambda_.2} parent=214 // pred_fallthru
          _
        // Predicated region
        $region220: #{_lambda_.2} parent=214 // pred_check
          %p1466 = pneg %p231
        $region221: #{_lambda_.2} parent=214 // pred_check_branch
          %1468 = sbr.rel (%p1466) target = $region223
        $region222: #{_lambda_.2} parent=214 // pred_region
          %s1469 = sand.u32 %s216, 1
          %s1470 = sand.u32 %s216, 1
          %s1471 = smul.addr %s1470, 64
          %s1472 = scalar_lea.vmem [#allocation9], %s1471
        $region223: #{_lambda_.2} parent=214 // pred_fallthru
          _
      $region215: #{_lambda_.2} parent=5 // pred_fallthru
        _
    $region6: #{_lambda_.2} parent=1 // loop_footer
      %s19 = sadd.s32 1, %s15
    $region7: #{_lambda_.2} parent=1 // loop_footer_branch
      %14 = sbr.rel target = $region3
    $region8: #{_lambda_.2} parent=1 // loop_exit
      _

// kernel: _lambda_.3
$region0: #{_lambda_.3}
  #allocation0 [shape = 'u32[]', space=smem, size = 0x4, offset = 0x4, fixed_abs, tag = 'smem constant byte address 0x4 - core index']
  #allocation1 [shape = 'u32[144,128]{1,0:T(1,128)}', space=vmem, size = 0x12000, scoped, tag = 'internal scratch']
  #allocation2 [shape = 'f32[2,32,96]{2,1,0:T(8,128)}', space=vmem, size = 0x8000, scoped, tag = 'scratch operand']
  #allocation3 [shape = 'f32[2,32,96]{2,1,0:T(8,128)}', space=vmem, size = 0x8000, scoped, tag = 'scratch operand']
  #allocation4 [shape = 'f32[2,32]{1,0:T(2,128)}', space=vmem, size = 0x400, scoped, tag = 'scratch operand']
  #allocation5 [shape = 'f32[2,32]{1,0:T(2,128)}', space=vmem, size = 0x400, scoped, tag = 'scratch operand']
  %s0 = inlined_call_operand.vmem [shape: f32[2,96,32], index: 0, kind: input, shape index: {}, may-alias: {0,2}]
  %s1 = inlined_call_operand.vmem [shape: f32[2,96,32], index: 1, kind: input, shape index: {}, may-alias: {1,3}]
  %s2 = inlined_call_operand.vmem [shape: f32[2,96,32], index: 2, kind: input, shape index: {}, may-alias: {0,2}]
  %s3 = inlined_call_operand.vmem [shape: f32[2,96,32], index: 3, kind: input, shape index: {}, may-alias: {1,3}]
  %s4 = inlined_call_operand.vmem [shape: f32[32,96], index: 4, kind: input, shape index: {}]
  %s5 = inlined_call_operand.vmem [shape: f32[32,96], index: 5, kind: input, shape index: {}]
  %s6 = inlined_call_operand.vmem [shape: f32[32,96], index: 6, kind: input, shape index: {}]
  %s7 = inlined_call_operand.vmem [shape: f32[32,96], index: 7, kind: input, shape index: {}]
  %s8 = inlined_call_operand.vmem [shape: f32[32,96], index: 8, kind: input, shape index: {}]
  %s9 = inlined_call_operand.vmem [shape: f32[32,96], index: 9, kind: input, shape index: {}]
  %s10 = inlined_call_operand.vmem [shape: f32[4,96], index: 10, kind: input, shape index: {}]
  %s11 = inlined_call_operand.vmem [shape: f32[2,96,32], index: 11, kind: output, shape index: {0}]
  %s12 = inlined_call_operand.vmem [shape: f32[2,96,32], index: 12, kind: output, shape index: {1}]
  %13 = xla_tuple %s11, %s12
  %s14 = sld [smem:[#allocation0]]
  $region316: #{_lambda_.3} parent=0
    _
  %s16 = ssub.s32 1, %s14
  %s17 = scalar_select 0, %s16, %s14
  $region1: #{_lambda_.3} parent=0
    #allocation6 [shape = 'u8[65536]{0}', space=vmem, size = 0x10000, scoped, tag = 'input window, operand 0']
    #allocation7 [shape = 'u8[65536]{0}', space=vmem, size = 0x10000, scoped, tag = 'input window, operand 1']
    #allocation8 [shape = 'u8[65536]{0}', space=vmem, size = 0x10000, scoped, tag = 'input window, operand 2']
    #allocation9 [shape = 'u8[65536]{0}', space=vmem, size = 0x10000, scoped, tag = 'input window, operand 3']
    #allocation10 [shape = 'u8[65536]{0}', space=vmem, size = 0x10000, scoped, tag = 'output window, operand 0']
    #allocation11 [shape = 'u8[65536]{0}', space=vmem, size = 0x10000, scoped, tag = 'output window, operand 1']
    loop: start=0, step=1, limit=5
    $region2: #{_lambda_.3} parent=1 // loop_pre_header
      _
    $region3: #{_lambda_.3} parent=1 // loop_header
      %s19 = sphi 0, %s23
      %p20 = scmp.ge.s32.totalorder %s19, 5
      %s29 = sphi 0, %s31
      %s32 = sphi 0, %s29
      %s33 = sphi 0, %s32
      %s49 = sphi 0, %s33
      %s55 = sphi 0, %s57
      %s58 = sphi 0, %s55
      %s59 = sphi 0, %s58
      %s75 = sphi 0, %s59
      %s83 = sphi 0, %s85
      %s86 = sphi 0, %s83
      %s87 = sphi 0, %s86
      %s103 = sphi 0, %s87
      %s111 = sphi 0, %s113
      %s114 = sphi 0, %s111
      %s115 = sphi 0, %s114
      %s131 = sphi 0, %s115
      %s135 = sphi 0, %s135
      %s137 = sphi 0, %s135
      %s138 = sphi 0, %s137
      %s152 = sphi 0, %s138
      %s156 = sphi 0, %s156
      %s158 = sphi 0, %s156
      %s159 = sphi 0, %s158
      %s173 = sphi 0, %s159
      %s177 = sphi 0, %s177
      %s179 = sphi 0, %s177
      %s180 = sphi 0, %s179
      %s194 = sphi 0, %s180
      %s198 = sphi 0, %s198
      %s200 = sphi 0, %s198
      %s201 = sphi 0, %s200
      %s215 = sphi 0, %s201
      %s219 = sphi 0, %s219
      %s221 = sphi 0, %s219
      %s222 = sphi 0, %s221
      %s236 = sphi 0, %s222
      %s240 = sphi 0, %s240
      %s242 = sphi 0, %s240
      %s243 = sphi 0, %s242
      %s257 = sphi 0, %s243
      %s261 = sphi 0, %s261
      %s263 = sphi 0, %s261
      %s264 = sphi 0, %s263
      %s278 = sphi 0, %s264
      %s284 = sphi 0, %s286
      %s287 = sphi 0, %s284
      %s288 = sphi 0, %s287
      %s304 = sphi 0, %s288
      %s312 = sphi 0, %s314
      %s315 = sphi 0, %s312
      %s316 = sphi 0, %s315
      %s332 = sphi 0, %s316
    $region4: #{_lambda_.3} parent=1 // loop_header_branch
      %22 = sbr.rel (%p20) target = $region8
    $region5: #{_lambda_.3} parent=1 // loop_body
      %s24 = ssub.s32 %s19, 1
      %s25 = ssub.s32 %s19, 2
      %s26 = sadd.s32 %s19, 1
      %s27 = ssub.s32 %s19, %s26
      %p28 = scmp.eq.s32.totalorder %s27, 0
      %s30 = sadd.s32 %s29, 1
      %s31 = scalar_select %p28, %s29, %s30
      %p34 = pneg %p28
      %p35 = scmp.eq.s32.totalorder %s19, 2
      %p36 = por %p34, %p35
      %p37 = scmp.ne.s32.totalorder %s29, %s32
      %p38 = scmp.eq.s32.totalorder %s19, 0
      %p39 = por %p37, %p38
      %p40 = scmp.ne.s32.totalorder %s29, %s32
      %p41 = scmp.eq.s32.totalorder %s24, 2
      %p42 = por %p40, %p41
      %p43 = scmp.ne.s32.totalorder %s32, %s33
      %p44 = scmp.eq.s32.totalorder %s24, 0
      %p45 = por %p43, %p44
      %p46 = scmp.ne.s32.totalorder %s32, %s33
      %p47 = scmp.eq.s32.totalorder %s25, 2
      %p48 = por %p46, %p47
      %p50 = scmp.ne.s32.totalorder %s33, %s49
      %p51 = scmp.eq.s32.totalorder %s25, 0
      %p52 = por %p50, %p51
      %s53 = ssub.s32 %s19, %s26
      %p54 = scmp.eq.s32.totalorder %s53, 0
      %s56 = sadd.s32 %s55, 1
      %s57 = scalar_select %p54, %s55, %s56
      %p60 = pneg %p54
      %p61 = scmp.eq.s32.totalorder %s19, 2
      %p62 = por %p60, %p61
      %p63 = scmp.ne.s32.totalorder %s55, %s58
      %p64 = scmp.eq.s32.totalorder %s19, 0
      %p65 = por %p63, %p64
      %p66 = scmp.ne.s32.totalorder %s55, %s58
      %p67 = scmp.eq.s32.totalorder %s24, 2
      %p68 = por %p66, %p67
      %p69 = scmp.ne.s32.totalorder %s58, %s59
      %p70 = scmp.eq.s32.totalorder %s24, 0
      %p71 = por %p69, %p70
      %p72 = scmp.ne.s32.totalorder %s58, %s59
      %p73 = scmp.eq.s32.totalorder %s25, 2
      %p74 = por %p72, %p73
      %p76 = scmp.ne.s32.totalorder %s59, %s75
      %p77 = scmp.eq.s32.totalorder %s25, 0
      %p78 = por %p76, %p77
      %s79 = ssub.s32 2, %s19
      %s80 = ssub.s32 2, %s26
      %s81 = ssub.s32 %s79, %s80
      %p82 = scmp.eq.s32.totalorder %s81, 0
      %s84 = sadd.s32 %s83, 1
      %s85 = scalar_select %p82, %s83, %s84
      %p88 = pneg %p82
      %p89 = scmp.eq.s32.totalorder %s19, 2
      %p90 = por %p88, %p89
      %p91 = scmp.ne.s32.totalorder %s83, %s86
      %p92 = scmp.eq.s32.totalorder %s19, 0
      %p93 = por %p91, %p92
      %p94 = scmp.ne.s32.totalorder %s83, %s86
      %p95 = scmp.eq.s32.totalorder %s24, 2
      %p96 = por %p94, %p95
      %p97 = scmp.ne.s32.totalorder %s86, %s87
      %p98 = scmp.eq.s32.totalorder %s24, 0
      %p99 = por %p97, %p98
      %p100 = scmp.ne.s32.totalorder %s86, %s87
      %p101 = scmp.eq.s32.totalorder %s25, 2
      %p102 = por %p100, %p101
      %p104 = scmp.ne.s32.totalorder %s87, %s103
      %p105 = scmp.eq.s32.totalorder %s25, 0
      %p106 = por %p104, %p105
      %s107 = ssub.s32 2, %s19
      %s108 = ssub.s32 2, %s26
      %s109 = ssub.s32 %s107, %s108
      %p110 = scmp.eq.s32.totalorder %s109, 0
      %s112 = sadd.s32 %s111, 1
      %s113 = scalar_select %p110, %s111, %s112
      %p116 = pneg %p110
      %p117 = scmp.eq.s32.totalorder %s19, 2
      %p118 = por %p116, %p117
      %p119 = scmp.ne.s32.totalorder %s111, %s114
      %p120 = scmp.eq.s32.totalorder %s19, 0
      %p121 = por %p119, %p120
      %p122 = scmp.ne.s32.totalorder %s111, %s114
      %p123 = scmp.eq.s32.totalorder %s24, 2
      %p124 = por %p122, %p123
      %p125 = scmp.ne.s32.totalorder %s114, %s115
      %p126 = scmp.eq.s32.totalorder %s24, 0
      %p127 = por %p125, %p126
      %p128 = scmp.ne.s32.totalorder %s114, %s115
      %p129 = scmp.eq.s32.totalorder %s25, 2
      %p130 = por %p128, %p129
      %p132 = scmp.ne.s32.totalorder %s115, %s131
      %p133 = scmp.eq.s32.totalorder %s25, 0
      %p134 = por %p132, %p133
      %s136 = sadd.s32 %s135, 1
      %p139 = scmp.eq.s32.totalorder %s19, 2
      %p140 = scmp.ne.s32.totalorder %s135, %s137
      %p141 = scmp.eq.s32.totalorder %s19, 0
      %p142 = por %p140, %p141
      %p143 = scmp.ne.s32.totalorder %s135, %s137
      %p144 = scmp.eq.s32.totalorder %s24, 2
      %p145 = por %p143, %p144
      %p146 = scmp.ne.s32.totalorder %s137, %s138
      %p147 = scmp.eq.s32.totalorder %s24, 0
      %p148 = por %p146, %p147
      %p149 = scmp.ne.s32.totalorder %s137, %s138
      %p150 = scmp.eq.s32.totalorder %s25, 2
      %p151 = por %p149, %p150
      %p153 = scmp.ne.s32.totalorder %s138, %s152
      %p154 = scmp.eq.s32.totalorder %s25, 0
      %p155 = por %p153, %p154
      %s157 = sadd.s32 %s156, 1
      %p160 = scmp.eq.s32.totalorder %s19, 2
      %p161 = scmp.ne.s32.totalorder %s156, %s158
      %p162 = scmp.eq.s32.totalorder %s19, 0
      %p163 = por %p161, %p162
      %p164 = scmp.ne.s32.totalorder %s156, %s158
      %p165 = scmp.eq.s32.totalorder %s24, 2
      %p166 = por %p164, %p165
      %p167 = scmp.ne.s32.totalorder %s158, %s159
      %p168 = scmp.eq.s32.totalorder %s24, 0
      %p169 = por %p167, %p168
      %p170 = scmp.ne.s32.totalorder %s158, %s159
      %p171 = scmp.eq.s32.totalorder %s25, 2
      %p172 = por %p170, %p171
      %p174 = scmp.ne.s32.totalorder %s159, %s173
      %p175 = scmp.eq.s32.totalorder %s25, 0
      %p176 = por %p174, %p175
      %s178 = sadd.s32 %s177, 1
      %p181 = scmp.eq.s32.totalorder %s19, 2
      %p182 = scmp.ne.s32.totalorder %s177, %s179
      %p183 = scmp.eq.s32.totalorder %s19, 0
      %p184 = por %p182, %p183
      %p185 = scmp.ne.s32.totalorder %s177, %s179
      %p186 = scmp.eq.s32.totalorder %s24, 2
      %p187 = por %p185, %p186
      %p188 = scmp.ne.s32.totalorder %s179, %s180
      %p189 = scmp.eq.s32.totalorder %s24, 0
      %p190 = por %p188, %p189
      %p191 = scmp.ne.s32.totalorder %s179, %s180
      %p192 = scmp.eq.s32.totalorder %s25, 2
      %p193 = por %p191, %p192
      %p195 = scmp.ne.s32.totalorder %s180, %s194
      %p196 = scmp.eq.s32.totalorder %s25, 0
      %p197 = por %p195, %p196
      %s199 = sadd.s32 %s198, 1
      %p202 = scmp.eq.s32.totalorder %s19, 2
      %p203 = scmp.ne.s32.totalorder %s198, %s200
      %p204 = scmp.eq.s32.totalorder %s19, 0
      %p205 = por %p203, %p204
      %p206 = scmp.ne.s32.totalorder %s198, %s200
      %p207 = scmp.eq.s32.totalorder %s24, 2
      %p208 = por %p206, %p207
      %p209 = scmp.ne.s32.totalorder %s200, %s201
      %p210 = scmp.eq.s32.totalorder %s24, 0
      %p211 = por %p209, %p210
      %p212 = scmp.ne.s32.totalorder %s200, %s201
      %p213 = scmp.eq.s32.totalorder %s25, 2
      %p214 = por %p212, %p213
      %p216 = scmp.ne.s32.totalorder %s201, %s215
      %p217 = scmp.eq.s32.totalorder %s25, 0
      %p218 = por %p216, %p217
      %s220 = sadd.s32 %s219, 1
      %p223 = scmp.eq.s32.totalorder %s19, 2
      %p224 = scmp.ne.s32.totalorder %s219, %s221
      %p225 = scmp.eq.s32.totalorder %s19, 0
      %p226 = por %p224, %p225
      %p227 = scmp.ne.s32.totalorder %s219, %s221
      %p228 = scmp.eq.s32.totalorder %s24, 2
      %p229 = por %p227, %p228
      %p230 = scmp.ne.s32.totalorder %s221, %s222
      %p231 = scmp.eq.s32.totalorder %s24, 0
      %p232 = por %p230, %p231
      %p233 = scmp.ne.s32.totalorder %s221, %s222
      %p234 = scmp.eq.s32.totalorder %s25, 2
      %p235 = por %p233, %p234
      %p237 = scmp.ne.s32.totalorder %s222, %s236
      %p238 = scmp.eq.s32.totalorder %s25, 0
      %p239 = por %p237, %p238
      %s241 = sadd.s32 %s240, 1
      %p244 = scmp.eq.s32.totalorder %s19, 2
      %p245 = scmp.ne.s32.totalorder %s240, %s242
      %p246 = scmp.eq.s32.totalorder %s19, 0
      %p247 = por %p245, %p246
      %p248 = scmp.ne.s32.totalorder %s240, %s242
      %p249 = scmp.eq.s32.totalorder %s24, 2
      %p250 = por %p248, %p249
      %p251 = scmp.ne.s32.totalorder %s242, %s243
      %p252 = scmp.eq.s32.totalorder %s24, 0
      %p253 = por %p251, %p252
      %p254 = scmp.ne.s32.totalorder %s242, %s243
      %p255 = scmp.eq.s32.totalorder %s25, 2
      %p256 = por %p254, %p255
      %p258 = scmp.ne.s32.totalorder %s243, %s257
      %p259 = scmp.eq.s32.totalorder %s25, 0
      %p260 = por %p258, %p259
      %s262 = sadd.s32 %s261, 1
      %p265 = scmp.eq.s32.totalorder %s19, 2
      %p266 = scmp.ne.s32.totalorder %s261, %s263
      %p267 = scmp.eq.s32.totalorder %s19, 0
      %p268 = por %p266, %p267
      %p269 = scmp.ne.s32.totalorder %s261, %s263
      %p270 = scmp.eq.s32.totalorder %s24, 2
      %p271 = por %p269, %p270
      %p272 = scmp.ne.s32.totalorder %s263, %s264
      %p273 = scmp.eq.s32.totalorder %s24, 0
      %p274 = por %p272, %p273
      %p275 = scmp.ne.s32.totalorder %s263, %s264
      %p276 = scmp.eq.s32.totalorder %s25, 2
      %p277 = por %p275, %p276
      %p279 = scmp.ne.s32.totalorder %s264, %s278
      %p280 = scmp.eq.s32.totalorder %s25, 0
      %p281 = por %p279, %p280
      %s282 = ssub.s32 %s19, %s26
      %p283 = scmp.eq.s32.totalorder %s282, 0
      %s285 = sadd.s32 %s284, 1
      %s286 = scalar_select %p283, %s284, %s285
      %p289 = pneg %p283
      %p290 = scmp.eq.s32.totalorder %s19, 2
      %p291 = por %p289, %p290
      %p292 = scmp.ne.s32.totalorder %s284, %s287
      %p293 = scmp.eq.s32.totalorder %s19, 0
      %p294 = por %p292, %p293
      %p295 = scmp.ne.s32.totalorder %s284, %s287
      %p296 = scmp.eq.s32.totalorder %s24, 2
      %p297 = por %p295, %p296
      %p298 = scmp.ne.s32.totalorder %s287, %s288
      %p299 = scmp.eq.s32.totalorder %s24, 0
      %p300 = por %p298, %p299
      %p301 = scmp.ne.s32.totalorder %s287, %s288
      %p302 = scmp.eq.s32.totalorder %s25, 2
      %p303 = por %p301, %p302
      %p305 = scmp.ne.s32.totalorder %s288, %s304
      %p306 = scmp.eq.s32.totalorder %s25, 0
      %p307 = por %p305, %p306
      %s308 = ssub.s32 2, %s19
      %s309 = ssub.s32 2, %s26
      %s310 = ssub.s32 %s308, %s309
      %p311 = scmp.eq.s32.totalorder %s310, 0
      %s313 = sadd.s32 %s312, 1
      %s314 = scalar_select %p311, %s312, %s313
      %p317 = pneg %p311
      %p318 = scmp.eq.s32.totalorder %s19, 2
      %p319 = por %p317, %p318
      %p320 = scmp.ne.s32.totalorder %s312, %s315
      %p321 = scmp.eq.s32.totalorder %s19, 0
      %p322 = por %p320, %p321
      %p323 = scmp.ne.s32.totalorder %s312, %s315
      %p324 = scmp.eq.s32.totalorder %s24, 2
      %p325 = por %p323, %p324
      %p326 = scmp.ne.s32.totalorder %s315, %s316
      %p327 = scmp.eq.s32.totalorder %s24, 0
      %p328 = por %p326, %p327
      %p329 = scmp.ne.s32.totalorder %s315, %s316
      %p330 = scmp.eq.s32.totalorder %s25, 2
      %p331 = por %p329, %p330
      %p333 = scmp.ne.s32.totalorder %s316, %s332
      %p334 = scmp.eq.s32.totalorder %s25, 0
      %p335 = por %p333, %p334
      %p336 = scmp.le.s32.totalorder 1, %s19
      %p337 = scmp.lt.s32.totalorder %s19, 4
      %p338 = pnand %p336, %p337
      %p339 = pneg %p338
      // Predicated region
      $region9: #{_lambda_.3} parent=5 // pred_check
        _
      $region10: #{_lambda_.3} parent=5 // pred_check_branch
        %341 = sbr.rel (%p338) target = $region12
      $region11: #{_lambda_.3} parent=5 // pred_region
        %s342 = ssub.s32 %s19, 1
        // Predicated region
        $region13: #{_lambda_.3} parent=11 // pred_check
          %p343 = pneg %p148
        $region14: #{_lambda_.3} parent=11 // pred_check_branch
          %345 = sbr.rel (%p343) target = $region16
        $region15: #{_lambda_.3} parent=11 // pred_region
          _
        $region16: #{_lambda_.3} parent=11 // pred_fallthru
          _
        // Predicated region
        $region17: #{_lambda_.3} parent=11 // pred_check
          %p346 = pneg %p169
        $region18: #{_lambda_.3} parent=11 // pred_check_branch
          %348 = sbr.rel (%p346) target = $region20
        $region19: #{_lambda_.3} parent=11 // pred_region
          _
        $region20: #{_lambda_.3} parent=11 // pred_fallthru
          _
        // Predicated region
        $region21: #{_lambda_.3} parent=11 // pred_check
          %p349 = pneg %p190
        $region22: #{_lambda_.3} parent=11 // pred_check_branch
          %351 = sbr.rel (%p349) target = $region24
        $region23: #{_lambda_.3} parent=11 // pred_region
          _
        $region24: #{_lambda_.3} parent=11 // pred_fallthru
          _
        // Predicated region
        $region25: #{_lambda_.3} parent=11 // pred_check
          %p352 = pneg %p211
        $region26: #{_lambda_.3} parent=11 // pred_check_branch
          %354 = sbr.rel (%p352) target = $region28
        $region27: #{_lambda_.3} parent=11 // pred_region
          _
        $region28: #{_lambda_.3} parent=11 // pred_fallthru
          _
        // Predicated region
        $region29: #{_lambda_.3} parent=11 // pred_check
          %p355 = pneg %p232
        $region30: #{_lambda_.3} parent=11 // pred_check_branch
          %357 = sbr.rel (%p355) target = $region32
        $region31: #{_lambda_.3} parent=11 // pred_region
          _
        $region32: #{_lambda_.3} parent=11 // pred_fallthru
          _
        // Predicated region
        $region33: #{_lambda_.3} parent=11 // pred_check
          %p358 = pneg %p253
        $region34: #{_lambda_.3} parent=11 // pred_check_branch
          %360 = sbr.rel (%p358) target = $region36
        $region35: #{_lambda_.3} parent=11 // pred_region
          _
        $region36: #{_lambda_.3} parent=11 // pred_fallthru
          _
        // Predicated region
        $region37: #{_lambda_.3} parent=11 // pred_check
          %p361 = pneg %p274
        $region38: #{_lambda_.3} parent=11 // pred_check_branch
          %363 = sbr.rel (%p361) target = $region40
        $region39: #{_lambda_.3} parent=11 // pred_region
          _
        $region40: #{_lambda_.3} parent=11 // pred_fallthru
          _
      $region12: #{_lambda_.3} parent=5 // pred_fallthru
        _
      %p364 = scmp.lt.s32.totalorder %s19, 3
      // Predicated region
      $region41: #{_lambda_.3} parent=5 // pred_check
        %p365 = pneg %p364
      $region42: #{_lambda_.3} parent=5 // pred_check_branch
        %367 = sbr.rel (%p365) target = $region44
      $region43: #{_lambda_.3} parent=5 // pred_region
        // Predicated region
        $region45: #{_lambda_.3} parent=43 // pred_check
          %p368 = pneg %p39
        $region46: #{_lambda_.3} parent=43 // pred_check_branch
          %370 = sbr.rel (%p368) target = $region48
        $region47: #{_lambda_.3} parent=43 // pred_region
          %s371 = sand.u32 %s29, 1
          %s372 = sand.u32 %s29, 1
          %s373 = smul.addr %s372, 64
          %s374 = scalar_lea.vmem [#allocation6], %s373
          %s375 = smul.u32 4, %s19
          %s376 = smul.addr %s375, 8
          %s377 = scalar_lea.vmem %s0, %s376
          // Predicated region
          $region49: #{_lambda_.3} parent=47 // pred_check
            _
          $region50: #{_lambda_.3} parent=47 // pred_check_branch
            %379 = sbr.rel (0) target = $region52
          $region51: #{_lambda_.3} parent=47 // pred_region
            // Predicated region
            $region53: #{_lambda_.3} parent=51 // pred_check
              _
            $region54: #{_lambda_.3} parent=51 // pred_check_branch
              %381 = sbr.rel (0) target = $region56
            $region55: #{_lambda_.3} parent=51 // pred_region
              // Predicated region
              $region68: #{_lambda_.3} parent=55 // pred_check
                _
              $region69: #{_lambda_.3} parent=55 // pred_check_branch
                %410 = sbr.rel (0) target = $region71
              $region70: #{_lambda_.3} parent=55 // pred_region
                loop: start=0, step=1, limit=1
                $region72: #{_lambda_.3} parent=70 // loop_pre_header
                  _
                $region73: #{_lambda_.3} parent=70 // loop_header
                  %s412 = sphi 0, %s416
                  %p413 = scmp.ge.s32.totalorder %s412, 1
                  %s417 = sphi %s377, %s377
                  %s418 = sphi %s374, %s374
                $region74: #{_lambda_.3} parent=70 // loop_header_branch
                  %415 = sbr.rel (%p413) target = $region78
                $region75: #{_lambda_.3} parent=70 // loop_body
                  %v419 = vld [vmem:[%s417] sm:$0xff]
                  %420 = vst [vmem:[%s418] sm:$0xff] %v419
                  %v421 = vld [vmem:[%s417 + $0x8] sm:$0xff]
                  %422 = vst [vmem:[%s418 + $0x8] sm:$0xff] %v421
                  %v423 = vld [vmem:[%s417 + $0x10] sm:$0xff]
                  %424 = vst [vmem:[%s418 + $0x10] sm:$0xff] %v423
                  %v425 = vld [vmem:[%s417 + $0x18] sm:$0xff]
                  %426 = vst [vmem:[%s418 + $0x18] sm:$0xff] %v425
                  %v427 = vld [vmem:[%s417 + $0x60] sm:$0xff]
                  %428 = vst [vmem:[%s418 + $0x20] sm:$0xff] %v427
                  %v429 = vld [vmem:[%s417 + $0x68] sm:$0xff]
                  %430 = vst [vmem:[%s418 + $0x28] sm:$0xff] %v429
                  %v431 = vld [vmem:[%s417 + $0x70] sm:$0xff]
                  %432 = vst [vmem:[%s418 + $0x30] sm:$0xff] %v431
                  %v433 = vld [vmem:[%s417 + $0x78] sm:$0xff]
                  %434 = vst [vmem:[%s418 + $0x38] sm:$0xff] %v433
                $region76: #{_lambda_.3} parent=70 // loop_footer
                  %s416 = sadd.s32 1, %s412
                $region77: #{_lambda_.3} parent=70 // loop_footer_branch
                  %411 = sbr.rel target = $region73
                $region78: #{_lambda_.3} parent=70 // loop_exit
                  _
              $region71: #{_lambda_.3} parent=55 // pred_fallthru
                _
              // Predicated region
              $region79: #{_lambda_.3} parent=55 // pred_check
                _
              $region80: #{_lambda_.3} parent=55 // pred_check_branch
                %436 = sbr.rel target = $region82
              $region81: #{_lambda_.3} parent=55 // pred_region
                _
              $region82: #{_lambda_.3} parent=55 // pred_fallthru
                _
            $region56: #{_lambda_.3} parent=51 // pred_fallthru
              _
            // Predicated region
            $region57: #{_lambda_.3} parent=51 // pred_check
              _
            $region58: #{_lambda_.3} parent=51 // pred_check_branch
              %383 = sbr.rel target = $region60
            $region59: #{_lambda_.3} parent=51 // pred_region
              loop: start=0, step=1, limit=1
              $region61: #{_lambda_.3} parent=59 // loop_pre_header
                _
              $region62: #{_lambda_.3} parent=59 // loop_header
                %s386 = sphi 0, %s390
                %p387 = scmp.ge.s32.totalorder %s386, 1
                %s391 = sphi %s377, %s377
                %s392 = sphi %s374, %s374
              $region63: #{_lambda_.3} parent=59 // loop_header_branch
                %389 = sbr.rel (%p387) target = $region67
              $region64: #{_lambda_.3} parent=59 // loop_body
                %v393 = vld [vmem:[%s391] sm:$0xff]
                %394 = vst [vmem:[%s392] sm:$0xff] %v393
                %v395 = vld [vmem:[%s391 + $0x8] sm:$0xff]
                %396 = vst [vmem:[%s392 + $0x8] sm:$0xff] %v395
                %v397 = vld [vmem:[%s391 + $0x10] sm:$0xff]
                %398 = vst [vmem:[%s392 + $0x10] sm:$0xff] %v397
                %v399 = vld [vmem:[%s391 + $0x18] sm:$0xff]
                %400 = vst [vmem:[%s392 + $0x18] sm:$0xff] %v399
                %v401 = vld [vmem:[%s391 + $0x60] sm:$0xff]
                %402 = vst [vmem:[%s392 + $0x20] sm:$0xff] %v401
                %v403 = vld [vmem:[%s391 + $0x68] sm:$0xff]
                %404 = vst [vmem:[%s392 + $0x28] sm:$0xff] %v403
                %v405 = vld [vmem:[%s391 + $0x70] sm:$0xff]
                %406 = vst [vmem:[%s392 + $0x30] sm:$0xff] %v405
                %v407 = vld [vmem:[%s391 + $0x78] sm:$0xff]
                %408 = vst [vmem:[%s392 + $0x38] sm:$0xff] %v407
              $region65: #{_lambda_.3} parent=59 // loop_footer
                %s390 = sadd.s32 1, %s386
              $region66: #{_lambda_.3} parent=59 // loop_footer_branch
                %385 = sbr.rel target = $region62
              $region67: #{_lambda_.3} parent=59 // loop_exit
                _
            $region60: #{_lambda_.3} parent=51 // pred_fallthru
              _
          $region52: #{_lambda_.3} parent=47 // pred_fallthru
            _
          %437 = vnop
        $region48: #{_lambda_.3} parent=43 // pred_fallthru
          _
        // Predicated region
        $region83: #{_lambda_.3} parent=43 // pred_check
          %p438 = pneg %p65
        $region84: #{_lambda_.3} parent=43 // pred_check_branch
          %440 = sbr.rel (%p438) target = $region86
        $region85: #{_lambda_.3} parent=43 // pred_region
          %s441 = sand.u32 %s55, 1
          %s442 = sand.u32 %s55, 1
          %s443 = smul.addr %s442, 64
          %s444 = scalar_lea.vmem [#allocation7], %s443
          %s445 = smul.u32 4, %s19
          %s446 = smul.addr %s445, 8
          %s447 = scalar_lea.vmem %s1, %s446
          // Predicated region
          $region87: #{_lambda_.3} parent=85 // pred_check
            _
          $region88: #{_lambda_.3} parent=85 // pred_check_branch
            %449 = sbr.rel (0) target = $region90
          $region89: #{_lambda_.3} parent=85 // pred_region
            // Predicated region
            $region91: #{_lambda_.3} parent=89 // pred_check
              _
            $region92: #{_lambda_.3} parent=89 // pred_check_branch
              %451 = sbr.rel (0) target = $region94
            $region93: #{_lambda_.3} parent=89 // pred_region
              // Predicated region
              $region106: #{_lambda_.3} parent=93 // pred_check
                _
              $region107: #{_lambda_.3} parent=93 // pred_check_branch
                %480 = sbr.rel (0) target = $region109
              $region108: #{_lambda_.3} parent=93 // pred_region
                loop: start=0, step=1, limit=1
                $region110: #{_lambda_.3} parent=108 // loop_pre_header
                  _
                $region111: #{_lambda_.3} parent=108 // loop_header
                  %s482 = sphi 0, %s486
                  %p483 = scmp.ge.s32.totalorder %s482, 1
                  %s487 = sphi %s447, %s447
                  %s488 = sphi %s444, %s444
                $region112: #{_lambda_.3} parent=108 // loop_header_branch
                  %485 = sbr.rel (%p483) target = $region116
                $region113: #{_lambda_.3} parent=108 // loop_body
                  %v489 = vld [vmem:[%s487] sm:$0xff]
                  %490 = vst [vmem:[%s488] sm:$0xff] %v489
                  %v491 = vld [vmem:[%s487 + $0x8] sm:$0xff]
                  %492 = vst [vmem:[%s488 + $0x8] sm:$0xff] %v491
                  %v493 = vld [vmem:[%s487 + $0x10] sm:$0xff]
                  %494 = vst [vmem:[%s488 + $0x10] sm:$0xff] %v493
                  %v495 = vld [vmem:[%s487 + $0x18] sm:$0xff]
                  %496 = vst [vmem:[%s488 + $0x18] sm:$0xff] %v495
                  %v497 = vld [vmem:[%s487 + $0x60] sm:$0xff]
                  %498 = vst [vmem:[%s488 + $0x20] sm:$0xff] %v497
                  %v499 = vld [vmem:[%s487 + $0x68] sm:$0xff]
                  %500 = vst [vmem:[%s488 + $0x28] sm:$0xff] %v499
                  %v501 = vld [vmem:[%s487 + $0x70] sm:$0xff]
                  %502 = vst [vmem:[%s488 + $0x30] sm:$0xff] %v501
                  %v503 = vld [vmem:[%s487 + $0x78] sm:$0xff]
                  %504 = vst [vmem:[%s488 + $0x38] sm:$0xff] %v503
                $region114: #{_lambda_.3} parent=108 // loop_footer
                  %s486 = sadd.s32 1, %s482
                $region115: #{_lambda_.3} parent=108 // loop_footer_branch
                  %481 = sbr.rel target = $region111
                $region116: #{_lambda_.3} parent=108 // loop_exit
                  _
              $region109: #{_lambda_.3} parent=93 // pred_fallthru
                _
              // Predicated region
              $region117: #{_lambda_.3} parent=93 // pred_check
                _
              $region118: #{_lambda_.3} parent=93 // pred_check_branch
                %506 = sbr.rel target = $region120
              $region119: #{_lambda_.3} parent=93 // pred_region
                _
              $region120: #{_lambda_.3} parent=93 // pred_fallthru
                _
            $region94: #{_lambda_.3} parent=89 // pred_fallthru
              _
            // Predicated region
            $region95: #{_lambda_.3} parent=89 // pred_check
              _
            $region96: #{_lambda_.3} parent=89 // pred_check_branch
              %453 = sbr.rel target = $region98
            $region97: #{_lambda_.3} parent=89 // pred_region
              loop: start=0, step=1, limit=1
              $region99: #{_lambda_.3} parent=97 // loop_pre_header
                _
              $region100: #{_lambda_.3} parent=97 // loop_header
                %s456 = sphi 0, %s460
                %p457 = scmp.ge.s32.totalorder %s456, 1
                %s461 = sphi %s447, %s447
                %s462 = sphi %s444, %s444
              $region101: #{_lambda_.3} parent=97 // loop_header_branch
                %459 = sbr.rel (%p457) target = $region105
              $region102: #{_lambda_.3} parent=97 // loop_body
                %v463 = vld [vmem:[%s461] sm:$0xff]
                %464 = vst [vmem:[%s462] sm:$0xff] %v463
                %v465 = vld [vmem:[%s461 + $0x8] sm:$0xff]
                %466 = vst [vmem:[%s462 + $0x8] sm:$0xff] %v465
                %v467 = vld [vmem:[%s461 + $0x10] sm:$0xff]
                %468 = vst [vmem:[%s462 + $0x10] sm:$0xff] %v467
                %v469 = vld [vmem:[%s461 + $0x18] sm:$0xff]
                %470 = vst [vmem:[%s462 + $0x18] sm:$0xff] %v469
                %v471 = vld [vmem:[%s461 + $0x60] sm:$0xff]
                %472 = vst [vmem:[%s462 + $0x20] sm:$0xff] %v471
                %v473 = vld [vmem:[%s461 + $0x68] sm:$0xff]
                %474 = vst [vmem:[%s462 + $0x28] sm:$0xff] %v473
                %v475 = vld [vmem:[%s461 + $0x70] sm:$0xff]
                %476 = vst [vmem:[%s462 + $0x30] sm:$0xff] %v475
                %v477 = vld [vmem:[%s461 + $0x78] sm:$0xff]
                %478 = vst [vmem:[%s462 + $0x38] sm:$0xff] %v477
              $region103: #{_lambda_.3} parent=97 // loop_footer
                %s460 = sadd.s32 1, %s456
              $region104: #{_lambda_.3} parent=97 // loop_footer_branch
                %455 = sbr.rel target = $region100
              $region105: #{_lambda_.3} parent=97 // loop_exit
                _
            $region98: #{_lambda_.3} parent=89 // pred_fallthru
              _
          $region90: #{_lambda_.3} parent=85 // pred_fallthru
            _
          %507 = vnop
        $region86: #{_lambda_.3} parent=43 // pred_fallthru
          _
        // Predicated region
        $region121: #{_lambda_.3} parent=43 // pred_check
          %p508 = pneg %p93
        $region122: #{_lambda_.3} parent=43 // pred_check_branch
          %510 = sbr.rel (%p508) target = $region124
        $region123: #{_lambda_.3} parent=43 // pred_region
          %s511 = sand.u32 %s83, 1
          %s512 = sand.u32 %s83, 1
          %s513 = smul.addr %s512, 64
          %s514 = scalar_lea.vmem [#allocation8], %s513
          %s515 = ssub.s32 2, %s19
          %s516 = smul.u32 4, %s515
          %s517 = smul.addr %s516, 8
          %s518 = scalar_lea.vmem %s2, %s517
          // Predicated region
          $region125: #{_lambda_.3} parent=123 // pred_check
            _
          $region126: #{_lambda_.3} parent=123 // pred_check_branch
            %520 = sbr.rel (0) target = $region128
          $region127: #{_lambda_.3} parent=123 // pred_region
            // Predicated region
            $region129: #{_lambda_.3} parent=127 // pred_check
              _
            $region130: #{_lambda_.3} parent=127 // pred_check_branch
              %522 = sbr.rel (0) target = $region132
            $region131: #{_lambda_.3} parent=127 // pred_region
              // Predicated region
              $region144: #{_lambda_.3} parent=131 // pred_check
                _
              $region145: #{_lambda_.3} parent=131 // pred_check_branch
                %551 = sbr.rel (0) target = $region147
              $region146: #{_lambda_.3} parent=131 // pred_region
                loop: start=0, step=1, limit=1
                $region148: #{_lambda_.3} parent=146 // loop_pre_header
                  _
                $region149: #{_lambda_.3} parent=146 // loop_header
                  %s553 = sphi 0, %s557
                  %p554 = scmp.ge.s32.totalorder %s553, 1
                  %s558 = sphi %s518, %s518
                  %s559 = sphi %s514, %s514
                $region150: #{_lambda_.3} parent=146 // loop_header_branch
                  %556 = sbr.rel (%p554) target = $region154
                $region151: #{_lambda_.3} parent=146 // loop_body
                  %v560 = vld [vmem:[%s558] sm:$0xff]
                  %561 = vst [vmem:[%s559] sm:$0xff] %v560
                  %v562 = vld [vmem:[%s558 + $0x8] sm:$0xff]
                  %563 = vst [vmem:[%s559 + $0x8] sm:$0xff] %v562
                  %v564 = vld [vmem:[%s558 + $0x10] sm:$0xff]
                  %565 = vst [vmem:[%s559 + $0x10] sm:$0xff] %v564
                  %v566 = vld [vmem:[%s558 + $0x18] sm:$0xff]
                  %567 = vst [vmem:[%s559 + $0x18] sm:$0xff] %v566
                  %v568 = vld [vmem:[%s558 + $0x60] sm:$0xff]
                  %569 = vst [vmem:[%s559 + $0x20] sm:$0xff] %v568
                  %v570 = vld [vmem:[%s558 + $0x68] sm:$0xff]
                  %571 = vst [vmem:[%s559 + $0x28] sm:$0xff] %v570
                  %v572 = vld [vmem:[%s558 + $0x70] sm:$0xff]
                  %573 = vst [vmem:[%s559 + $0x30] sm:$0xff] %v572
                  %v574 = vld [vmem:[%s558 + $0x78] sm:$0xff]
                  %575 = vst [vmem:[%s559 + $0x38] sm:$0xff] %v574
                $region152: #{_lambda_.3} parent=146 // loop_footer
                  %s557 = sadd.s32 1, %s553
                $region153: #{_lambda_.3} parent=146 // loop_footer_branch
                  %552 = sbr.rel target = $region149
                $region154: #{_lambda_.3} parent=146 // loop_exit
                  _
              $region147: #{_lambda_.3} parent=131 // pred_fallthru
                _
              // Predicated region
              $region155: #{_lambda_.3} parent=131 // pred_check
                _
              $region156: #{_lambda_.3} parent=131 // pred_check_branch
                %577 = sbr.rel target = $region158
              $region157: #{_lambda_.3} parent=131 // pred_region
                _
              $region158: #{_lambda_.3} parent=131 // pred_fallthru
                _
            $region132: #{_lambda_.3} parent=127 // pred_fallthru
              _
            // Predicated region
            $region133: #{_lambda_.3} parent=127 // pred_check
              _
            $region134: #{_lambda_.3} parent=127 // pred_check_branch
              %524 = sbr.rel target = $region136
            $region135: #{_lambda_.3} parent=127 // pred_region
              loop: start=0, step=1, limit=1
              $region137: #{_lambda_.3} parent=135 // loop_pre_header
                _
              $region138: #{_lambda_.3} parent=135 // loop_header
                %s527 = sphi 0, %s531
                %p528 = scmp.ge.s32.totalorder %s527, 1
                %s532 = sphi %s518, %s518
                %s533 = sphi %s514, %s514
              $region139: #{_lambda_.3} parent=135 // loop_header_branch
                %530 = sbr.rel (%p528) target = $region143
              $region140: #{_lambda_.3} parent=135 // loop_body
                %v534 = vld [vmem:[%s532] sm:$0xff]
                %535 = vst [vmem:[%s533] sm:$0xff] %v534
                %v536 = vld [vmem:[%s532 + $0x8] sm:$0xff]
                %537 = vst [vmem:[%s533 + $0x8] sm:$0xff] %v536
                %v538 = vld [vmem:[%s532 + $0x10] sm:$0xff]
                %539 = vst [vmem:[%s533 + $0x10] sm:$0xff] %v538
                %v540 = vld [vmem:[%s532 + $0x18] sm:$0xff]
                %541 = vst [vmem:[%s533 + $0x18] sm:$0xff] %v540
                %v542 = vld [vmem:[%s532 + $0x60] sm:$0xff]
                %543 = vst [vmem:[%s533 + $0x20] sm:$0xff] %v542
                %v544 = vld [vmem:[%s532 + $0x68] sm:$0xff]
                %545 = vst [vmem:[%s533 + $0x28] sm:$0xff] %v544
                %v546 = vld [vmem:[%s532 + $0x70] sm:$0xff]
                %547 = vst [vmem:[%s533 + $0x30] sm:$0xff] %v546
                %v548 = vld [vmem:[%s532 + $0x78] sm:$0xff]
                %549 = vst [vmem:[%s533 + $0x38] sm:$0xff] %v548
              $region141: #{_lambda_.3} parent=135 // loop_footer
                %s531 = sadd.s32 1, %s527
              $region142: #{_lambda_.3} parent=135 // loop_footer_branch
                %526 = sbr.rel target = $region138
              $region143: #{_lambda_.3} parent=135 // loop_exit
                _
            $region136: #{_lambda_.3} parent=127 // pred_fallthru
              _
          $region128: #{_lambda_.3} parent=123 // pred_fallthru
            _
          %578 = vnop
        $region124: #{_lambda_.3} parent=43 // pred_fallthru
          _
        // Predicated region
        $region159: #{_lambda_.3} parent=43 // pred_check
          %p579 = pneg %p121
        $region160: #{_lambda_.3} parent=43 // pred_check_branch
          %581 = sbr.rel (%p579) target = $region162
        $region161: #{_lambda_.3} parent=43 // pred_region
          %s582 = sand.u32 %s111, 1
          %s583 = sand.u32 %s111, 1
          %s584 = smul.addr %s583, 64
          %s585 = scalar_lea.vmem [#allocation9], %s584
          %s586 = ssub.s32 2, %s19
          %s587 = smul.u32 4, %s586
          %s588 = smul.addr %s587, 8
          %s589 = scalar_lea.vmem %s3, %s588
          // Predicated region
          $region163: #{_lambda_.3} parent=161 // pred_check
            _
          $region164: #{_lambda_.3} parent=161 // pred_check_branch
            %591 = sbr.rel (0) target = $region166
          $region165: #{_lambda_.3} parent=161 // pred_region
            // Predicated region
            $region167: #{_lambda_.3} parent=165 // pred_check
              _
            $region168: #{_lambda_.3} parent=165 // pred_check_branch
              %593 = sbr.rel (0) target = $region170
            $region169: #{_lambda_.3} parent=165 // pred_region
              // Predicated region
              $region182: #{_lambda_.3} parent=169 // pred_check
                _
              $region183: #{_lambda_.3} parent=169 // pred_check_branch
                %622 = sbr.rel (0) target = $region185
              $region184: #{_lambda_.3} parent=169 // pred_region
                loop: start=0, step=1, limit=1
                $region186: #{_lambda_.3} parent=184 // loop_pre_header
                  _
                $region187: #{_lambda_.3} parent=184 // loop_header
                  %s624 = sphi 0, %s628
                  %p625 = scmp.ge.s32.totalorder %s624, 1
                  %s629 = sphi %s589, %s589
                  %s630 = sphi %s585, %s585
                $region188: #{_lambda_.3} parent=184 // loop_header_branch
                  %627 = sbr.rel (%p625) target = $region192
                $region189: #{_lambda_.3} parent=184 // loop_body
                  %v631 = vld [vmem:[%s629] sm:$0xff]
                  %632 = vst [vmem:[%s630] sm:$0xff] %v631
                  %v633 = vld [vmem:[%s629 + $0x8] sm:$0xff]
                  %634 = vst [vmem:[%s630 + $0x8] sm:$0xff] %v633
                  %v635 = vld [vmem:[%s629 + $0x10] sm:$0xff]
                  %636 = vst [vmem:[%s630 + $0x10] sm:$0xff] %v635
                  %v637 = vld [vmem:[%s629 + $0x18] sm:$0xff]
                  %638 = vst [vmem:[%s630 + $0x18] sm:$0xff] %v637
                  %v639 = vld [vmem:[%s629 + $0x60] sm:$0xff]
                  %640 = vst [vmem:[%s630 + $0x20] sm:$0xff] %v639
                  %v641 = vld [vmem:[%s629 + $0x68] sm:$0xff]
                  %642 = vst [vmem:[%s630 + $0x28] sm:$0xff] %v641
                  %v643 = vld [vmem:[%s629 + $0x70] sm:$0xff]
                  %644 = vst [vmem:[%s630 + $0x30] sm:$0xff] %v643
                  %v645 = vld [vmem:[%s629 + $0x78] sm:$0xff]
                  %646 = vst [vmem:[%s630 + $0x38] sm:$0xff] %v645
                $region190: #{_lambda_.3} parent=184 // loop_footer
                  %s628 = sadd.s32 1, %s624
                $region191: #{_lambda_.3} parent=184 // loop_footer_branch
                  %623 = sbr.rel target = $region187
                $region192: #{_lambda_.3} parent=184 // loop_exit
                  _
              $region185: #{_lambda_.3} parent=169 // pred_fallthru
                _
              // Predicated region
              $region193: #{_lambda_.3} parent=169 // pred_check
                _
              $region194: #{_lambda_.3} parent=169 // pred_check_branch
                %648 = sbr.rel target = $region196
              $region195: #{_lambda_.3} parent=169 // pred_region
                _
              $region196: #{_lambda_.3} parent=169 // pred_fallthru
                _
            $region170: #{_lambda_.3} parent=165 // pred_fallthru
              _
            // Predicated region
            $region171: #{_lambda_.3} parent=165 // pred_check
              _
            $region172: #{_lambda_.3} parent=165 // pred_check_branch
              %595 = sbr.rel target = $region174
            $region173: #{_lambda_.3} parent=165 // pred_region
              loop: start=0, step=1, limit=1
              $region175: #{_lambda_.3} parent=173 // loop_pre_header
                _
              $region176: #{_lambda_.3} parent=173 // loop_header
                %s598 = sphi 0, %s602
                %p599 = scmp.ge.s32.totalorder %s598, 1
                %s603 = sphi %s589, %s589
                %s604 = sphi %s585, %s585
              $region177: #{_lambda_.3} parent=173 // loop_header_branch
                %601 = sbr.rel (%p599) target = $region181
              $region178: #{_lambda_.3} parent=173 // loop_body
                %v605 = vld [vmem:[%s603] sm:$0xff]
                %606 = vst [vmem:[%s604] sm:$0xff] %v605
                %v607 = vld [vmem:[%s603 + $0x8] sm:$0xff]
                %608 = vst [vmem:[%s604 + $0x8] sm:$0xff] %v607
                %v609 = vld [vmem:[%s603 + $0x10] sm:$0xff]
                %610 = vst [vmem:[%s604 + $0x10] sm:$0xff] %v609
                %v611 = vld [vmem:[%s603 + $0x18] sm:$0xff]
                %612 = vst [vmem:[%s604 + $0x18] sm:$0xff] %v611
                %v613 = vld [vmem:[%s603 + $0x60] sm:$0xff]
                %614 = vst [vmem:[%s604 + $0x20] sm:$0xff] %v613
                %v615 = vld [vmem:[%s603 + $0x68] sm:$0xff]
                %616 = vst [vmem:[%s604 + $0x28] sm:$0xff] %v615
                %v617 = vld [vmem:[%s603 + $0x70] sm:$0xff]
                %618 = vst [vmem:[%s604 + $0x30] sm:$0xff] %v617
                %v619 = vld [vmem:[%s603 + $0x78] sm:$0xff]
                %620 = vst [vmem:[%s604 + $0x38] sm:$0xff] %v619
              $region179: #{_lambda_.3} parent=173 // loop_footer
                %s602 = sadd.s32 1, %s598
              $region180: #{_lambda_.3} parent=173 // loop_footer_branch
                %597 = sbr.rel target = $region176
              $region181: #{_lambda_.3} parent=173 // loop_exit
                _
            $region174: #{_lambda_.3} parent=165 // pred_fallthru
              _
          $region166: #{_lambda_.3} parent=161 // pred_fallthru
            _
          %649 = vnop
        $region162: #{_lambda_.3} parent=43 // pred_fallthru
          _
      $region44: #{_lambda_.3} parent=5 // pred_fallthru
        _
      %p650 = scmp.le.s32.totalorder 1, %s19
      %p651 = scmp.lt.s32.totalorder %s19, 4
      %p652 = pnand %p650, %p651
      %p653 = pneg %p652
      // Predicated region
      $region197: #{_lambda_.3} parent=5 // pred_check
        _
      $region198: #{_lambda_.3} parent=5 // pred_check_branch
        %655 = sbr.rel (%p652) target = $region200
      $region199: #{_lambda_.3} parent=5 // pred_region
        %s656 = ssub.s32 %s19, 1
        %s657 = sand.u32 %s32, 1
        %s658 = sand.u32 %s32, 1
        %s659 = smul.addr %s658, 64
        %s660 = scalar_lea.vmem [#allocation6], %s659
        // Predicated region
        $region201: #{_lambda_.3} parent=199 // pred_check
          %p661 = pneg %p45
        $region202: #{_lambda_.3} parent=199 // pred_check_branch
          %663 = sbr.rel (%p661) target = $region204
        $region203: #{_lambda_.3} parent=199 // pred_region
          _
        $region204: #{_lambda_.3} parent=199 // pred_fallthru
          _
        %s664 = sand.u32 %s58, 1
        %s665 = sand.u32 %s58, 1
        %s666 = smul.addr %s665, 64
        %s667 = scalar_lea.vmem [#allocation7], %s666
        // Predicated region
        $region205: #{_lambda_.3} parent=199 // pred_check
          %p668 = pneg %p71
        $region206: #{_lambda_.3} parent=199 // pred_check_branch
          %670 = sbr.rel (%p668) target = $region208
        $region207: #{_lambda_.3} parent=199 // pred_region
          _
        $region208: #{_lambda_.3} parent=199 // pred_fallthru
          _
        %s671 = sand.u32 %s86, 1
        %s672 = sand.u32 %s86, 1
        %s673 = smul.addr %s672, 64
        %s674 = scalar_lea.vmem [#allocation8], %s673
        // Predicated region
        $region209: #{_lambda_.3} parent=199 // pred_check
          %p675 = pneg %p99
        $region210: #{_lambda_.3} parent=199 // pred_check_branch
          %677 = sbr.rel (%p675) target = $region212
        $region211: #{_lambda_.3} parent=199 // pred_region
          _
        $region212: #{_lambda_.3} parent=199 // pred_fallthru
          _
        %s678 = sand.u32 %s114, 1
        %s679 = sand.u32 %s114, 1
        %s680 = smul.addr %s679, 64
        %s681 = scalar_lea.vmem [#allocation9], %s680
        // Predicated region
        $region213: #{_lambda_.3} parent=199 // pred_check
          %p682 = pneg %p127
        $region214: #{_lambda_.3} parent=199 // pred_check_branch
          %684 = sbr.rel (%p682) target = $region216
        $region215: #{_lambda_.3} parent=199 // pred_region
          _
        $region216: #{_lambda_.3} parent=199 // pred_fallthru
          _
        %s685 = sand.u32 %s32, 1
        %s686 = sand.u32 %s32, 1
        %s687 = smul.addr %s686, 64
        %s688 = scalar_lea.vmem [#allocation6], %s687
        %p689 = pneg %p45
        %p690 = pneg %p42
        %s691 = sand.u32 %s58, 1
        %s692 = sand.u32 %s58, 1
        %s693 = smul.addr %s692, 64
        %s694 = scalar_lea.vmem [#allocation7], %s693
        %p695 = pneg %p71
        %p696 = pneg %p68
        %s697 = sand.u32 %s86, 1
        %s698 = sand.u32 %s86, 1
        %s699 = smul.addr %s698, 64
        %s700 = scalar_lea.vmem [#allocation8], %s699
        %p701 = pneg %p99
        %p702 = pneg %p96
        %s703 = sand.u32 %s114, 1
        %s704 = sand.u32 %s114, 1
        %s705 = smul.addr %s704, 64
        %s706 = scalar_lea.vmem [#allocation9], %s705
        %p707 = pneg %p127
        %p708 = pneg %p124
        %p709 = pneg %p148
        %p710 = pneg %p145
        %p711 = pneg %p169
        %p712 = pneg %p166
        %p713 = pneg %p190
        %p714 = pneg %p187
        %p715 = pneg %p211
        %p716 = pneg %p208
        %p717 = pneg %p232
        %p718 = pneg %p229
        %p719 = pneg %p253
        %p720 = pneg %p250
        %p721 = pneg %p274
        %p722 = pneg %p271
        %p723 = pneg %p300
        %p724 = pneg %p297
        %s725 = sand.u32 %s287, 1
        %s726 = sand.u32 %s287, 1
        %s727 = smul.addr %s726, 64
        %s728 = scalar_lea.vmem [#allocation10], %s727
        %p729 = pneg %p328
        %p730 = pneg %p325
        %s731 = sand.u32 %s315, 1
        %s732 = sand.u32 %s315, 1
        %s733 = smul.addr %s732, 64
        %s734 = scalar_lea.vmem [#allocation11], %s733
        %s735 = smul.u32 4, %s24
        %s736 = smul.u32 4, %s24
        %s737 = ssub.s32 2, %s24
        %s738 = smul.u32 4, %s737
        %s739 = ssub.s32 2, %s24
        %s740 = smul.u32 4, %s739
        %s741 = smul.u32 4, %s24
        %s742 = ssub.s32 2, %s24
        %s743 = smul.u32 4, %s742
        %p744 = scmp.eq.s32.totalorder %s24, 0
        // Predicated region
        $region217: #{_lambda_.3} parent=199 // pred_check
          %p745 = pneg %p744
        $region218: #{_lambda_.3} parent=199 // pred_check_branch
          %747 = sbr.rel (%p745) target = $region220
        $region219: #{_lambda_.3} parent=199 // pred_region
          %vm748 = vcmask 254976
          %749 = vst.msk [vmem:[#allocation4] sm:$0x3] %vm748, 0.0
          %750 = vst.msk [vmem:[#allocation5] sm:$0x3] %vm748, 0.0
        $region220: #{_lambda_.3} parent=199 // pred_fallthru
          _
        %v751 = vld [vmem:[%s10] sm:$0x1]
        %v752 = vld [vmem:[%s10 + $0x1] sm:$0x1]
        %v753 = vld [vmem:[%s10 + $0x2] sm:$0x1]
        %v754 = vld [vmem:[%s10 + $0x3] sm:$0x1]
        %v755 = vld [vmem:[%s660] sm:$0xff]
        %v756 = vld [vmem:[%s660 + $0x8] sm:$0xff]
        %v757 = vld [vmem:[%s660 + $0x10] sm:$0xff]
        %v758 = vld [vmem:[%s660 + $0x18] sm:$0xff]
        %v759 = vld [vmem:[%s4] sm:$0xff]
        %v760 = vld [vmem:[%s4 + $0x8] sm:$0xff]
        %v761 = vld [vmem:[%s4 + $0x10] sm:$0xff]
        %v762 = vld [vmem:[%s4 + $0x18] sm:$0xff]
        %vm763 = vcmask 261120
        %v765 = vsel %vm763, %v755, 0
        %v768 = vsel %vm763, %v756, 0
        %v771 = vsel %vm763, %v757, 0
        %v774 = vsel %vm763, %v758, 0
        %776 = vmatprep.subr.mxu0 0.0
        %777 = vmatpush1.msra.mxu0 %v759
        %778 = vmatprep.subr.mxu0 0.0
        %779 = vmatpush1.msra.mxu0 %v760
        %780 = vmatprep.subr.mxu0 0.0
        %781 = vmatpush1.msra.mxu0 %v761
        %782 = vmatprep.subr.mxu0 0.0
        %783 = vmatpush1.msra.mxu0 %v762
        %784 = vmatprep.subr.mxu0 0.0
        %785 = vmatpush1.msra.mxu0 0.0
        %786 = vmatprep.subr.mxu0 0.0
        %787 = vmatpush1.msra.mxu0 0.0
        %788 = vmatprep.subr.mxu0 0.0
        %789 = vmatpush1.msra.mxu0 0.0
        %790 = vmatprep.subr.mxu0 0.0
        %791 = vmatpush1.msra.mxu0 0.0
        %792 = vmatprep.subr.mxu0 0.0
        %793 = vmatpush1.msra.mxu0 0.0
        %794 = vmatprep.subr.mxu0 0.0
        %795 = vmatpush1.msra.mxu0 0.0
        %796 = vmatprep.subr.mxu0 0.0
        %797 = vmatpush1.msra.mxu0 0.0
        %798 = vmatprep.subr.mxu0 0.0
        %799 = vmatpush1.msra.mxu0 0.0
        %800 = vmatprep.subr.mxu0 0.0
        %801 = vmatpush1.msra.mxu0 0.0
        %802 = vmatprep.subr.mxu0 0.0
        %803 = vmatpush1.msra.mxu0 0.0
        %804 = vmatprep.subr.mxu0 0.0
        %805 = vmatpush1.msra.mxu0 0.0
        %806 = vmatprep.subr.mxu0 0.0
        %807 = vmatpush1.msra.mxu0 0.0
        %808 = vmatprep.subr.mxu0 0.0
        %809 = vmatpush1.msra.mxu0 0.0
        %810 = vmatprep.subr.mxu0 0.0
        %811 = vmatpush1.msra.mxu0 0.0
        %812 = vmatprep.subr.mxu0 0.0
        %813 = vmatpush1.msra.mxu0 0.0
        %814 = vmatprep.subr.mxu0 0.0
        %815 = vmatpush1.msra.mxu0 0.0
        %816 = vmatprep.subr.mxu0 0.0
        %817 = vmatpush1.msra.mxu0 0.0
        %818 = vmatprep.subr.mxu0 0.0
        %819 = vmatpush1.msra.mxu0 0.0
        %820 = vmatprep.subr.mxu0 0.0
        %821 = vmatpush1.msra.mxu0 0.0
        %822 = vmatprep.subr.mxu0 0.0
        %823 = vmatpush1.msra.mxu0 0.0
        %824 = vmatprep.subr.mxu0 0.0
        %825 = vmatpush1.msra.mxu0 0.0
        %826 = vmatprep.subr.mxu0 0.0
        %827 = vmatpush1.msra.mxu0 0.0
        %828 = vmatprep.subr.mxu0 0.0
        %829 = vmatpush1.msra.mxu0 0.0
        %830 = vmatprep.subr.mxu0 0.0
        %831 = vmatpush1.msra.mxu0 0.0
        %832 = vmatprep.subr.mxu0 0.0
        %833 = vmatpush1.msra.mxu0 0.0
        %834 = vmatprep.subr.mxu0 0.0
        %835 = vmatpush1.msra.mxu0 0.0
        %836 = vmatprep.subr.mxu0 0.0
        %837 = vmatpush1.msra.mxu0 0.0
        %838 = vmatprep.subr.mxu0 0.0
        %839 = vmatpush1.msra.mxu0 0.0
        %840 = vmatprep.mubr.f32.mxu0 0.0
        %841 = vmatmul.mubr.f32.gmra.mrb[0].mxu0 %v765
        %v842 = vpop.f32.mrb[0].mxu0
        %v843 = vadd.f32 0.0, %v842
        %v844 = vpop.f32.mrb[0].mxu0
        %845 = vmatprep.mubr.f32.mxu0 0.0
        %846 = vmatmul.mubr.f32.gmra.mrb[0].mxu0 %v768
        %v847 = vpop.f32.mrb[0].mxu0
        %v848 = vadd.f32 0.0, %v847
        %v849 = vpop.f32.mrb[0].mxu0
        %850 = vmatprep.mubr.f32.mxu0 0.0
        %851 = vmatmul.mubr.f32.gmra.mrb[0].mxu0 %v771
        %v852 = vpop.f32.mrb[0].mxu0
        %v853 = vadd.f32 0.0, %v852
        %v854 = vpop.f32.mrb[0].mxu0
        %855 = vmatprep.mubr.f32.mxu0 0.0
        %856 = vmatmul.mubr.f32.gmra.mrb[0].mxu0 %v774
        %v857 = vpop.f32.mrb[0].mxu0
        %v858 = vadd.f32 0.0, %v857
        %v859 = vpop.f32.mrb[0].mxu0
        %860 = vdwg.mxu0
        %v861 = vlaneseq
        %v862 = vshrl.u32 %v861, 7
        %v863 = vsub.s32 0, %v862
        %v864 = vrot.slane %v751, %v863
        %v865 = vadd.f32 %v864, %v843
        %v866 = vadd.f32 %v864, %v848
        %v867 = vadd.f32 %v864, %v853
        %v868 = vadd.f32 %v864, %v858
        %v869 = vld [vmem:[%s674] sm:$0xff]
        %v870 = vld [vmem:[%s674 + $0x8] sm:$0xff]
        %v871 = vld [vmem:[%s674 + $0x10] sm:$0xff]
        %v872 = vld [vmem:[%s674 + $0x18] sm:$0xff]
        %v873 = vld [vmem:[%s6] sm:$0xff]
        %v874 = vld [vmem:[%s6 + $0x8] sm:$0xff]
        %v875 = vld [vmem:[%s6 + $0x10] sm:$0xff]
        %v876 = vld [vmem:[%s6 + $0x18] sm:$0xff]
        %v878 = vsel %vm763, %v869, 0
        %v881 = vsel %vm763, %v870, 0
        %v884 = vsel %vm763, %v871, 0
        %v887 = vsel %vm763, %v872, 0
        %889 = vmatprep.subr.mxu0 0.0
        %890 = vmatpush1.msra.mxu0 %v873
        %891 = vmatprep.subr.mxu0 0.0
        %892 = vmatpush1.msra.mxu0 %v874
        %893 = vmatprep.subr.mxu0 0.0
        %894 = vmatpush1.msra.mxu0 %v875
        %895 = vmatprep.subr.mxu0 0.0
        %896 = vmatpush1.msra.mxu0 %v876
        %897 = vmatprep.subr.mxu0 0.0
        %898 = vmatpush1.msra.mxu0 0.0
        %899 = vmatprep.subr.mxu0 0.0
        %900 = vmatpush1.msra.mxu0 0.0
        %901 = vmatprep.subr.mxu0 0.0
        %902 = vmatpush1.msra.mxu0 0.0
        %903 = vmatprep.subr.mxu0 0.0
        %904 = vmatpush1.msra.mxu0 0.0
        %905 = vmatprep.subr.mxu0 0.0
        %906 = vmatpush1.msra.mxu0 0.0
        %907 = vmatprep.subr.mxu0 0.0
        %908 = vmatpush1.msra.mxu0 0.0
        %909 = vmatprep.subr.mxu0 0.0
        %910 = vmatpush1.msra.mxu0 0.0
        %911 = vmatprep.subr.mxu0 0.0
        %912 = vmatpush1.msra.mxu0 0.0
        %913 = vmatprep.subr.mxu0 0.0
        %914 = vmatpush1.msra.mxu0 0.0
        %915 = vmatprep.subr.mxu0 0.0
        %916 = vmatpush1.msra.mxu0 0.0
        %917 = vmatprep.subr.mxu0 0.0
        %918 = vmatpush1.msra.mxu0 0.0
        %919 = vmatprep.subr.mxu0 0.0
        %920 = vmatpush1.msra.mxu0 0.0
        %921 = vmatprep.subr.mxu0 0.0
        %922 = vmatpush1.msra.mxu0 0.0
        %923 = vmatprep.subr.mxu0 0.0
        %924 = vmatpush1.msra.mxu0 0.0
        %925 = vmatprep.subr.mxu0 0.0
        %926 = vmatpush1.msra.mxu0 0.0
        %927 = vmatprep.subr.mxu0 0.0
        %928 = vmatpush1.msra.mxu0 0.0
        %929 = vmatprep.subr.mxu0 0.0
        %930 = vmatpush1.msra.mxu0 0.0
        %931 = vmatprep.subr.mxu0 0.0
        %932 = vmatpush1.msra.mxu0 0.0
        %933 = vmatprep.subr.mxu0 0.0
        %934 = vmatpush1.msra.mxu0 0.0
        %935 = vmatprep.subr.mxu0 0.0
        %936 = vmatpush1.msra.mxu0 0.0
        %937 = vmatprep.subr.mxu0 0.0
        %938 = vmatpush1.msra.mxu0 0.0
        %939 = vmatprep.subr.mxu0 0.0
        %940 = vmatpush1.msra.mxu0 0.0
        %941 = vmatprep.subr.mxu0 0.0
        %942 = vmatpush1.msra.mxu0 0.0
        %943 = vmatprep.subr.mxu0 0.0
        %944 = vmatpush1.msra.mxu0 0.0
        %945 = vmatprep.subr.mxu0 0.0
        %946 = vmatpush1.msra.mxu0 0.0
        %947 = vmatprep.subr.mxu0 0.0
        %948 = vmatpush1.msra.mxu0 0.0
        %949 = vmatprep.subr.mxu0 0.0
        %950 = vmatpush1.msra.mxu0 0.0
        %951 = vmatprep.subr.mxu0 0.0
        %952 = vmatpush1.msra.mxu0 0.0
        %953 = vmatprep.mubr.f32.mxu0 0.0
        %954 = vmatmul.mubr.f32.gmra.mrb[0].mxu0 %v878
        %v955 = vpop.f32.mrb[0].mxu0
        %v956 = vadd.f32 0.0, %v955
        %v957 = vpop.f32.mrb[0].mxu0
        %958 = vmatprep.mubr.f32.mxu0 0.0
        %959 = vmatmul.mubr.f32.gmra.mrb[0].mxu0 %v881
        %v960 = vpop.f32.mrb[0].mxu0
        %v961 = vadd.f32 0.0, %v960
        %v962 = vpop.f32.mrb[0].mxu0
        %963 = vmatprep.mubr.f32.mxu0 0.0
        %964 = vmatmul.mubr.f32.gmra.mrb[0].mxu0 %v884
        %v965 = vpop.f32.mrb[0].mxu0
        %v966 = vadd.f32 0.0, %v965
        %v967 = vpop.f32.mrb[0].mxu0
        %968 = vmatprep.mubr.f32.mxu0 0.0
        %969 = vmatmul.mubr.f32.gmra.mrb[0].mxu0 %v887
        %v970 = vpop.f32.mrb[0].mxu0
        %v971 = vadd.f32 0.0, %v970
        %v972 = vpop.f32.mrb[0].mxu0
        %973 = vdwg.mxu0
        %v974 = vlaneseq
        %v975 = vshrl.u32 %v974, 7
        %v976 = vsub.s32 0, %v975
        %v977 = vrot.slane %v753, %v976
        %v978 = vadd.f32 %v977, %v956
        %v979 = vadd.f32 %v977, %v961
        %v980 = vadd.f32 %v977, %v966
        %v981 = vadd.f32 %v977, %v971
        %v982 = vld [vmem:[%s667] sm:$0xff]
        %v983 = vld [vmem:[%s667 + $0x8] sm:$0xff]
        %v984 = vld [vmem:[%s667 + $0x10] sm:$0xff]
        %v985 = vld [vmem:[%s667 + $0x18] sm:$0xff]
        %v986 = vld [vmem:[%s5] sm:$0xff]
        %v987 = vld [vmem:[%s5 + $0x8] sm:$0xff]
        %v988 = vld [vmem:[%s5 + $0x10] sm:$0xff]
        %v989 = vld [vmem:[%s5 + $0x18] sm:$0xff]
        %v991 = vsel %vm763, %v982, 0
        %v994 = vsel %vm763, %v983, 0
        %v997 = vsel %vm763, %v984, 0
        %v1000 = vsel %vm763, %v985, 0
        %1002 = vmatprep.subr.mxu0 0.0
        %1003 = vmatpush1.msra.mxu0 %v986
        %1004 = vmatprep.subr.mxu0 0.0
        %1005 = vmatpush1.msra.mxu0 %v987
        %1006 = vmatprep.subr.mxu0 0.0
        %1007 = vmatpush1.msra.mxu0 %v988
        %1008 = vmatprep.subr.mxu0 0.0
        %1009 = vmatpush1.msra.mxu0 %v989
        %1010 = vmatprep.subr.mxu0 0.0
        %1011 = vmatpush1.msra.mxu0 0.0
        %1012 = vmatprep.subr.mxu0 0.0
        %1013 = vmatpush1.msra.mxu0 0.0
        %1014 = vmatprep.subr.mxu0 0.0
        %1015 = vmatpush1.msra.mxu0 0.0
        %1016 = vmatprep.subr.mxu0 0.0
        %1017 = vmatpush1.msra.mxu0 0.0
        %1018 = vmatprep.subr.mxu0 0.0
        %1019 = vmatpush1.msra.mxu0 0.0
        %1020 = vmatprep.subr.mxu0 0.0
        %1021 = vmatpush1.msra.mxu0 0.0
        %1022 = vmatprep.subr.mxu0 0.0
        %1023 = vmatpush1.msra.mxu0 0.0
        %1024 = vmatprep.subr.mxu0 0.0
        %1025 = vmatpush1.msra.mxu0 0.0
        %1026 = vmatprep.subr.mxu0 0.0
        %1027 = vmatpush1.msra.mxu0 0.0
        %1028 = vmatprep.subr.mxu0 0.0
        %1029 = vmatpush1.msra.mxu0 0.0
        %1030 = vmatprep.subr.mxu0 0.0
        %1031 = vmatpush1.msra.mxu0 0.0
        %1032 = vmatprep.subr.mxu0 0.0
        %1033 = vmatpush1.msra.mxu0 0.0
        %1034 = vmatprep.subr.mxu0 0.0
        %1035 = vmatpush1.msra.mxu0 0.0
        %1036 = vmatprep.subr.mxu0 0.0
        %1037 = vmatpush1.msra.mxu0 0.0
        %1038 = vmatprep.subr.mxu0 0.0
        %1039 = vmatpush1.msra.mxu0 0.0
        %1040 = vmatprep.subr.mxu0 0.0
        %1041 = vmatpush1.msra.mxu0 0.0
        %1042 = vmatprep.subr.mxu0 0.0
        %1043 = vmatpush1.msra.mxu0 0.0
        %1044 = vmatprep.subr.mxu0 0.0
        %1045 = vmatpush1.msra.mxu0 0.0
        %1046 = vmatprep.subr.mxu0 0.0
        %1047 = vmatpush1.msra.mxu0 0.0
        %1048 = vmatprep.subr.mxu0 0.0
        %1049 = vmatpush1.msra.mxu0 0.0
        %1050 = vmatprep.subr.mxu0 0.0
        %1051 = vmatpush1.msra.mxu0 0.0
        %1052 = vmatprep.subr.mxu0 0.0
        %1053 = vmatpush1.msra.mxu0 0.0
        %1054 = vmatprep.subr.mxu0 0.0
        %1055 = vmatpush1.msra.mxu0 0.0
        %1056 = vmatprep.subr.mxu0 0.0
        %1057 = vmatpush1.msra.mxu0 0.0
        %1058 = vmatprep.subr.mxu0 0.0
        %1059 = vmatpush1.msra.mxu0 0.0
        %1060 = vmatprep.subr.mxu0 0.0
        %1061 = vmatpush1.msra.mxu0 0.0
        %1062 = vmatprep.subr.mxu0 0.0
        %1063 = vmatpush1.msra.mxu0 0.0
        %1064 = vmatprep.subr.mxu0 0.0
        %1065 = vmatpush1.msra.mxu0 0.0
        %1066 = vmatprep.mubr.f32.mxu0 0.0
        %1067 = vmatmul.mubr.f32.gmra.mrb[0].mxu0 %v991
        %v1068 = vpop.f32.mrb[0].mxu0
        %v1069 = vadd.f32 0.0, %v1068
        %v1070 = vpop.f32.mrb[0].mxu0
        %1071 = vmatprep.mubr.f32.mxu0 0.0
        %1072 = vmatmul.mubr.f32.gmra.mrb[0].mxu0 %v994
        %v1073 = vpop.f32.mrb[0].mxu0
        %v1074 = vadd.f32 0.0, %v1073
        %v1075 = vpop.f32.mrb[0].mxu0
        %1076 = vmatprep.mubr.f32.mxu0 0.0
        %1077 = vmatmul.mubr.f32.gmra.mrb[0].mxu0 %v997
        %v1078 = vpop.f32.mrb[0].mxu0
        %v1079 = vadd.f32 0.0, %v1078
        %v1080 = vpop.f32.mrb[0].mxu0
        %1081 = vmatprep.mubr.f32.mxu0 0.0
        %1082 = vmatmul.mubr.f32.gmra.mrb[0].mxu0 %v1000
        %v1083 = vpop.f32.mrb[0].mxu0
        %v1084 = vadd.f32 0.0, %v1083
        %v1085 = vpop.f32.mrb[0].mxu0
        %1086 = vdwg.mxu0
        %v1087 = vadd.f32 %v865, %v1069
        %v1088 = vadd.f32 %v866, %v1074
        %v1089 = vadd.f32 %v867, %v1079
        %v1090 = vadd.f32 %v868, %v1084
        %v1091 = vld [vmem:[%s681] sm:$0xff]
        %v1092 = vld [vmem:[%s681 + $0x8] sm:$0xff]
        %v1093 = vld [vmem:[%s681 + $0x10] sm:$0xff]
        %v1094 = vld [vmem:[%s681 + $0x18] sm:$0xff]
        %v1095 = vld [vmem:[%s7] sm:$0xff]
        %v1096 = vld [vmem:[%s7 + $0x8] sm:$0xff]
        %v1097 = vld [vmem:[%s7 + $0x10] sm:$0xff]
        %v1098 = vld [vmem:[%s7 + $0x18] sm:$0xff]
        %v1100 = vsel %vm763, %v1091, 0
        %v1103 = vsel %vm763, %v1092, 0
        %v1106 = vsel %vm763, %v1093, 0
        %v1109 = vsel %vm763, %v1094, 0
        %1111 = vmatprep.subr.mxu0 0.0
        %1112 = vmatpush1.msra.mxu0 %v1095
        %1113 = vmatprep.subr.mxu0 0.0
        %1114 = vmatpush1.msra.mxu0 %v1096
        %1115 = vmatprep.subr.mxu0 0.0
        %1116 = vmatpush1.msra.mxu0 %v1097
        %1117 = vmatprep.subr.mxu0 0.0
        %1118 = vmatpush1.msra.mxu0 %v1098
        %1119 = vmatprep.subr.mxu0 0.0
        %1120 = vmatpush1.msra.mxu0 0.0
        %1121 = vmatprep.subr.mxu0 0.0
        %1122 = vmatpush1.msra.mxu0 0.0
        %1123 = vmatprep.subr.mxu0 0.0
        %1124 = vmatpush1.msra.mxu0 0.0
        %1125 = vmatprep.subr.mxu0 0.0
        %1126 = vmatpush1.msra.mxu0 0.0
        %1127 = vmatprep.subr.mxu0 0.0
        %1128 = vmatpush1.msra.mxu0 0.0
        %1129 = vmatprep.subr.mxu0 0.0
        %1130 = vmatpush1.msra.mxu0 0.0
        %1131 = vmatprep.subr.mxu0 0.0
        %1132 = vmatpush1.msra.mxu0 0.0
        %1133 = vmatprep.subr.mxu0 0.0
        %1134 = vmatpush1.msra.mxu0 0.0
        %1135 = vmatprep.subr.mxu0 0.0
        %1136 = vmatpush1.msra.mxu0 0.0
        %1137 = vmatprep.subr.mxu0 0.0
        %1138 = vmatpush1.msra.mxu0 0.0
        %1139 = vmatprep.subr.mxu0 0.0
        %1140 = vmatpush1.msra.mxu0 0.0
        %1141 = vmatprep.subr.mxu0 0.0
        %1142 = vmatpush1.msra.mxu0 0.0
        %1143 = vmatprep.subr.mxu0 0.0
        %1144 = vmatpush1.msra.mxu0 0.0
        %1145 = vmatprep.subr.mxu0 0.0
        %1146 = vmatpush1.msra.mxu0 0.0
        %1147 = vmatprep.subr.mxu0 0.0
        %1148 = vmatpush1.msra.mxu0 0.0
        %1149 = vmatprep.subr.mxu0 0.0
        %1150 = vmatpush1.msra.mxu0 0.0
        %1151 = vmatprep.subr.mxu0 0.0
        %1152 = vmatpush1.msra.mxu0 0.0
        %1153 = vmatprep.subr.mxu0 0.0
        %1154 = vmatpush1.msra.mxu0 0.0
        %1155 = vmatprep.subr.mxu0 0.0
        %1156 = vmatpush1.msra.mxu0 0.0
        %1157 = vmatprep.subr.mxu0 0.0
        %1158 = vmatpush1.msra.mxu0 0.0
        %1159 = vmatprep.subr.mxu0 0.0
        %1160 = vmatpush1.msra.mxu0 0.0
        %1161 = vmatprep.subr.mxu0 0.0
        %1162 = vmatpush1.msra.mxu0 0.0
        %1163 = vmatprep.subr.mxu0 0.0
        %1164 = vmatpush1.msra.mxu0 0.0
        %1165 = vmatprep.subr.mxu0 0.0
        %1166 = vmatpush1.msra.mxu0 0.0
        %1167 = vmatprep.subr.mxu0 0.0
        %1168 = vmatpush1.msra.mxu0 0.0
        %1169 = vmatprep.subr.mxu0 0.0
        %1170 = vmatpush1.msra.mxu0 0.0
        %1171 = vmatprep.subr.mxu0 0.0
        %1172 = vmatpush1.msra.mxu0 0.0
        %1173 = vmatprep.subr.mxu0 0.0
        %1174 = vmatpush1.msra.mxu0 0.0
        %1175 = vmatprep.mubr.f32.mxu0 0.0
        %1176 = vmatmul.mubr.f32.gmra.mrb[0].mxu0 %v1100
        %v1177 = vpop.f32.mrb[0].mxu0
        %v1178 = vadd.f32 0.0, %v1177
        %v1179 = vpop.f32.mrb[0].mxu0
        %1180 = vmatprep.mubr.f32.mxu0 0.0
        %1181 = vmatmul.mubr.f32.gmra.mrb[0].mxu0 %v1103
        %v1182 = vpop.f32.mrb[0].mxu0
        %v1183 = vadd.f32 0.0, %v1182
        %v1184 = vpop.f32.mrb[0].mxu0
        %1185 = vmatprep.mubr.f32.mxu0 0.0
        %1186 = vmatmul.mubr.f32.gmra.mrb[0].mxu0 %v1106
        %v1187 = vpop.f32.mrb[0].mxu0
        %v1188 = vadd.f32 0.0, %v1187
        %v1189 = vpop.f32.mrb[0].mxu0
        %1190 = vmatprep.mubr.f32.mxu0 0.0
        %1191 = vmatmul.mubr.f32.gmra.mrb[0].mxu0 %v1109
        %v1192 = vpop.f32.mrb[0].mxu0
        %v1193 = vadd.f32 0.0, %v1192
        %v1194 = vpop.f32.mrb[0].mxu0
        %1195 = vdwg.mxu0
        %v1196 = vadd.f32 %v978, %v1178
        %v1197 = vadd.f32 %v979, %v1183
        %v1198 = vadd.f32 %v980, %v1188
        %v1199 = vadd.f32 %v981, %v1193
        %vm1200 = vcmask 785408
        %1201 = vst.msk [vmem:[#allocation2] sm:$0xff] %vm1200, %v1087
        %1202 = vst.msk [vmem:[#allocation2 + $0x8] sm:$0xff] %vm1200, %v1088
        %1203 = vst.msk [vmem:[#allocation2 + $0x10] sm:$0xff] %vm1200, %v1089
        %1204 = vst.msk [vmem:[#allocation2 + $0x18] sm:$0xff] %vm1200, %v1090
        %1205 = vst.msk [vmem:[#allocation3] sm:$0xff] %vm1200, %v1196
        %1206 = vst.msk [vmem:[#allocation3 + $0x8] sm:$0xff] %vm1200, %v1197
        %1207 = vst.msk [vmem:[#allocation3 + $0x10] sm:$0xff] %vm1200, %v1198
        %1208 = vst.msk [vmem:[#allocation3 + $0x18] sm:$0xff] %vm1200, %v1199
        %s1209 = scalar_lea.vmem %s660, 32 [#allocation6]
        %v1210 = vld [vmem:[%s1209] sm:$0xff]
        %v1211 = vld [vmem:[%s1209 + $0x8] sm:$0xff]
        %v1212 = vld [vmem:[%s1209 + $0x10] sm:$0xff]
        %v1213 = vld [vmem:[%s1209 + $0x18] sm:$0xff]
        %v1214 = vld [vmem:[%s4] sm:$0xff]
        %v1215 = vld [vmem:[%s4 + $0x8] sm:$0xff]
        %v1216 = vld [vmem:[%s4 + $0x10] sm:$0xff]
        %v1217 = vld [vmem:[%s4 + $0x18] sm:$0xff]
        %v1219 = vsel %vm763, %v1210, 0
        %v1222 = vsel %vm763, %v1211, 0
        %v1225 = vsel %vm763, %v1212, 0
        %v1228 = vsel %vm763, %v1213, 0
        %1230 = vmatprep.subr.mxu0 0.0
        %1231 = vmatpush1.msra.mxu0 %v1214
        %1232 = vmatprep.subr.mxu0 0.0
        %1233 = vmatpush1.msra.mxu0 %v1215
        %1234 = vmatprep.subr.mxu0 0.0
        %1235 = vmatpush1.msra.mxu0 %v1216
        %1236 = vmatprep.subr.mxu0 0.0
        %1237 = vmatpush1.msra.mxu0 %v1217
        %1238 = vmatprep.subr.mxu0 0.0
        %1239 = vmatpush1.msra.mxu0 0.0
        %1240 = vmatprep.subr.mxu0 0.0
        %1241 = vmatpush1.msra.mxu0 0.0
        %1242 = vmatprep.subr.mxu0 0.0
        %1243 = vmatpush1.msra.mxu0 0.0
        %1244 = vmatprep.subr.mxu0 0.0
        %1245 = vmatpush1.msra.mxu0 0.0
        %1246 = vmatprep.subr.mxu0 0.0
        %1247 = vmatpush1.msra.mxu0 0.0
        %1248 = vmatprep.subr.mxu0 0.0
        %1249 = vmatpush1.msra.mxu0 0.0
        %1250 = vmatprep.subr.mxu0 0.0
        %1251 = vmatpush1.msra.mxu0 0.0
        %1252 = vmatprep.subr.mxu0 0.0
        %1253 = vmatpush1.msra.mxu0 0.0
        %1254 = vmatprep.subr.mxu0 0.0
        %1255 = vmatpush1.msra.mxu0 0.0
        %1256 = vmatprep.subr.mxu0 0.0
        %1257 = vmatpush1.msra.mxu0 0.0
        %1258 = vmatprep.subr.mxu0 0.0
        %1259 = vmatpush1.msra.mxu0 0.0
        %1260 = vmatprep.subr.mxu0 0.0
        %1261 = vmatpush1.msra.mxu0 0.0
        %1262 = vmatprep.subr.mxu0 0.0
        %1263 = vmatpush1.msra.mxu0 0.0
        %1264 = vmatprep.subr.mxu0 0.0
        %1265 = vmatpush1.msra.mxu0 0.0
        %1266 = vmatprep.subr.mxu0 0.0
        %1267 = vmatpush1.msra.mxu0 0.0
        %1268 = vmatprep.subr.mxu0 0.0
        %1269 = vmatpush1.msra.mxu0 0.0
        %1270 = vmatprep.subr.mxu0 0.0
        %1271 = vmatpush1.msra.mxu0 0.0
        %1272 = vmatprep.subr.mxu0 0.0
        %1273 = vmatpush1.msra.mxu0 0.0
        %1274 = vmatprep.subr.mxu0 0.0
        %1275 = vmatpush1.msra.mxu0 0.0
        %1276 = vmatprep.subr.mxu0 0.0
        %1277 = vmatpush1.msra.mxu0 0.0
        %1278 = vmatprep.subr.mxu0 0.0
        %1279 = vmatpush1.msra.mxu0 0.0
        %1280 = vmatprep.subr.mxu0 0.0
        %1281 = vmatpush1.msra.mxu0 0.0
        %1282 = vmatprep.subr.mxu0 0.0
        %1283 = vmatpush1.msra.mxu0 0.0
        %1284 = vmatprep.subr.mxu0 0.0
        %1285 = vmatpush1.msra.mxu0 0.0
        %1286 = vmatprep.subr.mxu0 0.0
        %1287 = vmatpush1.msra.mxu0 0.0
        %1288 = vmatprep.subr.mxu0 0.0
        %1289 = vmatpush1.msra.mxu0 0.0
        %1290 = vmatprep.subr.mxu0 0.0
        %1291 = vmatpush1.msra.mxu0 0.0
        %1292 = vmatprep.subr.mxu0 0.0
        %1293 = vmatpush1.msra.mxu0 0.0
        %1294 = vmatprep.mubr.f32.mxu0 0.0
        %1295 = vmatmul.mubr.f32.gmra.mrb[0].mxu0 %v1219
        %v1296 = vpop.f32.mrb[0].mxu0
        %v1297 = vadd.f32 0.0, %v1296
        %v1298 = vpop.f32.mrb[0].mxu0
        %1299 = vmatprep.mubr.f32.mxu0 0.0
        %1300 = vmatmul.mubr.f32.gmra.mrb[0].mxu0 %v1222
        %v1301 = vpop.f32.mrb[0].mxu0
        %v1302 = vadd.f32 0.0, %v1301
        %v1303 = vpop.f32.mrb[0].mxu0
        %1304 = vmatprep.mubr.f32.mxu0 0.0
        %1305 = vmatmul.mubr.f32.gmra.mrb[0].mxu0 %v1225
        %v1306 = vpop.f32.mrb[0].mxu0
        %v1307 = vadd.f32 0.0, %v1306
        %v1308 = vpop.f32.mrb[0].mxu0
        %1309 = vmatprep.mubr.f32.mxu0 0.0
        %1310 = vmatmul.mubr.f32.gmra.mrb[0].mxu0 %v1228
        %v1311 = vpop.f32.mrb[0].mxu0
        %v1312 = vadd.f32 0.0, %v1311
        %v1313 = vpop.f32.mrb[0].mxu0
        %1314 = vdwg.mxu0
        %v1315 = vadd.f32 %v864, %v1297
        %v1316 = vadd.f32 %v864, %v1302
        %v1317 = vadd.f32 %v864, %v1307
        %v1318 = vadd.f32 %v864, %v1312
        %s1319 = scalar_lea.vmem %s674, 32 [#allocation8]
        %v1320 = vld [vmem:[%s1319] sm:$0xff]
        %v1321 = vld [vmem:[%s1319 + $0x8] sm:$0xff]
        %v1322 = vld [vmem:[%s1319 + $0x10] sm:$0xff]
        %v1323 = vld [vmem:[%s1319 + $0x18] sm:$0xff]
        %v1324 = vld [vmem:[%s6] sm:$0xff]
        %v1325 = vld [vmem:[%s6 + $0x8] sm:$0xff]
        %v1326 = vld [vmem:[%s6 + $0x10] sm:$0xff]
        %v1327 = vld [vmem:[%s6 + $0x18] sm:$0xff]
        %v1329 = vsel %vm763, %v1320, 0
        %v1332 = vsel %vm763, %v1321, 0
        %v1335 = vsel %vm763, %v1322, 0
        %v1338 = vsel %vm763, %v1323, 0
        %1340 = vmatprep.subr.mxu0 0.0
        %1341 = vmatpush1.msra.mxu0 %v1324
        %1342 = vmatprep.subr.mxu0 0.0
        %1343 = vmatpush1.msra.mxu0 %v1325
        %1344 = vmatprep.subr.mxu0 0.0
        %1345 = vmatpush1.msra.mxu0 %v1326
        %1346 = vmatprep.subr.mxu0 0.0
        %1347 = vmatpush1.msra.mxu0 %v1327
        %1348 = vmatprep.subr.mxu0 0.0
        %1349 = vmatpush1.msra.mxu0 0.0
        %1350 = vmatprep.subr.mxu0 0.0
        %1351 = vmatpush1.msra.mxu0 0.0
        %1352 = vmatprep.subr.mxu0 0.0
        %1353 = vmatpush1.msra.mxu0 0.0
        %1354 = vmatprep.subr.mxu0 0.0
        %1355 = vmatpush1.msra.mxu0 0.0
        %1356 = vmatprep.subr.mxu0 0.0
        %1357 = vmatpush1.msra.mxu0 0.0
        %1358 = vmatprep.subr.mxu0 0.0
        %1359 = vmatpush1.msra.mxu0 0.0
        %1360 = vmatprep.subr.mxu0 0.0
        %1361 = vmatpush1.msra.mxu0 0.0
        %1362 = vmatprep.subr.mxu0 0.0
        %1363 = vmatpush1.msra.mxu0 0.0
        %1364 = vmatprep.subr.mxu0 0.0
        %1365 = vmatpush1.msra.mxu0 0.0
        %1366 = vmatprep.subr.mxu0 0.0
        %1367 = vmatpush1.msra.mxu0 0.0
        %1368 = vmatprep.subr.mxu0 0.0
        %1369 = vmatpush1.msra.mxu0 0.0
        %1370 = vmatprep.subr.mxu0 0.0
        %1371 = vmatpush1.msra.mxu0 0.0
        %1372 = vmatprep.subr.mxu0 0.0
        %1373 = vmatpush1.msra.mxu0 0.0
        %1374 = vmatprep.subr.mxu0 0.0
        %1375 = vmatpush1.msra.mxu0 0.0
        %1376 = vmatprep.subr.mxu0 0.0
        %1377 = vmatpush1.msra.mxu0 0.0
        %1378 = vmatprep.subr.mxu0 0.0
        %1379 = vmatpush1.msra.mxu0 0.0
        %1380 = vmatprep.subr.mxu0 0.0
        %1381 = vmatpush1.msra.mxu0 0.0
        %1382 = vmatprep.subr.mxu0 0.0
        %1383 = vmatpush1.msra.mxu0 0.0
        %1384 = vmatprep.subr.mxu0 0.0
        %1385 = vmatpush1.msra.mxu0 0.0
        %1386 = vmatprep.subr.mxu0 0.0
        %1387 = vmatpush1.msra.mxu0 0.0
        %1388 = vmatprep.subr.mxu0 0.0
        %1389 = vmatpush1.msra.mxu0 0.0
        %1390 = vmatprep.subr.mxu0 0.0
        %1391 = vmatpush1.msra.mxu0 0.0
        %1392 = vmatprep.subr.mxu0 0.0
        %1393 = vmatpush1.msra.mxu0 0.0
        %1394 = vmatprep.subr.mxu0 0.0
        %1395 = vmatpush1.msra.mxu0 0.0
        %1396 = vmatprep.subr.mxu0 0.0
        %1397 = vmatpush1.msra.mxu0 0.0
        %1398 = vmatprep.subr.mxu0 0.0
        %1399 = vmatpush1.msra.mxu0 0.0
        %1400 = vmatprep.subr.mxu0 0.0
        %1401 = vmatpush1.msra.mxu0 0.0
        %1402 = vmatprep.subr.mxu0 0.0
        %1403 = vmatpush1.msra.mxu0 0.0
        %1404 = vmatprep.mubr.f32.mxu0 0.0
        %1405 = vmatmul.mubr.f32.gmra.mrb[0].mxu0 %v1329
        %v1406 = vpop.f32.mrb[0].mxu0
        %v1407 = vadd.f32 0.0, %v1406
        %v1408 = vpop.f32.mrb[0].mxu0
        %1409 = vmatprep.mubr.f32.mxu0 0.0
        %1410 = vmatmul.mubr.f32.gmra.mrb[0].mxu0 %v1332
        %v1411 = vpop.f32.mrb[0].mxu0
        %v1412 = vadd.f32 0.0, %v1411
        %v1413 = vpop.f32.mrb[0].mxu0
        %1414 = vmatprep.mubr.f32.mxu0 0.0
        %1415 = vmatmul.mubr.f32.gmra.mrb[0].mxu0 %v1335
        %v1416 = vpop.f32.mrb[0].mxu0
        %v1417 = vadd.f32 0.0, %v1416
        %v1418 = vpop.f32.mrb[0].mxu0
        %1419 = vmatprep.mubr.f32.mxu0 0.0
        %1420 = vmatmul.mubr.f32.gmra.mrb[0].mxu0 %v1338
        %v1421 = vpop.f32.mrb[0].mxu0
        %v1422 = vadd.f32 0.0, %v1421
        %v1423 = vpop.f32.mrb[0].mxu0
        %1424 = vdwg.mxu0
        %v1425 = vadd.f32 %v977, %v1407
        %v1426 = vadd.f32 %v977, %v1412
        %v1427 = vadd.f32 %v977, %v1417
        %v1428 = vadd.f32 %v977, %v1422
        %s1429 = scalar_lea.vmem %s667, 32 [#allocation7]
        %v1430 = vld [vmem:[%s1429] sm:$0xff]
        %v1431 = vld [vmem:[%s1429 + $0x8] sm:$0xff]
        %v1432 = vld [vmem:[%s1429 + $0x10] sm:$0xff]
        %v1433 = vld [vmem:[%s1429 + $0x18] sm:$0xff]
        %v1434 = vld [vmem:[%s5] sm:$0xff]
        %v1435 = vld [vmem:[%s5 + $0x8] sm:$0xff]
        %v1436 = vld [vmem:[%s5 + $0x10] sm:$0xff]
        %v1437 = vld [vmem:[%s5 + $0x18] sm:$0xff]
        %v1439 = vsel %vm763, %v1430, 0
        %v1442 = vsel %vm763, %v1431, 0
        %v1445 = vsel %vm763, %v1432, 0
        %v1448 = vsel %vm763, %v1433, 0
        %1450 = vmatprep.subr.mxu0 0.0
        %1451 = vmatpush1.msra.mxu0 %v1434
        %1452 = vmatprep.subr.mxu0 0.0
        %1453 = vmatpush1.msra.mxu0 %v1435
        %1454 = vmatprep.subr.mxu0 0.0
        %1455 = vmatpush1.msra.mxu0 %v1436
        %1456 = vmatprep.subr.mxu0 0.0
        %1457 = vmatpush1.msra.mxu0 %v1437
        %1458 = vmatprep.subr.mxu0 0.0
        %1459 = vmatpush1.msra.mxu0 0.0
        %1460 = vmatprep.subr.mxu0 0.0
        %1461 = vmatpush1.msra.mxu0 0.0
        %1462 = vmatprep.subr.mxu0 0.0
        %1463 = vmatpush1.msra.mxu0 0.0
        %1464 = vmatprep.subr.mxu0 0.0
        %1465 = vmatpush1.msra.mxu0 0.0
        %1466 = vmatprep.subr.mxu0 0.0
        %1467 = vmatpush1.msra.mxu0 0.0
        %1468 = vmatprep.subr.mxu0 0.0
        %1469 = vmatpush1.msra.mxu0 0.0
        %1470 = vmatprep.subr.mxu0 0.0
        %1471 = vmatpush1.msra.mxu0 0.0
        %1472 = vmatprep.subr.mxu0 0.0
        %1473 = vmatpush1.msra.mxu0 0.0
        %1474 = vmatprep.subr.mxu0 0.0
        %1475 = vmatpush1.msra.mxu0 0.0
        %1476 = vmatprep.subr.mxu0 0.0
        %1477 = vmatpush1.msra.mxu0 0.0
        %1478 = vmatprep.subr.mxu0 0.0
        %1479 = vmatpush1.msra.mxu0 0.0
        %1480 = vmatprep.subr.mxu0 0.0
        %1481 = vmatpush1.msra.mxu0 0.0
        %1482 = vmatprep.subr.mxu0 0.0
        %1483 = vmatpush1.msra.mxu0 0.0
        %1484 = vmatprep.subr.mxu0 0.0
        %1485 = vmatpush1.msra.mxu0 0.0
        %1486 = vmatprep.subr.mxu0 0.0
        %1487 = vmatpush1.msra.mxu0 0.0
        %1488 = vmatprep.subr.mxu0 0.0
        %1489 = vmatpush1.msra.mxu0 0.0
        %1490 = vmatprep.subr.mxu0 0.0
        %1491 = vmatpush1.msra.mxu0 0.0
        %1492 = vmatprep.subr.mxu0 0.0
        %1493 = vmatpush1.msra.mxu0 0.0
        %1494 = vmatprep.subr.mxu0 0.0
        %1495 = vmatpush1.msra.mxu0 0.0
        %1496 = vmatprep.subr.mxu0 0.0
        %1497 = vmatpush1.msra.mxu0 0.0
        %1498 = vmatprep.subr.mxu0 0.0
        %1499 = vmatpush1.msra.mxu0 0.0
        %1500 = vmatprep.subr.mxu0 0.0
        %1501 = vmatpush1.msra.mxu0 0.0
        %1502 = vmatprep.subr.mxu0 0.0
        %1503 = vmatpush1.msra.mxu0 0.0
        %1504 = vmatprep.subr.mxu0 0.0
        %1505 = vmatpush1.msra.mxu0 0.0
        %1506 = vmatprep.subr.mxu0 0.0
        %1507 = vmatpush1.msra.mxu0 0.0
        %1508 = vmatprep.subr.mxu0 0.0
        %1509 = vmatpush1.msra.mxu0 0.0
        %1510 = vmatprep.subr.mxu0 0.0
        %1511 = vmatpush1.msra.mxu0 0.0
        %1512 = vmatprep.subr.mxu0 0.0
        %1513 = vmatpush1.msra.mxu0 0.0
        %1514 = vmatprep.mubr.f32.mxu0 0.0
        %1515 = vmatmul.mubr.f32.gmra.mrb[0].mxu0 %v1439
        %v1516 = vpop.f32.mrb[0].mxu0
        %v1517 = vadd.f32 0.0, %v1516
        %v1518 = vpop.f32.mrb[0].mxu0
        %1519 = vmatprep.mubr.f32.mxu0 0.0
        %1520 = vmatmul.mubr.f32.gmra.mrb[0].mxu0 %v1442
        %v1521 = vpop.f32.mrb[0].mxu0
        %v1522 = vadd.f32 0.0, %v1521
        %v1523 = vpop.f32.mrb[0].mxu0
        %1524 = vmatprep.mubr.f32.mxu0 0.0
        %1525 = vmatmul.mubr.f32.gmra.mrb[0].mxu0 %v1445
        %v1526 = vpop.f32.mrb[0].mxu0
        %v1527 = vadd.f32 0.0, %v1526
        %v1528 = vpop.f32.mrb[0].mxu0
        %1529 = vmatprep.mubr.f32.mxu0 0.0
        %1530 = vmatmul.mubr.f32.gmra.mrb[0].mxu0 %v1448
        %v1531 = vpop.f32.mrb[0].mxu0
        %v1532 = vadd.f32 0.0, %v1531
        %v1533 = vpop.f32.mrb[0].mxu0
        %1534 = vdwg.mxu0
        %v1535 = vadd.f32 %v1315, %v1517
        %v1536 = vadd.f32 %v1316, %v1522
        %v1537 = vadd.f32 %v1317, %v1527
        %v1538 = vadd.f32 %v1318, %v1532
        %s1539 = scalar_lea.vmem %s681, 32 [#allocation9]
        %v1540 = vld [vmem:[%s1539] sm:$0xff]
        %v1541 = vld [vmem:[%s1539 + $0x8] sm:$0xff]
        %v1542 = vld [vmem:[%s1539 + $0x10] sm:$0xff]
        %v1543 = vld [vmem:[%s1539 + $0x18] sm:$0xff]
        %v1544 = vld [vmem:[%s7] sm:$0xff]
        %v1545 = vld [vmem:[%s7 + $0x8] sm:$0xff]
        %v1546 = vld [vmem:[%s7 + $0x10] sm:$0xff]
        %v1547 = vld [vmem:[%s7 + $0x18] sm:$0xff]
        %v1549 = vsel %vm763, %v1540, 0
        %v1552 = vsel %vm763, %v1541, 0
        %v1555 = vsel %vm763, %v1542, 0
        %v1558 = vsel %vm763, %v1543, 0
        %1560 = vmatprep.subr.mxu0 0.0
        %1561 = vmatpush1.msra.mxu0 %v1544
        %1562 = vmatprep.subr.mxu0 0.0
        %1563 = vmatpush1.msra.mxu0 %v1545
        %1564 = vmatprep.subr.mxu0 0.0
        %1565 = vmatpush1.msra.mxu0 %v1546
        %1566 = vmatprep.subr.mxu0 0.0
        %1567 = vmatpush1.msra.mxu0 %v1547
        %1568 = vmatprep.subr.mxu0 0.0
        %1569 = vmatpush1.msra.mxu0 0.0
        %1570 = vmatprep.subr.mxu0 0.0
        %1571 = vmatpush1.msra.mxu0 0.0
        %1572 = vmatprep.subr.mxu0 0.0
        %1573 = vmatpush1.msra.mxu0 0.0
        %1574 = vmatprep.subr.mxu0 0.0
        %1575 = vmatpush1.msra.mxu0 0.0
        %1576 = vmatprep.subr.mxu0 0.0
        %1577 = vmatpush1.msra.mxu0 0.0
        %1578 = vmatprep.subr.mxu0 0.0
        %1579 = vmatpush1.msra.mxu0 0.0
        %1580 = vmatprep.subr.mxu0 0.0
        %1581 = vmatpush1.msra.mxu0 0.0
        %1582 = vmatprep.subr.mxu0 0.0
        %1583 = vmatpush1.msra.mxu0 0.0
        %1584 = vmatprep.subr.mxu0 0.0
        %1585 = vmatpush1.msra.mxu0 0.0
        %1586 = vmatprep.subr.mxu0 0.0
        %1587 = vmatpush1.msra.mxu0 0.0
        %1588 = vmatprep.subr.mxu0 0.0
        %1589 = vmatpush1.msra.mxu0 0.0
        %1590 = vmatprep.subr.mxu0 0.0
        %1591 = vmatpush1.msra.mxu0 0.0
        %1592 = vmatprep.subr.mxu0 0.0
        %1593 = vmatpush1.msra.mxu0 0.0
        %1594 = vmatprep.subr.mxu0 0.0
        %1595 = vmatpush1.msra.mxu0 0.0
        %1596 = vmatprep.subr.mxu0 0.0
        %1597 = vmatpush1.msra.mxu0 0.0
        %1598 = vmatprep.subr.mxu0 0.0
        %1599 = vmatpush1.msra.mxu0 0.0
        %1600 = vmatprep.subr.mxu0 0.0
        %1601 = vmatpush1.msra.mxu0 0.0
        %1602 = vmatprep.subr.mxu0 0.0
        %1603 = vmatpush1.msra.mxu0 0.0
        %1604 = vmatprep.subr.mxu0 0.0
        %1605 = vmatpush1.msra.mxu0 0.0
        %1606 = vmatprep.subr.mxu0 0.0
        %1607 = vmatpush1.msra.mxu0 0.0
        %1608 = vmatprep.subr.mxu0 0.0
        %1609 = vmatpush1.msra.mxu0 0.0
        %1610 = vmatprep.subr.mxu0 0.0
        %1611 = vmatpush1.msra.mxu0 0.0
        %1612 = vmatprep.subr.mxu0 0.0
        %1613 = vmatpush1.msra.mxu0 0.0
        %1614 = vmatprep.subr.mxu0 0.0
        %1615 = vmatpush1.msra.mxu0 0.0
        %1616 = vmatprep.subr.mxu0 0.0
        %1617 = vmatpush1.msra.mxu0 0.0
        %1618 = vmatprep.subr.mxu0 0.0
        %1619 = vmatpush1.msra.mxu0 0.0
        %1620 = vmatprep.subr.mxu0 0.0
        %1621 = vmatpush1.msra.mxu0 0.0
        %1622 = vmatprep.subr.mxu0 0.0
        %1623 = vmatpush1.msra.mxu0 0.0
        %1624 = vmatprep.mubr.f32.mxu0 0.0
        %1625 = vmatmul.mubr.f32.gmra.mrb[0].mxu0 %v1549
        %v1626 = vpop.f32.mrb[0].mxu0
        %v1627 = vadd.f32 0.0, %v1626
        %v1628 = vpop.f32.mrb[0].mxu0
        %1629 = vmatprep.mubr.f32.mxu0 0.0
        %1630 = vmatmul.mubr.f32.gmra.mrb[0].mxu0 %v1552
        %v1631 = vpop.f32.mrb[0].mxu0
        %v1632 = vadd.f32 0.0, %v1631
        %v1633 = vpop.f32.mrb[0].mxu0
        %1634 = vmatprep.mubr.f32.mxu0 0.0
        %1635 = vmatmul.mubr.f32.gmra.mrb[0].mxu0 %v1555
        %v1636 = vpop.f32.mrb[0].mxu0
        %v1637 = vadd.f32 0.0, %v1636
        %v1638 = vpop.f32.mrb[0].mxu0
        %1639 = vmatprep.mubr.f32.mxu0 0.0
        %1640 = vmatmul.mubr.f32.gmra.mrb[0].mxu0 %v1558
        %v1641 = vpop.f32.mrb[0].mxu0
        %v1642 = vadd.f32 0.0, %v1641
        %v1643 = vpop.f32.mrb[0].mxu0
        %1644 = vdwg.mxu0
        %v1645 = vadd.f32 %v1425, %v1627
        %v1646 = vadd.f32 %v1426, %v1632
        %v1647 = vadd.f32 %v1427, %v1637
        %v1648 = vadd.f32 %v1428, %v1642
        %s1649 = scalar_lea.vmem [#allocation2], 32
        %1650 = vst.msk [vmem:[%s1649] sm:$0xff] %vm1200, %v1535
        %1651 = vst.msk [vmem:[%s1649 + $0x8] sm:$0xff] %vm1200, %v1536
        %1652 = vst.msk [vmem:[%s1649 + $0x10] sm:$0xff] %vm1200, %v1537
        %1653 = vst.msk [vmem:[%s1649 + $0x18] sm:$0xff] %vm1200, %v1538
        %s1654 = scalar_lea.vmem [#allocation3], 32
        %1655 = vst.msk [vmem:[%s1654] sm:$0xff] %vm1200, %v1645
        %1656 = vst.msk [vmem:[%s1654 + $0x8] sm:$0xff] %vm1200, %v1646
        %1657 = vst.msk [vmem:[%s1654 + $0x10] sm:$0xff] %vm1200, %v1647
        %1658 = vst.msk [vmem:[%s1654 + $0x18] sm:$0xff] %vm1200, %v1648
        %v1659 = vld [vmem:[%s8] sm:$0xff]
        %v1660 = vld [vmem:[%s8 + $0x8] sm:$0xff]
        %v1661 = vld [vmem:[%s8 + $0x10] sm:$0xff]
        %v1662 = vld [vmem:[%s8 + $0x18] sm:$0xff]
        %v1663 = vld [vmem:[%s9] sm:$0xff]
        %v1664 = vld [vmem:[%s9 + $0x8] sm:$0xff]
        %v1665 = vld [vmem:[%s9 + $0x10] sm:$0xff]
        %v1666 = vld [vmem:[%s9 + $0x18] sm:$0xff]
        %v1667 = vld [vmem:[#allocation4] sm:$0x3]
        %v1668 = vld [vmem:[#allocation5] sm:$0x3]
        loop: start=0, step=1, limit=32
        $region221: #{_lambda_.3} parent=199 // loop_pre_header
          _
        $region222: #{_lambda_.3} parent=199 // loop_header
          %s1670 = sphi 0, %s1674
          %p1671 = scmp.ge.s32.totalorder %s1670, 32
          %v1675 = vphi %v1667, %v2004
          %v1676 = vphi %v1668, %v2009
        $region223: #{_lambda_.3} parent=199 // loop_header_branch
          %1673 = sbr.rel (%p1671) target = $region227
        $region224: #{_lambda_.3} parent=199 // loop_body
          %s1677 = scalar_lea.vmem [#allocation2], %s1670
          %v1678 = vld [vmem:[%s1677] sm:$0x1]
          %v1679 = vld [vmem:[%s1677 + $0x20] sm:$0x1]
          %v1680 = vlaneseq
          %v1681 = vshrl.u32 %v1680, 7
          %v1682 = vsub.s32 0, %v1681
          %v1683 = vrot.slane %v752, %v1682
          %v1685 = vsel %vm763, %v1675, 0
          %1687 = vmatprep.subr.mxu0 0.0
          %1688 = vmatpush1.msra.mxu0 %v1659
          %1689 = vmatprep.subr.mxu0 0.0
          %1690 = vmatpush1.msra.mxu0 %v1660
          %1691 = vmatprep.subr.mxu0 0.0
          %1692 = vmatpush1.msra.mxu0 %v1661
          %1693 = vmatprep.subr.mxu0 0.0
          %1694 = vmatpush1.msra.mxu0 %v1662
          %1695 = vmatprep.subr.mxu0 0.0
          %1696 = vmatpush1.msra.mxu0 0.0
          %1697 = vmatprep.subr.mxu0 0.0
          %1698 = vmatpush1.msra.mxu0 0.0
          %1699 = vmatprep.subr.mxu0 0.0
          %1700 = vmatpush1.msra.mxu0 0.0
          %1701 = vmatprep.subr.mxu0 0.0
          %1702 = vmatpush1.msra.mxu0 0.0
          %1703 = vmatprep.subr.mxu0 0.0
          %1704 = vmatpush1.msra.mxu0 0.0
          %1705 = vmatprep.subr.mxu0 0.0
          %1706 = vmatpush1.msra.mxu0 0.0
          %1707 = vmatprep.subr.mxu0 0.0
          %1708 = vmatpush1.msra.mxu0 0.0
          %1709 = vmatprep.subr.mxu0 0.0
          %1710 = vmatpush1.msra.mxu0 0.0
          %1711 = vmatprep.subr.mxu0 0.0
          %1712 = vmatpush1.msra.mxu0 0.0
          %1713 = vmatprep.subr.mxu0 0.0
          %1714 = vmatpush1.msra.mxu0 0.0
          %1715 = vmatprep.subr.mxu0 0.0
          %1716 = vmatpush1.msra.mxu0 0.0
          %1717 = vmatprep.subr.mxu0 0.0
          %1718 = vmatpush1.msra.mxu0 0.0
          %1719 = vmatprep.subr.mxu0 0.0
          %1720 = vmatpush1.msra.mxu0 0.0
          %1721 = vmatprep.subr.mxu0 0.0
          %1722 = vmatpush1.msra.mxu0 0.0
          %1723 = vmatprep.subr.mxu0 0.0
          %1724 = vmatpush1.msra.mxu0 0.0
          %1725 = vmatprep.subr.mxu0 0.0
          %1726 = vmatpush1.msra.mxu0 0.0
          %1727 = vmatprep.subr.mxu0 0.0
          %1728 = vmatpush1.msra.mxu0 0.0
          %1729 = vmatprep.subr.mxu0 0.0
          %1730 = vmatpush1.msra.mxu0 0.0
          %1731 = vmatprep.subr.mxu0 0.0
          %1732 = vmatpush1.msra.mxu0 0.0
          %1733 = vmatprep.subr.mxu0 0.0
          %1734 = vmatpush1.msra.mxu0 0.0
          %1735 = vmatprep.subr.mxu0 0.0
          %1736 = vmatpush1.msra.mxu0 0.0
          %1737 = vmatprep.subr.mxu0 0.0
          %1738 = vmatpush1.msra.mxu0 0.0
          %1739 = vmatprep.subr.mxu0 0.0
          %1740 = vmatpush1.msra.mxu0 0.0
          %1741 = vmatprep.subr.mxu0 0.0
          %1742 = vmatpush1.msra.mxu0 0.0
          %1743 = vmatprep.subr.mxu0 0.0
          %1744 = vmatpush1.msra.mxu0 0.0
          %1745 = vmatprep.subr.mxu0 0.0
          %1746 = vmatpush1.msra.mxu0 0.0
          %1747 = vmatprep.subr.mxu0 0.0
          %1748 = vmatpush1.msra.mxu0 0.0
          %1749 = vmatprep.subr.mxu0 0.0
          %1750 = vmatpush1.msra.mxu0 0.0
          %1751 = vmatprep.mubr.f32.mxu0 0.0
          %1752 = vmatmul.mubr.f32.gmra.mrb[0].mxu0 %v1685
          %v1753 = vpop.f32.mrb[0].mxu0
          %v1754 = vadd.f32 %v1683, %v1753
          %v1755 = vpop.f32.mrb[0].mxu0
          %1756 = vdwg.mxu0
          %v1758 = vrot.slane %v1754, 1
          %v1761 = vadd.f32 %v1678, %v1754
          %v1762 = vadd.f32 %v1679, %v1758
          %v1763 = vxor.u32 %v1761, 2147483648
          %v1764 = vxor.u32 %v1762, 2147483648
          %v1765 = vmul.f32 %v1763, 1.442695
          %v1766 = vpow.pop %v1765
          %v1767 = vmul.f32 %v1764, 1.442695
          %v1768 = vpow.pop %v1767
          %v1769 = vadd.f32 %v1766, 1.0
          %v1770 = vadd.f32 %v1768, 1.0
          %v1771 = vrcp.pop %v1769
          %v1772 = vmul.f32 1.0, %v1771
          %v1773 = vrcp.pop %v1770
          %v1774 = vmul.f32 1.0, %v1773
          %1775 = vrot.lane.b32.xlu0 %v1754, 64
          %v1776 = vpop.permute.xlu0 %1775
          %1777 = vrot.lane.b32.xlu0 %v1758, 64
          %v1778 = vpop.permute.xlu0 %1777
          %v1781 = vmul.f32 %v1772, %v1776
          %v1782 = vmul.f32 %v1774, %v1778
          %1785 = vrot.lane.b32.xlu0 %v1781, 64
          %v1786 = vpop.permute.xlu0 %1785
          %1787 = vrot.lane.b32.xlu0 %v1782, 64
          %v1788 = vpop.permute.xlu0 %1787
          %v1791 = vadd.f32 %v1678, %v1786
          %v1792 = vadd.f32 %v1679, %v1788
          %v1793 = vtanh.pop %v1791
          %v1794 = vtanh.pop %v1792
          %v1795 = vsub.f32 1.0, %v1772
          %v1796 = vsub.f32 1.0, %v1774
          %1799 = vrot.lane.b32.xlu0 %v1793, 96
          %v1800 = vpop.permute.xlu0 %1799
          %1801 = vrot.lane.b32.xlu0 %v1794, 96
          %v1802 = vpop.permute.xlu0 %1801
          %v1805 = vmul.f32 %v1795, %v1800
          %v1806 = vmul.f32 %v1796, %v1802
          %v1807 = vrot.slane %v1675, 1
          %1808 = vrot.lane.b32.xlu0 %v1675, 32
          %v1809 = vpop.permute.xlu0 %1808
          %1810 = vrot.lane.b32.xlu0 %v1807, 32
          %v1811 = vpop.permute.xlu0 %1810
          %v1814 = vmul.f32 %v1772, %v1809
          %v1815 = vmul.f32 %v1774, %v1811
          %v1816 = vadd.f32 %v1805, %v1814
          %v1817 = vadd.f32 %v1806, %v1815
          %s1818 = smul.u32 %s24, 32
          %s1819 = sadd.s32 %s1818, %s1670
          %p1820 = scmp.lt.s32.totalorder %s1819, 72
          %s1821 = scalar_select %p1820, 1, 0
          %v1822 = vstv %s1821
          %vm1823 = vcmp.eq.s32.totalorder %v1822, 1
          %v1824 = vsel %vm1823, %v1816, %v1809
          %v1825 = vsel %vm1823, %v1817, %v1811
          %1828 = vrot.lane.b32.xlu0 %v1824, 96
          %v1829 = vpop.permute.xlu0 %1828
          %1830 = vrot.lane.b32.xlu0 %v1825, 96
          %v1831 = vpop.permute.xlu0 %1830
          %s1834 = scalar_lea.vmem %s728, %s1670 [#allocation10]
          %vm1835 = vcmask 253952
          %1836 = vst.msk [vmem:[%s1834] sm:$0x1] %vm1835, %v1829
          %1837 = vst.msk [vmem:[%s1834 + $0x20] sm:$0x1] %vm1835, %v1831
          %s1838 = ssub.s32 31, %s1670
          %s1839 = scalar_lea.vmem [#allocation3], %s1838
          %v1840 = vld [vmem:[%s1839] sm:$0x1]
          %v1841 = vld [vmem:[%s1839 + $0x20] sm:$0x1]
          %v1842 = vlaneseq
          %v1843 = vshrl.u32 %v1842, 7
          %v1844 = vsub.s32 0, %v1843
          %v1845 = vrot.slane %v754, %v1844
          %v1847 = vsel %vm763, %v1676, 0
          %1849 = vmatprep.subr.mxu0 0.0
          %1850 = vmatpush1.msra.mxu0 %v1663
          %1851 = vmatprep.subr.mxu0 0.0
          %1852 = vmatpush1.msra.mxu0 %v1664
          %1853 = vmatprep.subr.mxu0 0.0
          %1854 = vmatpush1.msra.mxu0 %v1665
          %1855 = vmatprep.subr.mxu0 0.0
          %1856 = vmatpush1.msra.mxu0 %v1666
          %1857 = vmatprep.subr.mxu0 0.0
          %1858 = vmatpush1.msra.mxu0 0.0
          %1859 = vmatprep.subr.mxu0 0.0
          %1860 = vmatpush1.msra.mxu0 0.0
          %1861 = vmatprep.subr.mxu0 0.0
          %1862 = vmatpush1.msra.mxu0 0.0
          %1863 = vmatprep.subr.mxu0 0.0
          %1864 = vmatpush1.msra.mxu0 0.0
          %1865 = vmatprep.subr.mxu0 0.0
          %1866 = vmatpush1.msra.mxu0 0.0
          %1867 = vmatprep.subr.mxu0 0.0
          %1868 = vmatpush1.msra.mxu0 0.0
          %1869 = vmatprep.subr.mxu0 0.0
          %1870 = vmatpush1.msra.mxu0 0.0
          %1871 = vmatprep.subr.mxu0 0.0
          %1872 = vmatpush1.msra.mxu0 0.0
          %1873 = vmatprep.subr.mxu0 0.0
          %1874 = vmatpush1.msra.mxu0 0.0
          %1875 = vmatprep.subr.mxu0 0.0
          %1876 = vmatpush1.msra.mxu0 0.0
          %1877 = vmatprep.subr.mxu0 0.0
          %1878 = vmatpush1.msra.mxu0 0.0
          %1879 = vmatprep.subr.mxu0 0.0
          %1880 = vmatpush1.msra.mxu0 0.0
          %1881 = vmatprep.subr.mxu0 0.0
          %1882 = vmatpush1.msra.mxu0 0.0
          %1883 = vmatprep.subr.mxu0 0.0
          %1884 = vmatpush1.msra.mxu0 0.0
          %1885 = vmatprep.subr.mxu0 0.0
          %1886 = vmatpush1.msra.mxu0 0.0
          %1887 = vmatprep.subr.mxu0 0.0
          %1888 = vmatpush1.msra.mxu0 0.0
          %1889 = vmatprep.subr.mxu0 0.0
          %1890 = vmatpush1.msra.mxu0 0.0
          %1891 = vmatprep.subr.mxu0 0.0
          %1892 = vmatpush1.msra.mxu0 0.0
          %1893 = vmatprep.subr.mxu0 0.0
          %1894 = vmatpush1.msra.mxu0 0.0
          %1895 = vmatprep.subr.mxu0 0.0
          %1896 = vmatpush1.msra.mxu0 0.0
          %1897 = vmatprep.subr.mxu0 0.0
          %1898 = vmatpush1.msra.mxu0 0.0
          %1899 = vmatprep.subr.mxu0 0.0
          %1900 = vmatpush1.msra.mxu0 0.0
          %1901 = vmatprep.subr.mxu0 0.0
          %1902 = vmatpush1.msra.mxu0 0.0
          %1903 = vmatprep.subr.mxu0 0.0
          %1904 = vmatpush1.msra.mxu0 0.0
          %1905 = vmatprep.subr.mxu0 0.0
          %1906 = vmatpush1.msra.mxu0 0.0
          %1907 = vmatprep.subr.mxu0 0.0
          %1908 = vmatpush1.msra.mxu0 0.0
          %1909 = vmatprep.subr.mxu0 0.0
          %1910 = vmatpush1.msra.mxu0 0.0
          %1911 = vmatprep.subr.mxu0 0.0
          %1912 = vmatpush1.msra.mxu0 0.0
          %1913 = vmatprep.mubr.f32.mxu0 0.0
          %1914 = vmatmul.mubr.f32.gmra.mrb[0].mxu0 %v1847
          %v1915 = vpop.f32.mrb[0].mxu0
          %v1916 = vadd.f32 %v1845, %v1915
          %v1917 = vpop.f32.mrb[0].mxu0
          %1918 = vdwg.mxu0
          %v1920 = vrot.slane %v1916, 1
          %v1923 = vadd.f32 %v1840, %v1916
          %v1924 = vadd.f32 %v1841, %v1920
          %v1925 = vxor.u32 %v1923, 2147483648
          %v1926 = vxor.u32 %v1924, 2147483648
          %v1927 = vmul.f32 %v1925, 1.442695
          %v1928 = vpow.pop %v1927
          %v1929 = vmul.f32 %v1926, 1.442695
          %v1930 = vpow.pop %v1929
          %v1931 = vadd.f32 %v1928, 1.0
          %v1932 = vadd.f32 %v1930, 1.0
          %v1933 = vrcp.pop %v1931
          %v1934 = vmul.f32 1.0, %v1933
          %v1935 = vrcp.pop %v1932
          %v1936 = vmul.f32 1.0, %v1935
          %1937 = vrot.lane.b32.xlu0 %v1916, 64
          %v1938 = vpop.permute.xlu0 %1937
          %1939 = vrot.lane.b32.xlu0 %v1920, 64
          %v1940 = vpop.permute.xlu0 %1939
          %v1943 = vmul.f32 %v1934, %v1938
          %v1944 = vmul.f32 %v1936, %v1940
          %1947 = vrot.lane.b32.xlu0 %v1943, 64
          %v1948 = vpop.permute.xlu0 %1947
          %1949 = vrot.lane.b32.xlu0 %v1944, 64
          %v1950 = vpop.permute.xlu0 %1949
          %v1953 = vadd.f32 %v1840, %v1948
          %v1954 = vadd.f32 %v1841, %v1950
          %v1955 = vtanh.pop %v1953
          %v1956 = vtanh.pop %v1954
          %v1957 = vsub.f32 1.0, %v1934
          %v1958 = vsub.f32 1.0, %v1936
          %1961 = vrot.lane.b32.xlu0 %v1955, 96
          %v1962 = vpop.permute.xlu0 %1961
          %1963 = vrot.lane.b32.xlu0 %v1956, 96
          %v1964 = vpop.permute.xlu0 %1963
          %v1967 = vmul.f32 %v1957, %v1962
          %v1968 = vmul.f32 %v1958, %v1964
          %v1969 = vrot.slane %v1676, 1
          %1970 = vrot.lane.b32.xlu0 %v1676, 32
          %v1971 = vpop.permute.xlu0 %1970
          %1972 = vrot.lane.b32.xlu0 %v1969, 32
          %v1973 = vpop.permute.xlu0 %1972
          %v1976 = vmul.f32 %v1934, %v1971
          %v1977 = vmul.f32 %v1936, %v1973
          %v1978 = vadd.f32 %v1967, %v1976
          %v1979 = vadd.f32 %v1968, %v1977
          %s1980 = ssub.s32 2, %s24
          %s1981 = smul.u32 %s1980, 32
          %s1982 = sadd.s32 %s1981, %s1838
          %p1983 = scmp.lt.s32.totalorder %s1982, 72
          %s1984 = scalar_select %p1983, 1, 0
          %v1985 = vstv %s1984
          %vm1986 = vcmp.eq.s32.totalorder %v1985, 1
          %v1987 = vsel %vm1986, %v1978, %v1971
          %v1988 = vsel %vm1986, %v1979, %v1973
          %1991 = vrot.lane.b32.xlu0 %v1987, 96
          %v1992 = vpop.permute.xlu0 %1991
          %1993 = vrot.lane.b32.xlu0 %v1988, 96
          %v1994 = vpop.permute.xlu0 %1993
          %s1997 = scalar_lea.vmem %s734, %s1838 [#allocation11]
          %1998 = vst.msk [vmem:[%s1997] sm:$0x1] %vm1835, %v1992
          %1999 = vst.msk [vmem:[%s1997 + $0x20] sm:$0x1] %vm1835, %v1994
          %v2000 = vrot.slane %v1825, 7
          %vm2001 = vcmask 1041409
          %v2002 = vsel %vm2001, %v2000, %v1824
          %2003 = vrot.lane.b32.xlu0 %v2002, 96
          %v2004 = vpop.permute.xlu0 %2003
          %v2006 = vrot.slane %v1988, 7
          %v2007 = vsel %vm2001, %v2006, %v1987
          %2008 = vrot.lane.b32.xlu0 %v2007, 96
          %v2009 = vpop.permute.xlu0 %2008
        $region225: #{_lambda_.3} parent=199 // loop_footer
          %s1674 = sadd.s32 1, %s1670
        $region226: #{_lambda_.3} parent=199 // loop_footer_branch
          %1669 = sbr.rel target = $region222
        $region227: #{_lambda_.3} parent=199 // loop_exit
          _
        %vm2011 = vcmask 254976
        %2012 = vst.msk [vmem:[#allocation4] sm:$0x3] %vm2011, %v1675
        %2013 = vst.msk [vmem:[#allocation5] sm:$0x3] %vm2011, %v1676
        %s2014 = sand.u32 %s287, 1
        %s2015 = sand.u32 %s287, 1
        %s2016 = smul.addr %s2015, 64
        %s2017 = scalar_lea.vmem [#allocation10], %s2016
        %s2018 = sand.u32 %s315, 1
        %s2019 = sand.u32 %s315, 1
        %s2020 = smul.addr %s2019, 64
        %s2021 = scalar_lea.vmem [#allocation11], %s2020
        // Predicated region
        $region228: #{_lambda_.3} parent=199 // pred_check
          %p2022 = pneg %p297
        $region229: #{_lambda_.3} parent=199 // pred_check_branch
          %2024 = sbr.rel (%p2022) target = $region231
        $region230: #{_lambda_.3} parent=199 // pred_region
          %s2025 = smul.u32 4, %s24
          %s2026 = smul.addr %s2025, 8
          %s2027 = scalar_lea.vmem %s11, %s2026
          // Predicated region
          $region232: #{_lambda_.3} parent=230 // pred_check
            _
          $region233: #{_lambda_.3} parent=230 // pred_check_branch
            %2029 = sbr.rel (0) target = $region235
          $region234: #{_lambda_.3} parent=230 // pred_region
            // Predicated region
            $region236: #{_lambda_.3} parent=234 // pred_check
              _
            $region237: #{_lambda_.3} parent=234 // pred_check_branch
              %2031 = sbr.rel (0) target = $region239
            $region238: #{_lambda_.3} parent=234 // pred_region
              // Predicated region
              $region251: #{_lambda_.3} parent=238 // pred_check
                _
              $region252: #{_lambda_.3} parent=238 // pred_check_branch
                %2060 = sbr.rel (0) target = $region254
              $region253: #{_lambda_.3} parent=238 // pred_region
                loop: start=0, step=1, limit=1
                $region255: #{_lambda_.3} parent=253 // loop_pre_header
                  _
                $region256: #{_lambda_.3} parent=253 // loop_header
                  %s2062 = sphi 0, %s2066
                  %p2063 = scmp.ge.s32.totalorder %s2062, 1
                  %s2067 = sphi %s2017, %s2017
                  %s2068 = sphi %s2027, %s2027
                $region257: #{_lambda_.3} parent=253 // loop_header_branch
                  %2065 = sbr.rel (%p2063) target = $region261
                $region258: #{_lambda_.3} parent=253 // loop_body
                  %v2069 = vld [vmem:[%s2067] sm:$0xff]
                  %2070 = vst [vmem:[%s2068] sm:$0xff] %v2069
                  %v2071 = vld [vmem:[%s2067 + $0x8] sm:$0xff]
                  %2072 = vst [vmem:[%s2068 + $0x8] sm:$0xff] %v2071
                  %v2073 = vld [vmem:[%s2067 + $0x10] sm:$0xff]
                  %2074 = vst [vmem:[%s2068 + $0x10] sm:$0xff] %v2073
                  %v2075 = vld [vmem:[%s2067 + $0x18] sm:$0xff]
                  %2076 = vst [vmem:[%s2068 + $0x18] sm:$0xff] %v2075
                  %v2077 = vld [vmem:[%s2067 + $0x20] sm:$0xff]
                  %2078 = vst [vmem:[%s2068 + $0x60] sm:$0xff] %v2077
                  %v2079 = vld [vmem:[%s2067 + $0x28] sm:$0xff]
                  %2080 = vst [vmem:[%s2068 + $0x68] sm:$0xff] %v2079
                  %v2081 = vld [vmem:[%s2067 + $0x30] sm:$0xff]
                  %2082 = vst [vmem:[%s2068 + $0x70] sm:$0xff] %v2081
                  %v2083 = vld [vmem:[%s2067 + $0x38] sm:$0xff]
                  %2084 = vst [vmem:[%s2068 + $0x78] sm:$0xff] %v2083
                $region259: #{_lambda_.3} parent=253 // loop_footer
                  %s2066 = sadd.s32 1, %s2062
                $region260: #{_lambda_.3} parent=253 // loop_footer_branch
                  %2061 = sbr.rel target = $region256
                $region261: #{_lambda_.3} parent=253 // loop_exit
                  _
              $region254: #{_lambda_.3} parent=238 // pred_fallthru
                _
              // Predicated region
              $region262: #{_lambda_.3} parent=238 // pred_check
                _
              $region263: #{_lambda_.3} parent=238 // pred_check_branch
                %2086 = sbr.rel target = $region265
              $region264: #{_lambda_.3} parent=238 // pred_region
                _
              $region265: #{_lambda_.3} parent=238 // pred_fallthru
                _
            $region239: #{_lambda_.3} parent=234 // pred_fallthru
              _
            // Predicated region
            $region240: #{_lambda_.3} parent=234 // pred_check
              _
            $region241: #{_lambda_.3} parent=234 // pred_check_branch
              %2033 = sbr.rel target = $region243
            $region242: #{_lambda_.3} parent=234 // pred_region
              loop: start=0, step=1, limit=1
              $region244: #{_lambda_.3} parent=242 // loop_pre_header
                _
              $region245: #{_lambda_.3} parent=242 // loop_header
                %s2036 = sphi 0, %s2040
                %p2037 = scmp.ge.s32.totalorder %s2036, 1
                %s2041 = sphi %s2017, %s2017
                %s2042 = sphi %s2027, %s2027
              $region246: #{_lambda_.3} parent=242 // loop_header_branch
                %2039 = sbr.rel (%p2037) target = $region250
              $region247: #{_lambda_.3} parent=242 // loop_body
                %v2043 = vld [vmem:[%s2041] sm:$0xff]
                %2044 = vst [vmem:[%s2042] sm:$0xff] %v2043
                %v2045 = vld [vmem:[%s2041 + $0x8] sm:$0xff]
                %2046 = vst [vmem:[%s2042 + $0x8] sm:$0xff] %v2045
                %v2047 = vld [vmem:[%s2041 + $0x10] sm:$0xff]
                %2048 = vst [vmem:[%s2042 + $0x10] sm:$0xff] %v2047
                %v2049 = vld [vmem:[%s2041 + $0x18] sm:$0xff]
                %2050 = vst [vmem:[%s2042 + $0x18] sm:$0xff] %v2049
                %v2051 = vld [vmem:[%s2041 + $0x20] sm:$0xff]
                %2052 = vst [vmem:[%s2042 + $0x60] sm:$0xff] %v2051
                %v2053 = vld [vmem:[%s2041 + $0x28] sm:$0xff]
                %2054 = vst [vmem:[%s2042 + $0x68] sm:$0xff] %v2053
                %v2055 = vld [vmem:[%s2041 + $0x30] sm:$0xff]
                %2056 = vst [vmem:[%s2042 + $0x70] sm:$0xff] %v2055
                %v2057 = vld [vmem:[%s2041 + $0x38] sm:$0xff]
                %2058 = vst [vmem:[%s2042 + $0x78] sm:$0xff] %v2057
              $region248: #{_lambda_.3} parent=242 // loop_footer
                %s2040 = sadd.s32 1, %s2036
              $region249: #{_lambda_.3} parent=242 // loop_footer_branch
                %2035 = sbr.rel target = $region245
              $region250: #{_lambda_.3} parent=242 // loop_exit
                _
            $region243: #{_lambda_.3} parent=234 // pred_fallthru
              _
          $region235: #{_lambda_.3} parent=230 // pred_fallthru
            _
          %2087 = vnop
        $region231: #{_lambda_.3} parent=199 // pred_fallthru
          _
        // Predicated region
        $region266: #{_lambda_.3} parent=199 // pred_check
          %p2088 = pneg %p325
        $region267: #{_lambda_.3} parent=199 // pred_check_branch
          %2090 = sbr.rel (%p2088) target = $region269
        $region268: #{_lambda_.3} parent=199 // pred_region
          %s2091 = ssub.s32 2, %s24
          %s2092 = smul.u32 4, %s2091
          %s2093 = smul.addr %s2092, 8
          %s2094 = scalar_lea.vmem %s12, %s2093
          // Predicated region
          $region270: #{_lambda_.3} parent=268 // pred_check
            _
          $region271: #{_lambda_.3} parent=268 // pred_check_branch
            %2096 = sbr.rel (0) target = $region273
          $region272: #{_lambda_.3} parent=268 // pred_region
            // Predicated region
            $region274: #{_lambda_.3} parent=272 // pred_check
              _
            $region275: #{_lambda_.3} parent=272 // pred_check_branch
              %2098 = sbr.rel (0) target = $region277
            $region276: #{_lambda_.3} parent=272 // pred_region
              // Predicated region
              $region289: #{_lambda_.3} parent=276 // pred_check
                _
              $region290: #{_lambda_.3} parent=276 // pred_check_branch
                %2127 = sbr.rel (0) target = $region292
              $region291: #{_lambda_.3} parent=276 // pred_region
                loop: start=0, step=1, limit=1
                $region293: #{_lambda_.3} parent=291 // loop_pre_header
                  _
                $region294: #{_lambda_.3} parent=291 // loop_header
                  %s2129 = sphi 0, %s2133
                  %p2130 = scmp.ge.s32.totalorder %s2129, 1
                  %s2134 = sphi %s2021, %s2021
                  %s2135 = sphi %s2094, %s2094
                $region295: #{_lambda_.3} parent=291 // loop_header_branch
                  %2132 = sbr.rel (%p2130) target = $region299
                $region296: #{_lambda_.3} parent=291 // loop_body
                  %v2136 = vld [vmem:[%s2134] sm:$0xff]
                  %2137 = vst [vmem:[%s2135] sm:$0xff] %v2136
                  %v2138 = vld [vmem:[%s2134 + $0x8] sm:$0xff]
                  %2139 = vst [vmem:[%s2135 + $0x8] sm:$0xff] %v2138
                  %v2140 = vld [vmem:[%s2134 + $0x10] sm:$0xff]
                  %2141 = vst [vmem:[%s2135 + $0x10] sm:$0xff] %v2140
                  %v2142 = vld [vmem:[%s2134 + $0x18] sm:$0xff]
                  %2143 = vst [vmem:[%s2135 + $0x18] sm:$0xff] %v2142
                  %v2144 = vld [vmem:[%s2134 + $0x20] sm:$0xff]
                  %2145 = vst [vmem:[%s2135 + $0x60] sm:$0xff] %v2144
                  %v2146 = vld [vmem:[%s2134 + $0x28] sm:$0xff]
                  %2147 = vst [vmem:[%s2135 + $0x68] sm:$0xff] %v2146
                  %v2148 = vld [vmem:[%s2134 + $0x30] sm:$0xff]
                  %2149 = vst [vmem:[%s2135 + $0x70] sm:$0xff] %v2148
                  %v2150 = vld [vmem:[%s2134 + $0x38] sm:$0xff]
                  %2151 = vst [vmem:[%s2135 + $0x78] sm:$0xff] %v2150
                $region297: #{_lambda_.3} parent=291 // loop_footer
                  %s2133 = sadd.s32 1, %s2129
                $region298: #{_lambda_.3} parent=291 // loop_footer_branch
                  %2128 = sbr.rel target = $region294
                $region299: #{_lambda_.3} parent=291 // loop_exit
                  _
              $region292: #{_lambda_.3} parent=276 // pred_fallthru
                _
              // Predicated region
              $region300: #{_lambda_.3} parent=276 // pred_check
                _
              $region301: #{_lambda_.3} parent=276 // pred_check_branch
                %2153 = sbr.rel target = $region303
              $region302: #{_lambda_.3} parent=276 // pred_region
                _
              $region303: #{_lambda_.3} parent=276 // pred_fallthru
                _
            $region277: #{_lambda_.3} parent=272 // pred_fallthru
              _
            // Predicated region
            $region278: #{_lambda_.3} parent=272 // pred_check
              _
            $region279: #{_lambda_.3} parent=272 // pred_check_branch
              %2100 = sbr.rel target = $region281
            $region280: #{_lambda_.3} parent=272 // pred_region
              loop: start=0, step=1, limit=1
              $region282: #{_lambda_.3} parent=280 // loop_pre_header
                _
              $region283: #{_lambda_.3} parent=280 // loop_header
                %s2103 = sphi 0, %s2107
                %p2104 = scmp.ge.s32.totalorder %s2103, 1
                %s2108 = sphi %s2021, %s2021
                %s2109 = sphi %s2094, %s2094
              $region284: #{_lambda_.3} parent=280 // loop_header_branch
                %2106 = sbr.rel (%p2104) target = $region288
              $region285: #{_lambda_.3} parent=280 // loop_body
                %v2110 = vld [vmem:[%s2108] sm:$0xff]
                %2111 = vst [vmem:[%s2109] sm:$0xff] %v2110
                %v2112 = vld [vmem:[%s2108 + $0x8] sm:$0xff]
                %2113 = vst [vmem:[%s2109 + $0x8] sm:$0xff] %v2112
                %v2114 = vld [vmem:[%s2108 + $0x10] sm:$0xff]
                %2115 = vst [vmem:[%s2109 + $0x10] sm:$0xff] %v2114
                %v2116 = vld [vmem:[%s2108 + $0x18] sm:$0xff]
                %2117 = vst [vmem:[%s2109 + $0x18] sm:$0xff] %v2116
                %v2118 = vld [vmem:[%s2108 + $0x20] sm:$0xff]
                %2119 = vst [vmem:[%s2109 + $0x60] sm:$0xff] %v2118
                %v2120 = vld [vmem:[%s2108 + $0x28] sm:$0xff]
                %2121 = vst [vmem:[%s2109 + $0x68] sm:$0xff] %v2120
                %v2122 = vld [vmem:[%s2108 + $0x30] sm:$0xff]
                %2123 = vst [vmem:[%s2109 + $0x70] sm:$0xff] %v2122
                %v2124 = vld [vmem:[%s2108 + $0x38] sm:$0xff]
                %2125 = vst [vmem:[%s2109 + $0x78] sm:$0xff] %v2124
              $region286: #{_lambda_.3} parent=280 // loop_footer
                %s2107 = sadd.s32 1, %s2103
              $region287: #{_lambda_.3} parent=280 // loop_footer_branch
                %2102 = sbr.rel target = $region283
              $region288: #{_lambda_.3} parent=280 // loop_exit
                _
            $region281: #{_lambda_.3} parent=272 // pred_fallthru
              _
          $region273: #{_lambda_.3} parent=268 // pred_fallthru
            _
          %2154 = vnop
        $region269: #{_lambda_.3} parent=199 // pred_fallthru
          _
      $region200: #{_lambda_.3} parent=5 // pred_fallthru
        _
      %p2155 = scmp.le.s32.totalorder 2, %s19
      // Predicated region
      $region304: #{_lambda_.3} parent=5 // pred_check
        %p2156 = pneg %p2155
      $region305: #{_lambda_.3} parent=5 // pred_check_branch
        %2158 = sbr.rel (%p2156) target = $region307
      $region306: #{_lambda_.3} parent=5 // pred_region
        %s2159 = ssub.s32 %s19, 2
        // Predicated region
        $region308: #{_lambda_.3} parent=306 // pred_check
          %p2160 = pneg %p303
        $region309: #{_lambda_.3} parent=306 // pred_check_branch
          %2162 = sbr.rel (%p2160) target = $region311
        $region310: #{_lambda_.3} parent=306 // pred_region
          %s2163 = sand.u32 %s288, 1
          %s2164 = sand.u32 %s288, 1
          %s2165 = smul.addr %s2164, 64
          %s2166 = scalar_lea.vmem [#allocation10], %s2165
        $region311: #{_lambda_.3} parent=306 // pred_fallthru
          _
        // Predicated region
        $region312: #{_lambda_.3} parent=306 // pred_check
          %p2167 = pneg %p331
        $region313: #{_lambda_.3} parent=306 // pred_check_branch
          %2169 = sbr.rel (%p2167) target = $region315
        $region314: #{_lambda_.3} parent=306 // pred_region
          %s2170 = sand.u32 %s316, 1
          %s2171 = sand.u32 %s316, 1
          %s2172 = smul.addr %s2171, 64
          %s2173 = scalar_lea.vmem [#allocation11], %s2172
        $region315: #{_lambda_.3} parent=306 // pred_fallthru
          _
      $region307: #{_lambda_.3} parent=5 // pred_fallthru
        _
    $region6: #{_lambda_.3} parent=1 // loop_footer
      %s23 = sadd.s32 1, %s19
    $region7: #{_lambda_.3} parent=1 // loop_footer_branch
      %18 = sbr.rel target = $region3
    $region8: #{_lambda_.3} parent=1 // loop_exit
      _

</llo_original>
